<compile_context>
chip_gen: v5e
topology: v5e:2x2
jax: 0.10.0
libtpu: 0.0.40
codegen_flags: <defaults>
</compile_context>

<pallas_src>
import functools

import jax
import jax.numpy as jnp
from jax import lax
from jax.experimental import pallas as pl
from jax.experimental.pallas import tpu as pltpu

# mirrors conf_attn_down from the reference code
CONF_ATTN_DOWN = dict(
    key_ratio=2,
    value_ratio=2,
    num_heads=2,
    dropout_rate=0.0,   # 0.0 -> dropout is a no-op
    use_softmax=True,
    use_bias=False,
)

_VMEM_LIMIT = 32 * 1024 * 1024   # safe on v5e/v6e (128 MiB) and v7x (64 MiB)


def _largest_tile(n, nominal):
    """Largest divisor of n that is <= nominal and a multiple of 8 (else n)."""
    if n <= nominal:
        return n
    best = None
    for t in range(8, nominal + 1, 8):
        if n % t == 0:
            best = t
    return best if best is not None else n


def _spec(block_shape, index_map, buffers=None):
    """BlockSpec, optionally with a deeper pipeline (ignored if unsupported)."""
    if buffers is not None:
        try:
            return pl.BlockSpec(block_shape, index_map,
                                pipeline_mode=pl.Buffered(buffers))
        except Exception:   # pipeline_mode / pl.Buffered unavailable -> default
            pass
    return pl.BlockSpec(block_shape, index_map)


# ------------------------- Pallas kernels -------------------------

def _bn_relu_kernel(x_ref, scale_ref, shift_ref, o_ref):
    # lane-dense (rows, 128) view of the NHWC activation; scale/shift rows are
    # the per-channel vectors tiled across 128 lanes.  f32 math, bf16 store.
    o_ref[...] = jnp.maximum(
        x_ref[...] * scale_ref[...] + shift_ref[...], 0.0).astype(o_ref.dtype)


def _shortcut_conv_kernel(rowa_ref, rowb_ref, w2_ref, o_ref):
    # 3x3 stride-2 conv rewritten as a 2x2 stride-1 conv on the space-to-depth
    # map: 4 small matmuls accumulated in f32, one output row per grid step.
    n_wo = o_ref.shape[2]
    acc = jnp.zeros((n_wo, o_ref.shape[3]), jnp.float32)
    for p, row_ref in enumerate((rowa_ref, rowb_ref)):
        for q in range(2):
            x = row_ref[0, 0, q:q + n_wo, :]                    # (Wo, 4C) bf16
            acc += jnp.dot(x, w2_ref[2 * p + q],
                           preferred_element_type=jnp.float32)
    o_ref[0, 0] = acc.astype(o_ref.dtype)


def _attn_kernel(xq_ref, xkv_ref, wq_ref, wkv_ref, wo_ref, sc_ref, o_ref,
                 q_ref, m_ref, l_ref, acc_ref,
                 *, heads, dk, dv, use_softmax):
    # grid = (B, Lq/tLq, Lk/tLk); online softmax over the Lk axis.
    lk = pl.program_id(2)
    dk_t = heads * dk

    @pl.when(lk == 0)
    def _():
        # fused 2x2 average pool + query projection (wq already carries the
        # pooling 1/4 and the 1/sqrt(dk) score scale)
        q_ref[...] = jnp.dot(xq_ref[0], wq_ref[...],
                             preferred_element_type=jnp.float32
                             ).astype(q_ref.dtype)
        if use_softmax:
            m_ref[...] = jnp.full(m_ref.shape, -jnp.inf, m_ref.dtype)
            l_ref[...] = jnp.zeros(l_ref.shape, l_ref.dtype)
        acc_ref[...] = jnp.zeros(acc_ref.shape, acc_ref.dtype)

    # fused K|V projection for this Lk block: (tLk, C) @ (C, K_all|V_all)
    kv = jnp.dot(xkv_ref[0], wkv_ref[...],
                 preferred_element_type=jnp.float32).astype(jnp.bfloat16)
    q = q_ref[...]                                              # (tLq, heads*dk)

    for h in range(heads):
        q_h = q[:, h * dk:(h + 1) * dk]                         # (tLq, dk)
        k_h = kv[:, h * dk:(h + 1) * dk]                        # (tLk, dk)
        v_h = kv[:, dk_t + h * dv: dk_t + (h + 1) * dv]         # (tLk, dv)

        # contract last dims -> no transpose of K
        s = lax.dot_general(q_h, k_h, (((1,), (1,)), ((), ())),
                            preferred_element_type=jnp.float32)

        sl = slice(h * dv, (h + 1) * dv)
        if use_softmax:
            m_prev = m_ref[h]                                   # (tLq, 1)
            m_new = jnp.maximum(m_prev, jnp.max(s, axis=-1, keepdims=True))
            alpha = jnp.exp(m_prev - m_new)
            p = jnp.exp(s - m_new)                              # f32
            l_ref[h] = alpha * l_ref[h] + jnp.sum(p, axis=-1, keepdims=True)
            acc_ref[:, sl] = alpha * acc_ref[:, sl] + jnp.dot(
                p.astype(jnp.bfloat16), v_h, preferred_element_type=jnp.float32)
            m_ref[h] = m_new
        else:
            acc_ref[:, sl] = acc_ref[:, sl] + jnp.dot(
                s.astype(jnp.bfloat16), v_h, preferred_element_type=jnp.float32)

    @pl.when(lk == pl.num_programs(2) - 1)
    def _():
        # epilogue: per-head normalization, then ONE (tLq, heads*dv)@(heads*dv,
        # F) output projection fused with the conv-shortcut add -> single
        # F-wide write per Lq tile.
        if use_softmax:
            ctx = jnp.concatenate(
                [acc_ref[:, h * dv:(h + 1) * dv]
                 * pl.reciprocal(l_ref[h], approx=True) for h in range(heads)],
                axis=-1)
        else:
            ctx = acc_ref[...]
        out = sc_ref[0].astype(jnp.float32) + jnp.dot(
            ctx.astype(jnp.bfloat16), wo_ref[...],
            preferred_element_type=jnp.float32)
        o_ref[0] = out.astype(o_ref.dtype)


# ------------------------- Pallas wrappers -------------------------

def bn_relu_nhwc(x_nhwc, gamma, beta, mean, var, eps=1e-5, nominal_rows=512):
    """Eval-mode BN + ReLU on an NHWC map; lane-dense 128-wide tiling, bf16 out."""
    B, H, W, C = x_nhwc.shape
    assert 128 % C == 0, "lane-dense BN path needs C to divide 128"
    total = B * H * W * C
    assert total % 128 == 0, "lane-dense BN path needs B*H*W*C % 128 == 0"
    rows = total // 128

    scale_c = (gamma / jnp.sqrt(var + eps)).astype(jnp.float32)
    shift_c = (beta - mean * scale_c).astype(jnp.float32)
    scale = jnp.tile(scale_c, 128 // C).reshape(1, 128)
    shift = jnp.tile(shift_c, 128 // C).reshape(1, 128)

    # pick a row tile; keep >=2 blocks when possible (v7x shards the parallel
    # grid over its 2 TensorCores)
    if rows <= 8:
        tr = rows
    else:
        cap = min(nominal_rows, rows // 2 if rows >= 16 else rows)
        cap = max(cap - cap % 8, 8)
        tr = rows
        for t in range(cap, 7, -8):
            if rows % t == 0:
                tr = t
                break

    x_flat = x_nhwc.reshape(rows, 128)
    out = pl.pallas_call(
        _bn_relu_kernel,
        out_shape=jax.ShapeDtypeStruct((rows, 128), jnp.bfloat16),
        grid=(rows // tr,),
        in_specs=[pl.BlockSpec((tr, 128), lambda i: (i, 0)),
                  pl.BlockSpec((1, 128), lambda i: (0, 0)),
                  pl.BlockSpec((1, 128), lambda i: (0, 0))],
        out_specs=pl.BlockSpec((tr, 128), lambda i: (i, 0)),
        compiler_params=pltpu.CompilerParams(
            dimension_semantics=("parallel",),
            vmem_limit_bytes=_VMEM_LIMIT),
    )(x_flat, scale, shift)
    return out.reshape(B, H, W, C)


def _conv_weight_s2d(w_conv):
    """(F, C, 3, 3) conv weight -> (4, 4C, F): the 3x3 stride-2 conv rewritten
    as a 2x2 stride-1 conv over the space-to-depth map (outer tap p,q; inner
    sub-position a,b; channel c). Taps that fall outside the 3x3 window are 0."""
    F, C, _, _ = w_conv.shape
    w_pad = jnp.pad(w_conv, ((0, 0), (0, 0), (1, 0), (1, 0)))   # (F,C,4,4)
    w6 = w_pad.reshape(F, C, 2, 2, 2, 2)                        # (F,C,p,a,q,b)
    w6 = w6.transpose(2, 4, 3, 5, 1, 0)                         # (p,q,a,b,C,F)
    return w6.reshape(4, 4 * C, F).astype(jnp.bfloat16)


def shortcut_conv(s2d, w2):
    """3x3 stride-2 conv via the space-to-depth map (no HBM im2col).

    s2d: (B, Ho, Wo, 4C) bf16, w2: (4, 4C, F) bf16 -> (B, Ho, Wo, F) f32.
    """
    B, Ho, Wo, C4 = s2d.shape
    F = w2.shape[-1]
    # zero-pad one row on top / one column on the left: the only taps a 3x3
    # stride-2 conv with padding=1 takes outside the map when H, W are even.
    s2d_zp = jnp.pad(s2d, ((0, 0), (1, 0), (1, 0), (0, 0)))
    # TODO(synk): for very large Ho, tile several output rows per grid step.
    return pl.pallas_call(
        _shortcut_conv_kernel,
        out_shape=jax.ShapeDtypeStruct((B, Ho, Wo, F), jnp.float32),
        grid=(B, Ho),
        in_specs=[
            # the same padded map is passed twice: rows ho-1 (p=0) and ho (p=1)
            pl.BlockSpec((1, 1, Wo + 1, C4), lambda b, i: (b, i, 0, 0)),
            pl.BlockSpec((1, 1, Wo + 1, C4), lambda b, i: (b, i + 1, 0, 0)),
            pl.BlockSpec((4, C4, F), lambda b, i: (0, 0, 0)),
        ],
        out_specs=pl.BlockSpec((1, 1, Wo, F), lambda b, i: (b, i, 0, 0)),
        compiler_params=pltpu.CompilerParams(
            dimension_semantics=("parallel", "parallel"),
            vmem_limit_bytes=_VMEM_LIMIT),
    )(s2d_zp, s2d_zp, w2)


def attention_down(xq_s2d, xkv_tok, wq4, wkv, wo, shortcut, *, heads, dk, dv,
                   use_softmax=True, block_lq=256, block_lk=256):
    """Flash-style 'DOWN' attention with fused pool+q-proj, K|V-proj, w_o and
    shortcut add.

    xq_s2d:   (B, Lq, 4C)   bf16  space-to-depth activation (query source)
    xkv_tok:  (B, Lk, C)    bf16  full-resolution tokens (key/value source)
    wq4:      (4C, heads*dk) bf16 (pre-scaled by 1/4 and 1/sqrt(dk))
    wkv:      (C, heads*(dk+dv)) bf16, columns [K_all | V_all] head-major
    wo:       (heads*dv, F) bf16
    shortcut: (B, Lq, F)    f32
    returns:  (B, Lq, F)    f32
    """
    B, Lq, C4 = xq_s2d.shape
    _, Lk, C = xkv_tok.shape
    F = shortcut.shape[-1]
    dkv_t = heads * (dk + dv)

    tLq = _largest_tile(Lq, block_lq)
    tLk = _largest_tile(Lk, block_lk)
    if B * (Lq // tLq) < 2 and tLq % 16 == 0:
        tLq //= 2    # keep >=2 parallel blocks so both v7x TensorCores get work
    nlk = Lk // tLk

    kernel = functools.partial(_attn_kernel, heads=heads, dk=dk, dv=dv,
                               use_softmax=use_softmax)

    return pl.pallas_call(
        kernel,
        out_shape=jax.ShapeDtypeStruct((B, Lq, F), jnp.float32),
        grid_spec=pltpu.PrefetchScalarGridSpec(
            num_scalar_prefetch=0,
            grid=(B, Lq // tLq, nlk),
            in_specs=[
                pl.BlockSpec((1, tLq, C4), lambda b, i, l: (b, i, 0)),
                _spec((1, tLk, C), lambda b, i, l: (b, l, 0),
                      buffers=3 if nlk >= 3 else None),
                pl.BlockSpec((C4, heads * dk), lambda b, i, l: (0, 0)),
                pl.BlockSpec((C, dkv_t), lambda b, i, l: (0, 0)),
                pl.BlockSpec((heads * dv, F), lambda b, i, l: (0, 0)),
                pl.BlockSpec((1, tLq, F), lambda b, i, l: (b, i, 0)),
            ],
            out_specs=pl.BlockSpec((1, tLq, F), lambda b, i, l: (b, i, 0)),
            scratch_shapes=[
                pltpu.VMEM((tLq, heads * dk), jnp.bfloat16),   # fused q
                pltpu.VMEM((heads, tLq, 1), jnp.float32),      # running max
                pltpu.VMEM((heads, tLq, 1), jnp.float32),      # running sum
                pltpu.VMEM((tLq, heads * dv), jnp.float32),    # running context
            ]),
        compiler_params=pltpu.CompilerParams(
            dimension_semantics=("parallel", "parallel", "arbitrary"),
            vmem_limit_bytes=_VMEM_LIMIT),
    )(xq_s2d, xkv_tok, wq4, wkv, wo, shortcut)


# ------------------------- module forward -------------------------

def init_params(key, in_channels, output_filters, conf):
    C, F = in_channels, output_filters
    kd_total = F // conf['key_ratio']    # total key channels (across heads)
    vd_total = F // conf['value_ratio']  # total value channels
    ks = jax.random.split(key, 8)
    return dict(
        bn_gamma=1.0 + 0.1 * jax.random.normal(ks[0], (C,), jnp.float32),
        bn_beta=0.1 * jax.random.normal(ks[1], (C,), jnp.float32),
        bn_mean=0.1 * jax.random.normal(ks[2], (C,), jnp.float32),
        bn_var=jnp.abs(jax.random.normal(ks[3], (C,), jnp.float32)) + 0.5,
        w_conv=0.1 * jax.random.normal(ks[4], (F, C, 3, 3), jnp.float32),
        w_q=0.1 * jax.random.normal(ks[5], (kd_total, C), jnp.float32),
        w_k=0.1 * jax.random.normal(ks[6], (kd_total, C), jnp.float32),
        w_v=0.1 * jax.random.normal(ks[7], (vd_total, C), jnp.float32),
        w_o=0.1 * jax.random.normal(jax.random.fold_in(key, 99),
                                    (F, vd_total), jnp.float32),
    )


def down_gto_v1_forward(x, params, conf=CONF_ATTN_DOWN):
    B, C, H, W = x.shape
    assert H % 2 == 0 and W % 2 == 0, "DOWN block needs even spatial dims"
    F = params['w_conv'].shape[0]
    heads = conf['num_heads']
    dk_t = params['w_q'].shape[0]
    dv_t = params['w_v'].shape[0]
    dk, dv = dk_t // heads, dv_t // heads
    Ho, Wo = H // 2, W // 2
    Lq, Lk = Ho * Wo, H * W
    sm_scale = 1.0 / (dk ** 0.5)

    # TODO(synk): conf['use_bias'] is False in this config; biases not implemented.

    # single layout change at the module boundary: NCHW -> NHWC (XLA transpose)
    x_nhwc = x.transpose(0, 2, 3, 1)

    # ---- BN (eval stats) + ReLU: lane-dense 128-wide tiles, bf16 output ----
    h = bn_relu_nhwc(x_nhwc, params['bn_gamma'], params['bn_beta'],
                     params['bn_mean'], params['bn_var'])        # (B,H,W,C) bf16

    # space-to-depth view (B, Ho, Wo, 4C): shared by the shortcut conv (as a
    # 2x2 conv) and by the fused average-pool + query projection.
    s2d = h.reshape(B, Ho, 2, Wo, 2, C).transpose(0, 1, 3, 2, 4, 5) \
           .reshape(B, Ho, Wo, 4 * C)

    # ---- projection_shortcut: Conv2d(C, F, 3, stride=2, bias=False) ----
    # TODO(synk): Conv2d_gvtn padding assumed to be 1 (SAME-style, spatial/2).
    w2 = _conv_weight_s2d(params['w_conv'])                      # (4, 4C, F) bf16
    shortcut = shortcut_conv(s2d, w2).reshape(B, Lq, F)          # f32

    # ---- Attention branch ('DOWN' mode) ----
    # TODO(synk): Attention_gvtn 'DOWN' query downsampling assumed to be a 2x2
    # average pool followed by the bias-free 1x1 query projection.
    # pool + q projection fused: 4 stacked copies of w_q^T scaled by 1/4, with
    # the 1/sqrt(dk) score scale folded in as well.
    wq4 = (jnp.tile(params['w_q'].T, (4, 1))
           * (0.25 * sm_scale)).astype(jnp.bfloat16)             # (4C, dk_t)
    # K|V projection fused into the attention kernel: columns [K_all | V_all]
    wkv = jnp.concatenate([params['w_k'].T, params['w_v'].T],
                          axis=1).astype(jnp.bfloat16)           # (C, dk_t+dv_t)
    wo = params['w_o'].T.astype(jnp.bfloat16)                    # (dv_t, F)

    # flash attention + pool/q/kv projections + w_o + residual add, one kernel
    # (dropout_rate = 0.0 -> dropout is a no-op)
    out_tok = attention_down(
        s2d.reshape(B, Lq, 4 * C), h.reshape(B, Lk, C), wq4, wkv, wo, shortcut,
        heads=heads, dk=dk, dv=dv, use_softmax=conf['use_softmax'])

    return out_tok.reshape(B, Ho, Wo, F).transpose(0, 3, 1, 2)


# ------------------------- pure-JAX reference (for validation) -------------------------

def reference_forward(x, params, conf=CONF_ATTN_DOWN, eps=1e-5):
    B, C, H, W = x.shape
    heads = conf['num_heads']
    dk = params['w_q'].shape[0] // heads
    dv = params['w_v'].shape[0] // heads
    Ho, Wo = H // 2, W // 2

    scale = params['bn_gamma'] / jnp.sqrt(params['bn_var'] + eps)
    shift = params['bn_beta'] - params['bn_mean'] * scale
    h = jnp.maximum(x * scale[None, :, None, None] + shift[None, :, None, None], 0.0)

    shortcut = lax.conv_general_dilated(
        h, params['w_conv'], window_strides=(2, 2), padding=((1, 1), (1, 1)),
        dimension_numbers=('NCHW', 'OIHW', 'NCHW'))

    tok_full = h.transpose(0, 2, 3, 1).reshape(B, H * W, C)
    h_ds = h.reshape(B, C, Ho, 2, Wo, 2).mean(axis=(3, 5))
    tok_ds = h_ds.transpose(0, 2, 3, 1).reshape(B, Ho * Wo, C)

    q = (tok_ds @ params['w_q'].T).reshape(B, -1, heads, dk).transpose(0, 2, 1, 3)
    k = (tok_full @ params['w_k'].T).reshape(B, -1, heads, dk).transpose(0, 2, 1, 3)
    v = (tok_full @ params['w_v'].T).reshape(B, -1, heads, dv).transpose(0, 2, 1, 3)

    s = jnp.einsum('bhqd,bhkd->bhqk', q, k) / jnp.sqrt(jnp.float32(dk))
    p = jax.nn.softmax(s, axis=-1) if conf['use_softmax'] else s
    o = jnp.einsum('bhqk,bhkd->bhqd', p, v)
    o = o.transpose(0, 2, 1, 3).reshape(B, Ho * Wo, heads * dv)
    o = (o @ params['w_o'].T).reshape(B, Ho, Wo, -1).transpose(0, 3, 1, 2)
    return shortcut + o


if __name__ == "__main__":
    key = jax.random.PRNGKey(0)
    B, C, H, W = 2, 4, 16, 16          # NCHW input, like the PyTorch module
    F = 16                              # output_filters

    k_x, k_p = jax.random.split(key)
    x = jax.random.normal(k_x, (B, C, H, W), jnp.float32)
    params = init_params(k_p, C, F, CONF_ATTN_DOWN)

    fwd = jax.jit(down_gto_v1_forward)
    out = jax.block_until_ready(fwd(x, params))

    assert out.shape == (B, F, H // 2, W // 2), out.shape
    assert bool(jnp.all(jnp.isfinite(out)))

    ref = reference_forward(x, params, CONF_ATTN_DOWN)
    err = float(jnp.max(jnp.abs(out - ref)))
    assert err < 1e-1, f"max abs error vs reference: {err}"

    print("KERNEL_OK")
</pallas_src>

<mosaic_0001>
module attributes {stable_mosaic.version = 11 : i64} {
  func.func @_bn_relu_kernel(%arg0: i32, %arg1: memref<8x128xf32, #tpu.memory_space<vmem>>, %arg2: memref<1x128xf32, #tpu.memory_space<vmem>>, %arg3: memref<1x128xf32, #tpu.memory_space<vmem>>, %arg4: memref<8x128xbf16, #tpu.memory_space<vmem>>) attributes {dimension_semantics = [#tpu.dimension_semantics<parallel>], iteration_bounds = array<i64: 2>, scalar_prefetch = 0 : i64, scratch_operands = 0 : i64, tpu.core_type = #tpu.core_type<tc>, window_params = [{transform_indices = @transform_0, window_bounds = array<i64: 8, 128>}, {pipeline_mode = #tpu.pipeline_mode<synchronous>, transform_indices = @transform_1, window_bounds = array<i64: 1, 128>}, {pipeline_mode = #tpu.pipeline_mode<synchronous>, transform_indices = @transform_2, window_bounds = array<i64: 1, 128>}, {transform_indices = @transform_3, window_bounds = array<i64: 8, 128>}]} {
    %c0 = arith.constant 0 : index
    %c0_0 = arith.constant 0 : index
    %0 = vector.load %arg1[%c0, %c0_0] : memref<8x128xf32, #tpu.memory_space<vmem>>, vector<8x128xf32>
    %c0_1 = arith.constant 0 : index
    %c0_2 = arith.constant 0 : index
    %1 = vector.load %arg2[%c0_1, %c0_2] : memref<1x128xf32, #tpu.memory_space<vmem>>, vector<1x128xf32>
    %2 = vector.broadcast %1 : vector<1x128xf32> to vector<8x128xf32>
    %3 = arith.mulf %0, %2 : vector<8x128xf32>
    %c0_3 = arith.constant 0 : index
    %c0_4 = arith.constant 0 : index
    %4 = vector.load %arg3[%c0_3, %c0_4] : memref<1x128xf32, #tpu.memory_space<vmem>>, vector<1x128xf32>
    %5 = vector.broadcast %4 : vector<1x128xf32> to vector<8x128xf32>
    %6 = arith.addf %3, %5 : vector<8x128xf32>
    %cst = arith.constant 0.000000e+00 : f32
    %7 = vector.broadcast %cst : f32 to vector<8x128xf32>
    %8 = arith.maximumf %6, %7 : vector<8x128xf32>
    %9 = arith.truncf %8 : vector<8x128xf32> to vector<8x128xbf16>
    %c0_5 = arith.constant 0 : index
    %c0_6 = arith.constant 0 : index
    %10 = vector.load %arg4[%c0_5, %c0_6] : memref<8x128xbf16, #tpu.memory_space<vmem>>, vector<8x128xbf16>
    tpu.vector_store %arg4[%c0_5, %c0_6], %9 {strides = array<i32>} : memref<8x128xbf16, #tpu.memory_space<vmem>>, vector<8x128xbf16>,
    return
  }
  func.func @transform_0(%arg0: i32) -> (i32, i32) {
    %c0_i32 = arith.constant 0 : i32
    %c0_i32_0 = arith.constant 0 : i32
    return %arg0, %c0_i32 : i32, i32
  }
  func.func @transform_1(%arg0: i32) -> (i32, i32) {
    %c0_i32 = arith.constant 0 : i32
    %c0_i32_0 = arith.constant 0 : i32
    %c0_i32_1 = arith.constant 0 : i32
    return %c0_i32, %c0_i32_0 : i32, i32
  }
  func.func @transform_2(%arg0: i32) -> (i32, i32) {
    %c0_i32 = arith.constant 0 : i32
    %c0_i32_0 = arith.constant 0 : i32
    %c0_i32_1 = arith.constant 0 : i32
    return %c0_i32, %c0_i32_0 : i32, i32
  }
  func.func @transform_3(%arg0: i32) -> (i32, i32) {
    %c0_i32 = arith.constant 0 : i32
    %c0_i32_0 = arith.constant 0 : i32
    return %arg0, %c0_i32 : i32, i32
  }
}

module attributes {stable_mosaic.version = 11 : i64} {
  func.func @_shortcut_conv_kernel(%arg0: i32, %arg1: i32, %arg2: memref<1x1x9x16xbf16, #tpu.memory_space<vmem>>, %arg3: memref<1x1x9x16xbf16, #tpu.memory_space<vmem>>, %arg4: memref<4x16x16xbf16, #tpu.memory_space<vmem>>, %arg5: memref<1x1x8x16xf32, #tpu.memory_space<vmem>>) attributes {dimension_semantics = [#tpu.dimension_semantics<parallel>, #tpu.dimension_semantics<parallel>], iteration_bounds = array<i64: 2, 8>, scalar_prefetch = 0 : i64, scratch_operands = 0 : i64, tpu.core_type = #tpu.core_type<tc>, window_params = [{transform_indices = @transform_0, window_bounds = array<i64: 1, 1, 9, 16>}, {transform_indices = @transform_1, window_bounds = array<i64: 1, 1, 9, 16>}, {pipeline_mode = #tpu.pipeline_mode<synchronous>, transform_indices = @transform_2, window_bounds = array<i64: 4, 16, 16>}, {transform_indices = @transform_3, window_bounds = array<i64: 1, 1, 8, 16>}]} {
    %cst = arith.constant 0.000000e+00 : f32
    %0 = vector.broadcast %cst : f32 to vector<8x16xf32>
    %c0 = arith.constant 0 : index
    %c0_0 = arith.constant 0 : index
    %c0_1 = arith.constant 0 : index
    %c0_2 = arith.constant 0 : index
    %1 = vector.load %arg2[%c0, %c0_0, %c0_1, %c0_2] : memref<1x1x9x16xbf16, #tpu.memory_space<vmem>>, vector<1x1x8x16xbf16>
    %2 = vector.shape_cast %1 : vector<1x1x8x16xbf16> to vector<8x16xbf16>
    %c0_3 = arith.constant 0 : index
    %c0_4 = arith.constant 0 : index
    %c0_5 = arith.constant 0 : index
    %3 = vector.load %arg4[%c0_3, %c0_4, %c0_5] : memref<4x16x16xbf16, #tpu.memory_space<vmem>>, vector<1x16x16xbf16>
    %4 = vector.shape_cast %3 : vector<1x16x16xbf16> to vector<16x16xbf16>
    %cst_6 = arith.constant dense<0.000000e+00> : vector<8x16xf32>
    %5 = tpu.matmul %2, %4, %cst_6 {dimension_numbers = #tpu.dot_dimension_numbers<[1], [0], [0], [1], [0, 0, 1, 1], [], []>} : vector<8x16xbf16>, vector<16x16xbf16>, vector<8x16xf32> -> vector<8x16xf32>
    %6 = arith.addf %0, %5 : vector<8x16xf32>
    %c0_7 = arith.constant 0 : index
    %c0_8 = arith.constant 0 : index
    %c1 = arith.constant 1 : index
    %c0_9 = arith.constant 0 : index
    %7 = vector.load %arg2[%c0_7, %c0_8, %c1, %c0_9] : memref<1x1x9x16xbf16, #tpu.memory_space<vmem>>, vector<1x1x8x16xbf16>
    %8 = vector.shape_cast %7 : vector<1x1x8x16xbf16> to vector<8x16xbf16>
    %c1_10 = arith.constant 1 : index
    %c0_11 = arith.constant 0 : index
    %c0_12 = arith.constant 0 : index
    %9 = vector.load %arg4[%c1_10, %c0_11, %c0_12] : memref<4x16x16xbf16, #tpu.memory_space<vmem>>, vector<1x16x16xbf16>
    %10 = vector.shape_cast %9 : vector<1x16x16xbf16> to vector<16x16xbf16>
    %cst_13 = arith.constant dense<0.000000e+00> : vector<8x16xf32>
    %11 = tpu.matmul %8, %10, %cst_13 {dimension_numbers = #tpu.dot_dimension_numbers<[1], [0], [0], [1], [0, 0, 1, 1], [], []>} : vector<8x16xbf16>, vector<16x16xbf16>, vector<8x16xf32> -> vector<8x16xf32>
    %12 = arith.addf %6, %11 : vector<8x16xf32>
    %c0_14 = arith.constant 0 : index
    %c0_15 = arith.constant 0 : index
    %c0_16 = arith.constant 0 : index
    %c0_17 = arith.constant 0 : index
    %13 = vector.load %arg3[%c0_14, %c0_15, %c0_16, %c0_17] : memref<1x1x9x16xbf16, #tpu.memory_space<vmem>>, vector<1x1x8x16xbf16>
    %14 = vector.shape_cast %13 : vector<1x1x8x16xbf16> to vector<8x16xbf16>
    %c2 = arith.constant 2 : index
    %c0_18 = arith.constant 0 : index
    %c0_19 = arith.constant 0 : index
    %15 = vector.load %arg4[%c2, %c0_18, %c0_19] : memref<4x16x16xbf16, #tpu.memory_space<vmem>>, vector<1x16x16xbf16>
    %16 = vector.shape_cast %15 : vector<1x16x16xbf16> to vector<16x16xbf16>
    %cst_20 = arith.constant dense<0.000000e+00> : vector<8x16xf32>
    %17 = tpu.matmul %14, %16, %cst_20 {dimension_numbers = #tpu.dot_dimension_numbers<[1], [0], [0], [1], [0, 0, 1, 1], [], []>} : vector<8x16xbf16>, vector<16x16xbf16>, vector<8x16xf32> -> vector<8x16xf32>
    %18 = arith.addf %12, %17 : vector<8x16xf32>
    %c0_21 = arith.constant 0 : index
    %c0_22 = arith.constant 0 : index
    %c1_23 = arith.constant 1 : index
    %c0_24 = arith.constant 0 : index
    %19 = vector.load %arg3[%c0_21, %c0_22, %c1_23, %c0_24] : memref<1x1x9x16xbf16, #tpu.memory_space<vmem>>, vector<1x1x8x16xbf16>
    %20 = vector.shape_cast %19 : vector<1x1x8x16xbf16> to vector<8x16xbf16>
    %c3 = arith.constant 3 : index
    %c0_25 = arith.constant 0 : index
    %c0_26 = arith.constant 0 : index
    %21 = vector.load %arg4[%c3, %c0_25, %c0_26] : memref<4x16x16xbf16, #tpu.memory_space<vmem>>, vector<1x16x16xbf16>
    %22 = vector.shape_cast %21 : vector<1x16x16xbf16> to vector<16x16xbf16>
    %cst_27 = arith.constant dense<0.000000e+00> : vector<8x16xf32>
    %23 = tpu.matmul %20, %22, %cst_27 {dimension_numbers = #tpu.dot_dimension_numbers<[1], [0], [0], [1], [0, 0, 1, 1], [], []>} : vector<8x16xbf16>, vector<16x16xbf16>, vector<8x16xf32> -> vector<8x16xf32>
    %24 = arith.addf %18, %23 : vector<8x16xf32>
    %c0_28 = arith.constant 0 : index
    %c0_29 = arith.constant 0 : index
    %c0_30 = arith.constant 0 : index
    %c0_31 = arith.constant 0 : index
    %25 = vector.load %arg5[%c0_28, %c0_29, %c0_30, %c0_31] : memref<1x1x8x16xf32, #tpu.memory_space<vmem>>, vector<1x1x8x16xf32>
    %26 = vector.shape_cast %25 : vector<1x1x8x16xf32> to vector<8x16xf32>
    %27 = vector.shape_cast %24 : vector<8x16xf32> to vector<1x1x8x16xf32>
    tpu.vector_store %arg5[%c0_28, %c0_29, %c0_30, %c0_31], %27 {strides = array<i32>} : memref<1x1x8x16xf32, #tpu.memory_space<vmem>>, vector<1x1x8x16xf32>,
    return
  }
  func.func @transform_0(%arg0: i32, %arg1: i32) -> (i32, i32, i32, i32) {
    %c0_i32 = arith.constant 0 : i32
    %c0_i32_0 = arith.constant 0 : i32
    %c0_i32_1 = arith.constant 0 : i32
    return %arg0, %arg1, %c0_i32, %c0_i32_0 : i32, i32, i32, i32
  }
  func.func @transform_1(%arg0: i32, %arg1: i32) -> (i32, i32, i32, i32) {
    %c1_i32 = arith.constant 1 : i32
    %0 = arith.addi %arg1, %c1_i32 : i32
    %c0_i32 = arith.constant 0 : i32
    %c0_i32_0 = arith.constant 0 : i32
    %c0_i32_1 = arith.constant 0 : i32
    return %arg0, %0, %c0_i32, %c0_i32_0 : i32, i32, i32, i32
  }
  func.func @transform_2(%arg0: i32, %arg1: i32) -> (i32, i32, i32) {
    %c0_i32 = arith.constant 0 : i32
    %c0_i32_0 = arith.constant 0 : i32
    %c0_i32_1 = arith.constant 0 : i32
    %c0_i32_2 = arith.constant 0 : i32
    return %c0_i32, %c0_i32_0, %c0_i32_1 : i32, i32, i32
  }
  func.func @transform_3(%arg0: i32, %arg1: i32) -> (i32, i32, i32, i32) {
    %c0_i32 = arith.constant 0 : i32
    %c0_i32_0 = arith.constant 0 : i32
    %c0_i32_1 = arith.constant 0 : i32
    return %arg0, %arg1, %c0_i32, %c0_i32_0 : i32, i32, i32, i32
  }
}

module attributes {stable_mosaic.version = 11 : i64} {
  func.func @_attn_kernel(%arg0: i32, %arg1: i32, %arg2: i32, %arg3: memref<1x64x16xbf16, #tpu.memory_space<vmem>>, %arg4: memref<1x256x4xbf16, #tpu.memory_space<vmem>>, %arg5: memref<16x8xbf16, #tpu.memory_space<vmem>>, %arg6: memref<4x16xbf16, #tpu.memory_space<vmem>>, %arg7: memref<8x16xbf16, #tpu.memory_space<vmem>>, %arg8: memref<1x64x16xf32, #tpu.memory_space<vmem>>, %arg9: memref<1x64x16xf32, #tpu.memory_space<vmem>>, %arg10: memref<64x8xbf16, #tpu.memory_space<vmem>>, %arg11: memref<2x64x1xf32, #tpu.memory_space<vmem>>, %arg12: memref<2x64x1xf32, #tpu.memory_space<vmem>>, %arg13: memref<64x8xf32, #tpu.memory_space<vmem>>) attributes {dimension_semantics = [#tpu.dimension_semantics<parallel>, #tpu.dimension_semantics<parallel>, #tpu.dimension_semantics<arbitrary>], iteration_bounds = array<i64: 2, 1, 1>, scalar_prefetch = 0 : i64, scratch_operands = 4 : i64, tpu.core_type = #tpu.core_type<tc>, window_params = [{transform_indices = @transform_0, window_bounds = array<i64: 1, 64, 16>}, {transform_indices = @transform_1, window_bounds = array<i64: 1, 256, 4>}, {pipeline_mode = #tpu.pipeline_mode<synchronous>, transform_indices = @transform_2, window_bounds = array<i64: 16, 8>}, {pipeline_mode = #tpu.pipeline_mode<synchronous>, transform_indices = @transform_3, window_bounds = array<i64: 4, 16>}, {pipeline_mode = #tpu.pipeline_mode<synchronous>, transform_indices = @transform_4, window_bounds = array<i64: 8, 16>}, {transform_indices = @transform_5, window_bounds = array<i64: 1, 64, 16>}, {transform_indices = @transform_6, window_bounds = array<i64: 1, 64, 16>}]} {
    %c0_i32 = arith.constant 0 : i32
    %0 = arith.cmpi eq, %arg2, %c0_i32 : i32
    %1 = arith.extui %0 : i1 to i32
    %c0_i32_0 = arith.constant 0 : i32
    %2 = arith.cmpi ne, %1, %c0_i32_0 : i32
    scf.if %2 {
      %c0_47 = arith.constant 0 : index
      %c0_48 = arith.constant 0 : index
      %c0_49 = arith.constant 0 : index
      %78 = vector.load %arg3[%c0_47, %c0_48, %c0_49] : memref<1x64x16xbf16, #tpu.memory_space<vmem>>, vector<1x64x16xbf16>
      %79 = vector.shape_cast %78 : vector<1x64x16xbf16> to vector<64x16xbf16>
      %c0_50 = arith.constant 0 : index
      %c0_51 = arith.constant 0 : index
      %80 = vector.load %arg5[%c0_50, %c0_51] : memref<16x8xbf16, #tpu.memory_space<vmem>>, vector<16x8xbf16>
      %cst_52 = arith.constant dense<0.000000e+00> : vector<64x8xf32>
      %81 = tpu.matmul %79, %80, %cst_52 {dimension_numbers = #tpu.dot_dimension_numbers<[1], [0], [0], [1], [0, 0, 1, 1], [], []>} : vector<64x16xbf16>, vector<16x8xbf16>, vector<64x8xf32> -> vector<64x8xf32>
      %82 = arith.truncf %81 : vector<64x8xf32> to vector<64x8xbf16>
      %c0_53 = arith.constant 0 : index
      %c0_54 = arith.constant 0 : index
      %83 = vector.load %arg10[%c0_53, %c0_54] : memref<64x8xbf16, #tpu.memory_space<vmem>>, vector<64x8xbf16>
      tpu.vector_store %arg10[%c0_53, %c0_54], %82 {strides = array<i32>} : memref<64x8xbf16, #tpu.memory_space<vmem>>, vector<64x8xbf16>,
      %cst_55 = arith.constant 0xFF800000 : f32
      %84 = vector.broadcast %cst_55 : f32 to vector<2x64x1xf32>
      %c0_56 = arith.constant 0 : index
      %c0_57 = arith.constant 0 : index
      %c0_58 = arith.constant 0 : index
      %85 = vector.load %arg11[%c0_56, %c0_57, %c0_58] : memref<2x64x1xf32, #tpu.memory_space<vmem>>, vector<2x64x1xf32>
      tpu.vector_store %arg11[%c0_56, %c0_57, %c0_58], %84 {strides = array<i32>} : memref<2x64x1xf32, #tpu.memory_space<vmem>>, vector<2x64x1xf32>,
      %cst_59 = arith.constant 0.000000e+00 : f32
      %86 = vector.broadcast %cst_59 : f32 to vector<2x64x1xf32>
      %c0_60 = arith.constant 0 : index
      %c0_61 = arith.constant 0 : index
      %c0_62 = arith.constant 0 : index
      %87 = vector.load %arg12[%c0_60, %c0_61, %c0_62] : memref<2x64x1xf32, #tpu.memory_space<vmem>>, vector<2x64x1xf32>
      tpu.vector_store %arg12[%c0_60, %c0_61, %c0_62], %86 {strides = array<i32>} : memref<2x64x1xf32, #tpu.memory_space<vmem>>, vector<2x64x1xf32>,
      %cst_63 = arith.constant 0.000000e+00 : f32
      %88 = vector.broadcast %cst_63 : f32 to vector<64x8xf32>
      %c0_64 = arith.constant 0 : index
      %c0_65 = arith.constant 0 : index
      %89 = vector.load %arg13[%c0_64, %c0_65] : memref<64x8xf32, #tpu.memory_space<vmem>>, vector<64x8xf32>
      tpu.vector_store %arg13[%c0_64, %c0_65], %88 {strides = array<i32>} : memref<64x8xf32, #tpu.memory_space<vmem>>, vector<64x8xf32>,
    } else {
    }
    %c0 = arith.constant 0 : index
    %c0_1 = arith.constant 0 : index
    %c0_2 = arith.constant 0 : index
    %3 = vector.load %arg4[%c0, %c0_1, %c0_2] : memref<1x256x4xbf16, #tpu.memory_space<vmem>>, vector<1x256x4xbf16>
    %4 = vector.shape_cast %3 : vector<1x256x4xbf16> to vector<256x4xbf16>
    %c0_3 = arith.constant 0 : index
    %c0_4 = arith.constant 0 : index
    %5 = vector.load %arg6[%c0_3, %c0_4] : memref<4x16xbf16, #tpu.memory_space<vmem>>, vector<4x16xbf16>
    %cst = arith.constant dense<0.000000e+00> : vector<256x16xf32>
    %6 = tpu.matmul %4, %5, %cst {dimension_numbers = #tpu.dot_dimension_numbers<[1], [0], [0], [1], [0, 0, 1, 1], [], []>} : vector<256x4xbf16>, vector<4x16xbf16>, vector<256x16xf32> -> vector<256x16xf32>
    %7 = arith.truncf %6 : vector<256x16xf32> to vector<256x16xbf16>
    %c0_5 = arith.constant 0 : index
    %c0_6 = arith.constant 0 : index
    %8 = vector.load %arg10[%c0_5, %c0_6] : memref<64x8xbf16, #tpu.memory_space<vmem>>, vector<64x8xbf16>
    %9 = vector.extract_strided_slice %8 {offsets = [0, 0], sizes = [64, 4], strides = [1, 1]} : vector<64x8xbf16> to vector<64x4xbf16>
    %10 = vector.extract_strided_slice %7 {offsets = [0, 0], sizes = [256, 4], strides = [1, 1]} : vector<256x16xbf16> to vector<256x4xbf16>
    %11 = vector.extract_strided_slice %7 {offsets = [0, 8], sizes = [256, 4], strides = [1, 1]} : vector<256x16xbf16> to vector<256x4xbf16>
    %cst_7 = arith.constant dense<0.000000e+00> : vector<64x256xf32>
    %12 = tpu.matmul %9, %10, %cst_7 {dimension_numbers = #tpu.dot_dimension_numbers<[1], [1], [0], [0], [0, 0, 1, 0], [], []>} : vector<64x4xbf16>, vector<256x4xbf16>, vector<64x256xf32> -> vector<64x256xf32>
    %c0_8 = arith.constant 0 : index
    %c0_9 = arith.constant 0 : index
    %c0_10 = arith.constant 0 : index
    %13 = vector.load %arg11[%c0_8, %c0_9, %c0_10] : memref<2x64x1xf32, #tpu.memory_space<vmem>>, vector<1x64x1xf32>
    %14 = vector.shape_cast %13 : vector<1x64x1xf32> to vector<64x1xf32>
    %cst_11 = arith.constant dense<0xFF800000> : vector<64xf32>
    %15 = vector.multi_reduction <maximumf>, %12, %cst_11 [1] : vector<64x256xf32> to vector<64xf32>
    %16 = vector.shape_cast %15 : vector<64xf32> to vector<64x1xf32>
    %17 = arith.maximumf %14, %16 : vector<64x1xf32>
    %18 = arith.subf %14, %17 : vector<64x1xf32>
    %19 = math.exp %18 : vector<64x1xf32>
    %20 = vector.broadcast %17 : vector<64x1xf32> to vector<64x256xf32>
    %21 = arith.subf %12, %20 : vector<64x256xf32>
    %22 = math.exp %21 : vector<64x256xf32>
    %c0_12 = arith.constant 0 : index
    %c0_13 = arith.constant 0 : index
    %c0_14 = arith.constant 0 : index
    %23 = vector.load %arg12[%c0_12, %c0_13, %c0_14] : memref<2x64x1xf32, #tpu.memory_space<vmem>>, vector<1x64x1xf32>
    %24 = vector.shape_cast %23 : vector<1x64x1xf32> to vector<64x1xf32>
    %25 = arith.mulf %19, %24 : vector<64x1xf32>
    %cst_15 = arith.constant dense<0.000000e+00> : vector<64xf32>
    %26 = vector.multi_reduction <add>, %22, %cst_15 [1] : vector<64x256xf32> to vector<64xf32>
    %27 = vector.shape_cast %26 : vector<64xf32> to vector<64x1xf32>
    %28 = arith.addf %25, %27 : vector<64x1xf32>
    %c0_16 = arith.constant 0 : index
    %c0_17 = arith.constant 0 : index
    %c0_18 = arith.constant 0 : index
    %29 = vector.load %arg12[%c0_16, %c0_17, %c0_18] : memref<2x64x1xf32, #tpu.memory_space<vmem>>, vector<1x64x1xf32>
    %30 = vector.shape_cast %29 : vector<1x64x1xf32> to vector<64x1xf32>
    %31 = vector.shape_cast %28 : vector<64x1xf32> to vector<1x64x1xf32>
    tpu.vector_store %arg12[%c0_16, %c0_17, %c0_18], %31 {strides = array<i32>} : memref<2x64x1xf32, #tpu.memory_space<vmem>>, vector<1x64x1xf32>,
    %c0_19 = arith.constant 0 : index
    %c0_20 = arith.constant 0 : index
    %32 = vector.load %arg13[%c0_19, %c0_20] : memref<64x8xf32, #tpu.memory_space<vmem>>, vector<64x4xf32>
    %33 = vector.broadcast %19 : vector<64x1xf32> to vector<64x4xf32>
    %34 = arith.mulf %33, %32 : vector<64x4xf32>
    %35 = arith.truncf %22 : vector<64x256xf32> to vector<64x256xbf16>
    %cst_21 = arith.constant dense<0.000000e+00> : vector<64x4xf32>
    %36 = tpu.matmul %35, %11, %cst_21 {dimension_numbers = #tpu.dot_dimension_numbers<[1], [0], [0], [1], [0, 0, 1, 1], [], []>} : vector<64x256xbf16>, vector<256x4xbf16>, vector<64x4xf32> -> vector<64x4xf32>
    %37 = arith.addf %34, %36 : vector<64x4xf32>
    %c0_22 = arith.constant 0 : index
    %c0_23 = arith.constant 0 : index
    %38 = vector.load %arg13[%c0_22, %c0_23] : memref<64x8xf32, #tpu.memory_space<vmem>>, vector<64x4xf32>
    tpu.vector_store %arg13[%c0_22, %c0_23], %37 {strides = array<i32>} : memref<64x8xf32, #tpu.memory_space<vmem>>, vector<64x4xf32>,
    %c0_24 = arith.constant 0 : index
    %c0_25 = arith.constant 0 : index
    %c0_26 = arith.constant 0 : index
    %39 = vector.load %arg11[%c0_24, %c0_25, %c0_26] : memref<2x64x1xf32, #tpu.memory_space<vmem>>, vector<1x64x1xf32>
    %40 = vector.shape_cast %39 : vector<1x64x1xf32> to vector<64x1xf32>
    %41 = vector.shape_cast %17 : vector<64x1xf32> to vector<1x64x1xf32>
    tpu.vector_store %arg11[%c0_24, %c0_25, %c0_26], %41 {strides = array<i32>} : memref<2x64x1xf32, #tpu.memory_space<vmem>>, vector<1x64x1xf32>,
    %42 = vector.extract_strided_slice %8 {offsets = [0, 4], sizes = [64, 4], strides = [1, 1]} : vector<64x8xbf16> to vector<64x4xbf16>
    %43 = vector.extract_strided_slice %7 {offsets = [0, 4], sizes = [256, 4], strides = [1, 1]} : vector<256x16xbf16> to vector<256x4xbf16>
    %44 = vector.extract_strided_slice %7 {offsets = [0, 12], sizes = [256, 4], strides = [1, 1]} : vector<256x16xbf16> to vector<256x4xbf16>
    %cst_27 = arith.constant dense<0.000000e+00> : vector<64x256xf32>
    %45 = tpu.matmul %42, %43, %cst_27 {dimension_numbers = #tpu.dot_dimension_numbers<[1], [1], [0], [0], [0, 0, 1, 0], [], []>} : vector<64x4xbf16>, vector<256x4xbf16>, vector<64x256xf32> -> vector<64x256xf32>
    %c1 = arith.constant 1 : index
    %c0_28 = arith.constant 0 : index
    %c0_29 = arith.constant 0 : index
    %46 = vector.load %arg11[%c1, %c0_28, %c0_29] : memref<2x64x1xf32, #tpu.memory_space<vmem>>, vector<1x64x1xf32>
    %47 = vector.shape_cast %46 : vector<1x64x1xf32> to vector<64x1xf32>
    %cst_30 = arith.constant dense<0xFF800000> : vector<64xf32>
    %48 = vector.multi_reduction <maximumf>, %45, %cst_30 [1] : vector<64x256xf32> to vector<64xf32>
    %49 = vector.shape_cast %48 : vector<64xf32> to vector<64x1xf32>
    %50 = arith.maximumf %47, %49 : vector<64x1xf32>
    %51 = arith.subf %47, %50 : vector<64x1xf32>
    %52 = math.exp %51 : vector<64x1xf32>
    %53 = vector.broadcast %50 : vector<64x1xf32> to vector<64x256xf32>
    %54 = arith.subf %45, %53 : vector<64x256xf32>
    %55 = math.exp %54 : vector<64x256xf32>
    %c1_31 = arith.constant 1 : index
    %c0_32 = arith.constant 0 : index
    %c0_33 = arith.constant 0 : index
    %56 = vector.load %arg12[%c1_31, %c0_32, %c0_33] : memref<2x64x1xf32, #tpu.memory_space<vmem>>, vector<1x64x1xf32>
    %57 = vector.shape_cast %56 : vector<1x64x1xf32> to vector<64x1xf32>
    %58 = arith.mulf %52, %57 : vector<64x1xf32>
    %cst_34 = arith.constant dense<0.000000e+00> : vector<64xf32>
    %59 = vector.multi_reduction <add>, %55, %cst_34 [1] : vector<64x256xf32> to vector<64xf32>
    %60 = vector.shape_cast %59 : vector<64xf32> to vector<64x1xf32>
    %61 = arith.addf %58, %60 : vector<64x1xf32>
    %c1_35 = arith.constant 1 : index
    %c0_36 = arith.constant 0 : index
    %c0_37 = arith.constant 0 : index
    %62 = vector.load %arg12[%c1_35, %c0_36, %c0_37] : memref<2x64x1xf32, #tpu.memory_space<vmem>>, vector<1x64x1xf32>
    %63 = vector.shape_cast %62 : vector<1x64x1xf32> to vector<64x1xf32>
    %64 = vector.shape_cast %61 : vector<64x1xf32> to vector<1x64x1xf32>
    tpu.vector_store %arg12[%c1_35, %c0_36, %c0_37], %64 {strides = array<i32>} : memref<2x64x1xf32, #tpu.memory_space<vmem>>, vector<1x64x1xf32>,
    %c0_38 = arith.constant 0 : index
    %c4 = arith.constant 4 : index
    %65 = vector.load %arg13[%c0_38, %c4] : memref<64x8xf32, #tpu.memory_space<vmem>>, vector<64x4xf32>
    %66 = vector.broadcast %52 : vector<64x1xf32> to vector<64x4xf32>
    %67 = arith.mulf %66, %65 : vector<64x4xf32>
    %68 = arith.truncf %55 : vector<64x256xf32> to vector<64x256xbf16>
    %cst_39 = arith.constant dense<0.000000e+00> : vector<64x4xf32>
    %69 = tpu.matmul %68, %44, %cst_39 {dimension_numbers = #tpu.dot_dimension_numbers<[1], [0], [0], [1], [0, 0, 1, 1], [], []>} : vector<64x256xbf16>, vector<256x4xbf16>, vector<64x4xf32> -> vector<64x4xf32>
    %70 = arith.addf %67, %69 : vector<64x4xf32>
    %c0_40 = arith.constant 0 : index
    %c4_41 = arith.constant 4 : index
    %71 = vector.load %arg13[%c0_40, %c4_41] : memref<64x8xf32, #tpu.memory_space<vmem>>, vector<64x4xf32>
    tpu.vector_store %arg13[%c0_40, %c4_41], %70 {strides = array<i32>} : memref<64x8xf32, #tpu.memory_space<vmem>>, vector<64x4xf32>,
    %c1_42 = arith.constant 1 : index
    %c0_43 = arith.constant 0 : index
    %c0_44 = arith.constant 0 : index
    %72 = vector.load %arg11[%c1_42, %c0_43, %c0_44] : memref<2x64x1xf32, #tpu.memory_space<vmem>>, vector<1x64x1xf32>
    %73 = vector.shape_cast %72 : vector<1x64x1xf32> to vector<64x1xf32>
    %74 = vector.shape_cast %50 : vector<64x1xf32> to vector<1x64x1xf32>
    tpu.vector_store %arg11[%c1_42, %c0_43, %c0_44], %74 {strides = array<i32>} : memref<2x64x1xf32, #tpu.memory_space<vmem>>, vector<1x64x1xf32>,
    %c0_i32_45 = arith.constant 0 : i32
    %75 = arith.cmpi eq, %arg2, %c0_i32_45 : i32
    %76 = arith.extui %75 : i1 to i32
    %c0_i32_46 = arith.constant 0 : i32
    %77 = arith.cmpi ne, %76, %c0_i32_46 : i32
    scf.if %77 {
      %c0_47 = arith.constant 0 : index
      %c0_48 = arith.constant 0 : index
      %78 = vector.load %arg13[%c0_47, %c0_48] : memref<64x8xf32, #tpu.memory_space<vmem>>, vector<64x4xf32>
      %c0_49 = arith.constant 0 : index
      %c0_50 = arith.constant 0 : index
      %c0_51 = arith.constant 0 : index
      %79 = vector.load %arg12[%c0_49, %c0_50, %c0_51] : memref<2x64x1xf32, #tpu.memory_space<vmem>>, vector<1x64x1xf32>
      %80 = vector.shape_cast %79 : vector<1x64x1xf32> to vector<64x1xf32>
      %81 = tpu.reciprocal %80 {approx = true} : vector<64x1xf32> -> vector<64x1xf32>
      %82 = vector.broadcast %81 : vector<64x1xf32> to vector<64x4xf32>
      %83 = arith.mulf %78, %82 : vector<64x4xf32>
      %c0_52 = arith.constant 0 : index
      %c4_53 = arith.constant 4 : index
      %84 = vector.load %arg13[%c0_52, %c4_53] : memref<64x8xf32, #tpu.memory_space<vmem>>, vector<64x4xf32>
      %c1_54 = arith.constant 1 : index
      %c0_55 = arith.constant 0 : index
      %c0_56 = arith.constant 0 : index
      %85 = vector.load %arg12[%c1_54, %c0_55, %c0_56] : memref<2x64x1xf32, #tpu.memory_space<vmem>>, vector<1x64x1xf32>
      %86 = vector.shape_cast %85 : vector<1x64x1xf32> to vector<64x1xf32>
      %87 = tpu.reciprocal %86 {approx = true} : vector<64x1xf32> -> vector<64x1xf32>
      %88 = vector.broadcast %87 : vector<64x1xf32> to vector<64x4xf32>
      %89 = arith.mulf %84, %88 : vector<64x4xf32>
      %90 = tpu.concatenate %83, %89 in 1 : vector<64x4xf32>, vector<64x4xf32> -> vector<64x8xf32>
      %c0_57 = arith.constant 0 : index
      %c0_58 = arith.constant 0 : index
      %c0_59 = arith.constant 0 : index
      %91 = vector.load %arg8[%c0_57, %c0_58, %c0_59] : memref<1x64x16xf32, #tpu.memory_space<vmem>>, vector<1x64x16xf32>
      %92 = vector.shape_cast %91 : vector<1x64x16xf32> to vector<64x16xf32>
      %93 = arith.truncf %90 : vector<64x8xf32> to vector<64x8xbf16>
      %c0_60 = arith.constant 0 : index
      %c0_61 = arith.constant 0 : index
      %94 = vector.load %arg7[%c0_60, %c0_61] : memref<8x16xbf16, #tpu.memory_space<vmem>>, vector<8x16xbf16>
      %cst_62 = arith.constant dense<0.000000e+00> : vector<64x16xf32>
      %95 = tpu.matmul %93, %94, %cst_62 {dimension_numbers = #tpu.dot_dimension_numbers<[1], [0], [0], [1], [0, 0, 1, 1], [], []>} : vector<64x8xbf16>, vector<8x16xbf16>, vector<64x16xf32> -> vector<64x16xf32>
      %96 = arith.addf %92, %95 : vector<64x16xf32>
      %c0_63 = arith.constant 0 : index
      %c0_64 = arith.constant 0 : index
      %c0_65 = arith.constant 0 : index
      %97 = vector.load %arg9[%c0_63, %c0_64, %c0_65] : memref<1x64x16xf32, #tpu.memory_space<vmem>>, vector<1x64x16xf32>
      %98 = vector.shape_cast %97 : vector<1x64x16xf32> to vector<64x16xf32>
      %99 = vector.shape_cast %96 : vector<64x16xf32> to vector<1x64x16xf32>
      tpu.vector_store %arg9[%c0_63, %c0_64, %c0_65], %99 {strides = array<i32>} : memref<1x64x16xf32, #tpu.memory_space<vmem>>, vector<1x64x16xf32>,
    } else {
    }
    return
  }
  func.func @transform_0(%arg0: i32, %arg1: i32, %arg2: i32) -> (i32, i32, i32) {
    %c0_i32 = arith.constant 0 : i32
    %c0_i32_0 = arith.constant 0 : i32
    return %arg0, %arg1, %c0_i32 : i32, i32, i32
  }
  func.func @transform_1(%arg0: i32, %arg1: i32, %arg2: i32) -> (i32, i32, i32) {
    %c0_i32 = arith.constant 0 : i32
    %c0_i32_0 = arith.constant 0 : i32
    return %arg0, %arg2, %c0_i32 : i32, i32, i32
  }
  func.func @transform_2(%arg0: i32, %arg1: i32, %arg2: i32) -> (i32, i32) {
    %c0_i32 = arith.constant 0 : i32
    %c0_i32_0 = arith.constant 0 : i32
    %c0_i32_1 = arith.constant 0 : i32
    return %c0_i32, %c0_i32_0 : i32, i32
  }
  func.func @transform_3(%arg0: i32, %arg1: i32, %arg2: i32) -> (i32, i32) {
    %c0_i32 = arith.constant 0 : i32
    %c0_i32_0 = arith.constant 0 : i32
    %c0_i32_1 = arith.constant 0 : i32
    return %c0_i32, %c0_i32_0 : i32, i32
  }
  func.func @transform_4(%arg0: i32, %arg1: i32, %arg2: i32) -> (i32, i32) {
    %c0_i32 = arith.constant 0 : i32
    %c0_i32_0 = arith.constant 0 : i32
    %c0_i32_1 = arith.constant 0 : i32
    return %c0_i32, %c0_i32_0 : i32, i32
  }
  func.func @transform_5(%arg0: i32, %arg1: i32, %arg2: i32) -> (i32, i32, i32) {
    %c0_i32 = arith.constant 0 : i32
    %c0_i32_0 = arith.constant 0 : i32
    return %arg0, %arg1, %c0_i32 : i32, i32, i32
  }
  func.func @transform_6(%arg0: i32, %arg1: i32, %arg2: i32) -> (i32, i32, i32) {
    %c0_i32 = arith.constant 0 : i32
    %c0_i32_0 = arith.constant 0 : i32
    return %arg0, %arg1, %c0_i32 : i32, i32, i32
  }
}

</mosaic_0001>

<llo_original>
// kernel: tile.23
$region0: #{tile.23}
  #allocation0 [shape = 's32[1]{0}', space=sflag, size = 0x4, scoped, tag = 'scoped memory for tile.23']
  %s0 = inlined_call_operand.vmem [shape: f32[4], index: 0, kind: input, shape index: {}]
  %s1 = inlined_call_operand.vmem [shape: f32[32,4], index: 1, kind: output, shape index: {}]
  // Predicated region
  $region2: #{tile.23} parent=0 // pred_check
    _
  $region3: #{tile.23} parent=0 // pred_check_branch
    %3 = sbr.rel (0) target = $region5
  $region4: #{tile.23} parent=0 // pred_region
    _
  $region5: #{tile.23} parent=0 // pred_fallthru
    _
  %v4 = vld [vmem:[%s0] ss:$0 sm:$0xff]
  %5 = vst [vmem:[%s1] sm:$0xff] %v4
  %s6 = scalar_lea.vmem %s1, 8
  %7 = vst [vmem:[%s6] sm:$0xff] %v4
  %s8 = scalar_lea.vmem %s1, 16
  %9 = vst [vmem:[%s8] sm:$0xff] %v4
  %s10 = scalar_lea.vmem %s1, 24
  %11 = vst [vmem:[%s10] sm:$0xff] %v4

// kernel: tile.24
$region0: #{tile.24}
  %s0 = inlined_call_operand.vmem [shape: f32[32,4], index: 0, kind: input, shape index: {}]
  %s1 = inlined_call_operand.vmem [shape: f32[1,128], index: 1, kind: output, shape index: {}]
  $region1: #{tile.24} parent=0
    #allocation0 [shape = 'u8[4096]{0}', space=vmem, size = 0x1000, scoped, tag = 'scoped mem for output reshape']
    %v2 = vld [vmem:[%s0] sm:$0x1]
    %vm3 = vcmask 31744
    %4 = vst.msk [vmem:[#allocation0] sm:$0x1] %vm3, %v2
    %s5 = scalar_lea.vmem %s0, 31
    %v6 = vld [vmem:[%s5] sm:$0x1]
    %7 = vrot.lane.b32.xlu0 %v6, 124
    %v8 = vpop.permute.xlu0 %7
    %vm9 = vcmask 1048544
    %10 = vst.msk [vmem:[#allocation0] sm:$0x1] %vm9, %v8
    %s11 = scalar_lea.vmem %s0, 30
    %v12 = vld [vmem:[%s11] sm:$0x1]
    %13 = vrot.lane.b32.xlu0 %v12, 120
    %v14 = vpop.permute.xlu0 %13
    %vm15 = vcmask 1015744
    %16 = vst.msk [vmem:[#allocation0] sm:$0x1] %vm15, %v14
    %s17 = scalar_lea.vmem %s0, 29
    %v18 = vld [vmem:[%s17] sm:$0x1]
    %19 = vrot.lane.b32.xlu0 %v18, 116
    %v20 = vpop.permute.xlu0 %19
    %vm21 = vcmask 982944
    %22 = vst.msk [vmem:[#allocation0] sm:$0x1] %vm21, %v20
    %s23 = scalar_lea.vmem %s0, 28
    %v24 = vld [vmem:[%s23] sm:$0x1]
    %25 = vrot.lane.b32.xlu0 %v24, 112
    %v26 = vpop.permute.xlu0 %25
    %vm27 = vcmask 950144
    %28 = vst.msk [vmem:[#allocation0] sm:$0x1] %vm27, %v26
    %s29 = scalar_lea.vmem %s0, 27
    %v30 = vld [vmem:[%s29] sm:$0x1]
    %31 = vrot.lane.b32.xlu0 %v30, 108
    %v32 = vpop.permute.xlu0 %31
    %vm33 = vcmask 917344
    %34 = vst.msk [vmem:[#allocation0] sm:$0x1] %vm33, %v32
    %s35 = scalar_lea.vmem %s0, 26
    %v36 = vld [vmem:[%s35] sm:$0x1]
    %37 = vrot.lane.b32.xlu0 %v36, 104
    %v38 = vpop.permute.xlu0 %37
    %vm39 = vcmask 884544
    %40 = vst.msk [vmem:[#allocation0] sm:$0x1] %vm39, %v38
    %s41 = scalar_lea.vmem %s0, 25
    %v42 = vld [vmem:[%s41] sm:$0x1]
    %43 = vrot.lane.b32.xlu0 %v42, 100
    %v44 = vpop.permute.xlu0 %43
    %vm45 = vcmask 851744
    %46 = vst.msk [vmem:[#allocation0] sm:$0x1] %vm45, %v44
    %s47 = scalar_lea.vmem %s0, 24
    %v48 = vld [vmem:[%s47] sm:$0x1]
    %49 = vrot.lane.b32.xlu0 %v48, 96
    %v50 = vpop.permute.xlu0 %49
    %vm51 = vcmask 818944
    %52 = vst.msk [vmem:[#allocation0] sm:$0x1] %vm51, %v50
    %s53 = scalar_lea.vmem %s0, 23
    %v54 = vld [vmem:[%s53] sm:$0x1]
    %55 = vrot.lane.b32.xlu0 %v54, 92
    %v56 = vpop.permute.xlu0 %55
    %vm57 = vcmask 786144
    %58 = vst.msk [vmem:[#allocation0] sm:$0x1] %vm57, %v56
    %s59 = scalar_lea.vmem %s0, 22
    %v60 = vld [vmem:[%s59] sm:$0x1]
    %61 = vrot.lane.b32.xlu0 %v60, 88
    %v62 = vpop.permute.xlu0 %61
    %vm63 = vcmask 753344
    %64 = vst.msk [vmem:[#allocation0] sm:$0x1] %vm63, %v62
    %s65 = scalar_lea.vmem %s0, 21
    %v66 = vld [vmem:[%s65] sm:$0x1]
    %67 = vrot.lane.b32.xlu0 %v66, 84
    %v68 = vpop.permute.xlu0 %67
    %vm69 = vcmask 720544
    %70 = vst.msk [vmem:[#allocation0] sm:$0x1] %vm69, %v68
    %s71 = scalar_lea.vmem %s0, 20
    %v72 = vld [vmem:[%s71] sm:$0x1]
    %73 = vrot.lane.b32.xlu0 %v72, 80
    %v74 = vpop.permute.xlu0 %73
    %vm75 = vcmask 687744
    %76 = vst.msk [vmem:[#allocation0] sm:$0x1] %vm75, %v74
    %s77 = scalar_lea.vmem %s0, 19
    %v78 = vld [vmem:[%s77] sm:$0x1]
    %79 = vrot.lane.b32.xlu0 %v78, 76
    %v80 = vpop.permute.xlu0 %79
    %vm81 = vcmask 654944
    %82 = vst.msk [vmem:[#allocation0] sm:$0x1] %vm81, %v80
    %s83 = scalar_lea.vmem %s0, 18
    %v84 = vld [vmem:[%s83] sm:$0x1]
    %85 = vrot.lane.b32.xlu0 %v84, 72
    %v86 = vpop.permute.xlu0 %85
    %vm87 = vcmask 622144
    %88 = vst.msk [vmem:[#allocation0] sm:$0x1] %vm87, %v86
    %s89 = scalar_lea.vmem %s0, 17
    %v90 = vld [vmem:[%s89] sm:$0x1]
    %91 = vrot.lane.b32.xlu0 %v90, 68
    %v92 = vpop.permute.xlu0 %91
    %vm93 = vcmask 589344
    %94 = vst.msk [vmem:[#allocation0] sm:$0x1] %vm93, %v92
    %s95 = scalar_lea.vmem %s0, 16
    %v96 = vld [vmem:[%s95] sm:$0x1]
    %97 = vrot.lane.b32.xlu0 %v96, 64
    %v98 = vpop.permute.xlu0 %97
    %vm99 = vcmask 556544
    %100 = vst.msk [vmem:[#allocation0] sm:$0x1] %vm99, %v98
    %s101 = scalar_lea.vmem %s0, 15
    %v102 = vld [vmem:[%s101] sm:$0x1]
    %103 = vrot.lane.b32.xlu0 %v102, 60
    %v104 = vpop.permute.xlu0 %103
    %vm105 = vcmask 523744
    %106 = vst.msk [vmem:[#allocation0] sm:$0x1] %vm105, %v104
    %s107 = scalar_lea.vmem %s0, 14
    %v108 = vld [vmem:[%s107] sm:$0x1]
    %109 = vrot.lane.b32.xlu0 %v108, 56
    %v110 = vpop.permute.xlu0 %109
    %vm111 = vcmask 490944
    %112 = vst.msk [vmem:[#allocation0] sm:$0x1] %vm111, %v110
    %s113 = scalar_lea.vmem %s0, 13
    %v114 = vld [vmem:[%s113] sm:$0x1]
    %115 = vrot.lane.b32.xlu0 %v114, 52
    %v116 = vpop.permute.xlu0 %115
    %vm117 = vcmask 458144
    %118 = vst.msk [vmem:[#allocation0] sm:$0x1] %vm117, %v116
    %s119 = scalar_lea.vmem %s0, 12
    %v120 = vld [vmem:[%s119] sm:$0x1]
    %121 = vrot.lane.b32.xlu0 %v120, 48
    %v122 = vpop.permute.xlu0 %121
    %vm123 = vcmask 425344
    %124 = vst.msk [vmem:[#allocation0] sm:$0x1] %vm123, %v122
    %s125 = scalar_lea.vmem %s0, 11
    %v126 = vld [vmem:[%s125] sm:$0x1]
    %127 = vrot.lane.b32.xlu0 %v126, 44
    %v128 = vpop.permute.xlu0 %127
    %vm129 = vcmask 392544
    %130 = vst.msk [vmem:[#allocation0] sm:$0x1] %vm129, %v128
    %s131 = scalar_lea.vmem %s0, 10
    %v132 = vld [vmem:[%s131] sm:$0x1]
    %133 = vrot.lane.b32.xlu0 %v132, 40
    %v134 = vpop.permute.xlu0 %133
    %vm135 = vcmask 359744
    %136 = vst.msk [vmem:[#allocation0] sm:$0x1] %vm135, %v134
    %s137 = scalar_lea.vmem %s0, 9
    %v138 = vld [vmem:[%s137] sm:$0x1]
    %139 = vrot.lane.b32.xlu0 %v138, 36
    %v140 = vpop.permute.xlu0 %139
    %vm141 = vcmask 326944
    %142 = vst.msk [vmem:[#allocation0] sm:$0x1] %vm141, %v140
    %s143 = scalar_lea.vmem %s0, 8
    %v144 = vld [vmem:[%s143] sm:$0x1]
    %145 = vrot.lane.b32.xlu0 %v144, 32
    %v146 = vpop.permute.xlu0 %145
    %vm147 = vcmask 294144
    %148 = vst.msk [vmem:[#allocation0] sm:$0x1] %vm147, %v146
    %s149 = scalar_lea.vmem %s0, 7
    %v150 = vld [vmem:[%s149] sm:$0x1]
    %151 = vrot.lane.b32.xlu0 %v150, 28
    %v152 = vpop.permute.xlu0 %151
    %vm153 = vcmask 261344
    %154 = vst.msk [vmem:[#allocation0] sm:$0x1] %vm153, %v152
    %s155 = scalar_lea.vmem %s0, 6
    %v156 = vld [vmem:[%s155] sm:$0x1]
    %157 = vrot.lane.b32.xlu0 %v156, 24
    %v158 = vpop.permute.xlu0 %157
    %vm159 = vcmask 228544
    %160 = vst.msk [vmem:[#allocation0] sm:$0x1] %vm159, %v158
    %s161 = scalar_lea.vmem %s0, 5
    %v162 = vld [vmem:[%s161] sm:$0x1]
    %163 = vrot.lane.b32.xlu0 %v162, 20
    %v164 = vpop.permute.xlu0 %163
    %vm165 = vcmask 195744
    %166 = vst.msk [vmem:[#allocation0] sm:$0x1] %vm165, %v164
    %s167 = scalar_lea.vmem %s0, 4
    %v168 = vld [vmem:[%s167] sm:$0x1]
    %169 = vrot.lane.b32.xlu0 %v168, 16
    %v170 = vpop.permute.xlu0 %169
    %vm171 = vcmask 162944
    %172 = vst.msk [vmem:[#allocation0] sm:$0x1] %vm171, %v170
    %s173 = scalar_lea.vmem %s0, 3
    %v174 = vld [vmem:[%s173] sm:$0x1]
    %175 = vrot.lane.b32.xlu0 %v174, 12
    %v176 = vpop.permute.xlu0 %175
    %vm177 = vcmask 130144
    %178 = vst.msk [vmem:[#allocation0] sm:$0x1] %vm177, %v176
    %s179 = scalar_lea.vmem %s0, 2
    %v180 = vld [vmem:[%s179] sm:$0x1]
    %181 = vrot.lane.b32.xlu0 %v180, 8
    %v182 = vpop.permute.xlu0 %181
    %vm183 = vcmask 97344
    %184 = vst.msk [vmem:[#allocation0] sm:$0x1] %vm183, %v182
    %s185 = scalar_lea.vmem %s0, 1
    %v186 = vld [vmem:[%s185] sm:$0x1]
    %187 = vrot.lane.b32.xlu0 %v186, 4
    %v188 = vpop.permute.xlu0 %187
    %vm189 = vcmask 64544
    %190 = vst.msk [vmem:[#allocation0] sm:$0x1] %vm189, %v188
    %s192 = ssub.s32 2, 1
    %v193 = vld [vmem:[#allocation0] sm:%s192]
    %s195 = ssub.s32 2, 1
    %196 = vst [vmem:[%s1] sm:%s195] %v193

// kernel: down_gto_v1_forward.3
$region0: #{down_gto_v1_forward.3}
  #allocation0 [shape = 'u32[]', space=smem, size = 0x4, offset = 0x4, fixed_abs, tag = 'smem constant byte address 0x4 - core index']
  #allocation1 [shape = 'u32[72,128]{1,0:T(1,128)}', space=vmem, size = 0x9000, scoped, tag = 'internal scratch']
  %s0 = inlined_call_operand.vmem [shape: f32[16,128], index: 0, kind: input, shape index: {}]
  %s1 = inlined_call_operand.vmem [shape: f32[1,128], index: 1, kind: input, shape index: {}]
  %s2 = inlined_call_operand.vmem [shape: f32[1,128], index: 2, kind: input, shape index: {}]
  %s3 = inlined_call_operand.vmem [shape: bf16[16,128], index: 3, kind: output, shape index: {}]
  %s4 = sld [smem:[#allocation0]]
  $region45: #{down_gto_v1_forward.3} parent=0
    _
  %s6 = ssub.s32 1, %s4
  %s7 = scalar_select 0, %s6, %s4
  loop: start=0, step=1, limit=4
  $region2: #{down_gto_v1_forward.3} parent=0 // loop_pre_header
    _
  $region3: #{down_gto_v1_forward.3} parent=0 // loop_header
    %s9 = sphi 0, %s13
    %p10 = scmp.ge.s32.totalorder %s9, 4
    %s19 = sphi 0, %s21
    %s22 = sphi 0, %s19
    %s23 = sphi 0, %s22
    %s39 = sphi 0, %s23
    %s43 = sphi 0, %s43
    %s45 = sphi 0, %s43
    %s46 = sphi 0, %s45
    %s60 = sphi 0, %s46
    %s64 = sphi 0, %s64
    %s66 = sphi 0, %s64
    %s67 = sphi 0, %s66
    %s81 = sphi 0, %s67
    %s87 = sphi 0, %s89
    %s90 = sphi 0, %s87
    %s91 = sphi 0, %s90
    %s107 = sphi 0, %s91
  $region4: #{down_gto_v1_forward.3} parent=0 // loop_header_branch
    %12 = sbr.rel (%p10) target = $region8
  $region5: #{down_gto_v1_forward.3} parent=0 // loop_body
    %s14 = ssub.s32 %s9, 1
    %s15 = ssub.s32 %s9, 2
    %s16 = sadd.s32 %s9, 1
    %s17 = ssub.s32 %s9, %s16
    %p18 = scmp.eq.s32.totalorder %s17, 0
    %s20 = sadd.s32 %s19, 1
    %s21 = scalar_select %p18, %s19, %s20
    %p24 = pneg %p18
    %p25 = scmp.eq.s32.totalorder %s9, 1
    %p26 = por %p24, %p25
    %p27 = scmp.ne.s32.totalorder %s19, %s22
    %p28 = scmp.eq.s32.totalorder %s9, 0
    %p29 = por %p27, %p28
    %p30 = scmp.ne.s32.totalorder %s19, %s22
    %p31 = scmp.eq.s32.totalorder %s14, 1
    %p32 = por %p30, %p31
    %p33 = scmp.ne.s32.totalorder %s22, %s23
    %p34 = scmp.eq.s32.totalorder %s14, 0
    %p35 = por %p33, %p34
    %p36 = scmp.ne.s32.totalorder %s22, %s23
    %p37 = scmp.eq.s32.totalorder %s15, 1
    %p38 = por %p36, %p37
    %p40 = scmp.ne.s32.totalorder %s23, %s39
    %p41 = scmp.eq.s32.totalorder %s15, 0
    %p42 = por %p40, %p41
    %s44 = sadd.s32 %s43, 1
    %p47 = scmp.eq.s32.totalorder %s9, 1
    %p48 = scmp.ne.s32.totalorder %s43, %s45
    %p49 = scmp.eq.s32.totalorder %s9, 0
    %p50 = por %p48, %p49
    %p51 = scmp.ne.s32.totalorder %s43, %s45
    %p52 = scmp.eq.s32.totalorder %s14, 1
    %p53 = por %p51, %p52
    %p54 = scmp.ne.s32.totalorder %s45, %s46
    %p55 = scmp.eq.s32.totalorder %s14, 0
    %p56 = por %p54, %p55
    %p57 = scmp.ne.s32.totalorder %s45, %s46
    %p58 = scmp.eq.s32.totalorder %s15, 1
    %p59 = por %p57, %p58
    %p61 = scmp.ne.s32.totalorder %s46, %s60
    %p62 = scmp.eq.s32.totalorder %s15, 0
    %p63 = por %p61, %p62
    %s65 = sadd.s32 %s64, 1
    %p68 = scmp.eq.s32.totalorder %s9, 1
    %p69 = scmp.ne.s32.totalorder %s64, %s66
    %p70 = scmp.eq.s32.totalorder %s9, 0
    %p71 = por %p69, %p70
    %p72 = scmp.ne.s32.totalorder %s64, %s66
    %p73 = scmp.eq.s32.totalorder %s14, 1
    %p74 = por %p72, %p73
    %p75 = scmp.ne.s32.totalorder %s66, %s67
    %p76 = scmp.eq.s32.totalorder %s14, 0
    %p77 = por %p75, %p76
    %p78 = scmp.ne.s32.totalorder %s66, %s67
    %p79 = scmp.eq.s32.totalorder %s15, 1
    %p80 = por %p78, %p79
    %p82 = scmp.ne.s32.totalorder %s67, %s81
    %p83 = scmp.eq.s32.totalorder %s15, 0
    %p84 = por %p82, %p83
    %s85 = ssub.s32 %s9, %s16
    %p86 = scmp.eq.s32.totalorder %s85, 0
    %s88 = sadd.s32 %s87, 1
    %s89 = scalar_select %p86, %s87, %s88
    %p92 = pneg %p86
    %p93 = scmp.eq.s32.totalorder %s9, 1
    %p94 = por %p92, %p93
    %p95 = scmp.ne.s32.totalorder %s87, %s90
    %p96 = scmp.eq.s32.totalorder %s9, 0
    %p97 = por %p95, %p96
    %p98 = scmp.ne.s32.totalorder %s87, %s90
    %p99 = scmp.eq.s32.totalorder %s14, 1
    %p100 = por %p98, %p99
    %p101 = scmp.ne.s32.totalorder %s90, %s91
    %p102 = scmp.eq.s32.totalorder %s14, 0
    %p103 = por %p101, %p102
    %p104 = scmp.ne.s32.totalorder %s90, %s91
    %p105 = scmp.eq.s32.totalorder %s15, 1
    %p106 = por %p104, %p105
    %p108 = scmp.ne.s32.totalorder %s91, %s107
    %p109 = scmp.eq.s32.totalorder %s15, 0
    %p110 = por %p108, %p109
    %p111 = scmp.le.s32.totalorder 1, %s9
    %p112 = scmp.lt.s32.totalorder %s9, 3
    %p113 = pnand %p111, %p112
    %p114 = pneg %p113
    // Predicated region
    $region9: #{down_gto_v1_forward.3} parent=5 // pred_check
      _
    $region10: #{down_gto_v1_forward.3} parent=5 // pred_check_branch
      %116 = sbr.rel (%p113) target = $region12
    $region11: #{down_gto_v1_forward.3} parent=5 // pred_region
      %s117 = ssub.s32 %s9, 1
      // Predicated region
      $region13: #{down_gto_v1_forward.3} parent=11 // pred_check
        %p118 = pneg %p56
      $region14: #{down_gto_v1_forward.3} parent=11 // pred_check_branch
        %120 = sbr.rel (%p118) target = $region16
      $region15: #{down_gto_v1_forward.3} parent=11 // pred_region
        _
      $region16: #{down_gto_v1_forward.3} parent=11 // pred_fallthru
        _
      // Predicated region
      $region17: #{down_gto_v1_forward.3} parent=11 // pred_check
        %p121 = pneg %p77
      $region18: #{down_gto_v1_forward.3} parent=11 // pred_check_branch
        %123 = sbr.rel (%p121) target = $region20
      $region19: #{down_gto_v1_forward.3} parent=11 // pred_region
        _
      $region20: #{down_gto_v1_forward.3} parent=11 // pred_fallthru
        _
    $region12: #{down_gto_v1_forward.3} parent=5 // pred_fallthru
      _
    %p124 = scmp.lt.s32.totalorder %s9, 2
    // Predicated region
    $region21: #{down_gto_v1_forward.3} parent=5 // pred_check
      %p125 = pneg %p124
    $region22: #{down_gto_v1_forward.3} parent=5 // pred_check_branch
      %127 = sbr.rel (%p125) target = $region24
    $region23: #{down_gto_v1_forward.3} parent=5 // pred_region
      // Predicated region
      $region25: #{down_gto_v1_forward.3} parent=23 // pred_check
        %p128 = pneg %p29
      $region26: #{down_gto_v1_forward.3} parent=23 // pred_check_branch
        %130 = sbr.rel (%p128) target = $region28
      $region27: #{down_gto_v1_forward.3} parent=23 // pred_region
        %p131 = scmp.lt.s32.totalorder %s9, 1
        %s132 = scalar_select %p131, %s9, 1
        %s133 = smul.addr %s132, 8
        %s134 = scalar_lea.vmem %s0, %s133
      $region28: #{down_gto_v1_forward.3} parent=23 // pred_fallthru
        _
    $region24: #{down_gto_v1_forward.3} parent=5 // pred_fallthru
      _
    %p135 = scmp.le.s32.totalorder 1, %s9
    %p136 = scmp.lt.s32.totalorder %s9, 3
    %p137 = pnand %p135, %p136
    %p138 = pneg %p137
    // Predicated region
    $region29: #{down_gto_v1_forward.3} parent=5 // pred_check
      _
    $region30: #{down_gto_v1_forward.3} parent=5 // pred_check_branch
      %140 = sbr.rel (%p137) target = $region32
    $region31: #{down_gto_v1_forward.3} parent=5 // pred_region
      %s141 = ssub.s32 %s9, 1
      %p142 = scmp.lt.s32.totalorder %s14, 1
      %s143 = scalar_select %p142, %s14, 1
      %s144 = smul.addr %s143, 8
      %s145 = scalar_lea.vmem %s0, %s144
      %p146 = pneg %p35
      %p147 = pneg %p32
      %p148 = pneg %p56
      %p149 = pneg %p53
      %p150 = pneg %p77
      %p151 = pneg %p74
      %p152 = pneg %p103
      %p153 = pneg %p100
      %p154 = scmp.lt.s32.totalorder %s14, 1
      %s155 = scalar_select %p154, %s14, 1
      %s156 = smul.addr %s155, 4
      %s157 = scalar_lea.vmem %s3, %s156
      %p158 = scmp.lt.s32.totalorder %s14, 1
      %s159 = scalar_select %p158, %s14, 1
      %s160 = smul.addr %s159, 8
      %s161 = scalar_lea.vmem %s0, %s160
      %p162 = scmp.lt.s32.totalorder %s14, 1
      %s163 = scalar_select %p162, %s14, 1
      %s164 = smul.addr %s163, 4
      %s165 = scalar_lea.vmem %s3, %s164
      %v166 = vld [vmem:[%s161] sm:$0xff]
      %v167 = vld [vmem:[%s1] sm:$0x1]
      %v169 = vperm.slane %v167, 0
      %v171 = vmul.f32 %v166, %v169
      %v172 = vld [vmem:[%s2] sm:$0x1]
      %v174 = vperm.slane %v172, 0
      %v176 = vadd.f32 %v171, %v174
      %v177 = vmax.f32 %v176, 0.0
      %v178 = vpack.c.bf16 %v177, %v177
      %179 = vst [vmem:[%s165] sm:$0xf] %v178
      %p180 = scmp.lt.s32.totalorder %s14, 1
      %s181 = scalar_select %p180, %s14, 1
      %s182 = smul.addr %s181, 4
      %s183 = scalar_lea.vmem %s3, %s182
      // Predicated region
      $region33: #{down_gto_v1_forward.3} parent=31 // pred_check
        %p184 = pneg %p100
      $region34: #{down_gto_v1_forward.3} parent=31 // pred_check_branch
        %186 = sbr.rel (%p184) target = $region36
      $region35: #{down_gto_v1_forward.3} parent=31 // pred_region
        _
      $region36: #{down_gto_v1_forward.3} parent=31 // pred_fallthru
        _
    $region32: #{down_gto_v1_forward.3} parent=5 // pred_fallthru
      _
    %p187 = scmp.le.s32.totalorder 2, %s9
    // Predicated region
    $region37: #{down_gto_v1_forward.3} parent=5 // pred_check
      %p188 = pneg %p187
    $region38: #{down_gto_v1_forward.3} parent=5 // pred_check_branch
      %190 = sbr.rel (%p188) target = $region40
    $region39: #{down_gto_v1_forward.3} parent=5 // pred_region
      %s191 = ssub.s32 %s9, 2
      // Predicated region
      $region41: #{down_gto_v1_forward.3} parent=39 // pred_check
        %p192 = pneg %p106
      $region42: #{down_gto_v1_forward.3} parent=39 // pred_check_branch
        %194 = sbr.rel (%p192) target = $region44
      $region43: #{down_gto_v1_forward.3} parent=39 // pred_region
        %p195 = scmp.lt.s32.totalorder %s15, 1
        %s196 = scalar_select %p195, %s15, 1
        %s197 = smul.addr %s196, 4
        %s198 = scalar_lea.vmem %s3, %s197
      $region44: #{down_gto_v1_forward.3} parent=39 // pred_fallthru
        _
    $region40: #{down_gto_v1_forward.3} parent=5 // pred_fallthru
      _
  $region6: #{down_gto_v1_forward.3} parent=0 // loop_footer
    %s13 = sadd.s32 1, %s9
  $region7: #{down_gto_v1_forward.3} parent=0 // loop_footer_branch
    %8 = sbr.rel target = $region3
  $region8: #{down_gto_v1_forward.3} parent=0 // loop_exit
    _

// kernel: down_gto_v1_forward.4
$region0: #{down_gto_v1_forward.4}
  #allocation0 [shape = 'u32[]', space=smem, size = 0x4, offset = 0x4, fixed_abs, tag = 'smem constant byte address 0x4 - core index']
  #allocation1 [shape = 'u32[72,128]{1,0:T(1,128)}', space=vmem, size = 0x9000, scoped, tag = 'internal scratch']
  %s0 = inlined_call_operand.vmem [shape: bf16[2,9,9,16], index: 0, kind: input, shape index: {}, may-alias: {0,1}]
  %s1 = inlined_call_operand.vmem [shape: bf16[2,9,9,16], index: 1, kind: input, shape index: {}, may-alias: {0,1}]
  %s2 = inlined_call_operand.vmem [shape: bf16[4,16,16], index: 2, kind: input, shape index: {}]
  %s3 = inlined_call_operand.vmem [shape: f32[2,8,8,16], index: 3, kind: output, shape index: {}]
  %s4 = sld [smem:[#allocation0]]
  $region45: #{down_gto_v1_forward.4} parent=0
    _
  %s6 = ssub.s32 1, %s4
  %s7 = scalar_select 0, %s6, %s4
  loop: start=0, step=1, limit=18
  $region2: #{down_gto_v1_forward.4} parent=0 // loop_pre_header
    _
  $region3: #{down_gto_v1_forward.4} parent=0 // loop_header
    %s9 = sphi 0, %s13
    %p10 = scmp.ge.s32.totalorder %s9, 18
    %s16 = sphi 0, %s28
    %s17 = sphi 0, %s24
    %s18 = sphi 0, %s16
    %s19 = sphi 0, %s17
    %s20 = sphi 0, %s18
    %s21 = sphi 0, %s19
    %s33 = sphi 0, %s35
    %s36 = sphi 0, %s33
    %s37 = sphi 0, %s36
    %s53 = sphi 0, %s37
    %s63 = sphi 0, %s65
    %s66 = sphi 0, %s63
    %s67 = sphi 0, %s66
    %s83 = sphi 0, %s67
    %s87 = sphi 0, %s87
    %s89 = sphi 0, %s87
    %s90 = sphi 0, %s89
    %s104 = sphi 0, %s90
    %s112 = sphi 0, %s114
    %s115 = sphi 0, %s112
    %s116 = sphi 0, %s115
    %s132 = sphi 0, %s116
  $region4: #{down_gto_v1_forward.4} parent=0 // loop_header_branch
    %12 = sbr.rel (%p10) target = $region8
  $region5: #{down_gto_v1_forward.4} parent=0 // loop_body
    %s14 = ssub.s32 %s9, 1
    %s15 = ssub.s32 %s9, 2
    %s22 = sadd.s32 1, %s17
    %p23 = scmp.ge.s32.totalorder %s22, 8
    %s24 = scalar_select %p23, 0, %s22
    %s25 = sadd.s32 1, %s16
    %s26 = scalar_select %p23, %s25, %s16
    %p27 = scmp.ge.s32.totalorder %s26, 2
    %s28 = scalar_select %p27, 0, %s26
    %s29 = ssub.s32 %s16, %s28
    %s30 = ssub.s32 %s17, %s24
    %s31 = sor.u32 %s29, %s30
    %p32 = scmp.eq.s32.totalorder %s31, 0
    %s34 = sadd.s32 %s33, 1
    %s35 = scalar_select %p32, %s33, %s34
    %p38 = pneg %p32
    %p39 = scmp.eq.s32.totalorder %s9, 15
    %p40 = por %p38, %p39
    %p41 = scmp.ne.s32.totalorder %s33, %s36
    %p42 = scmp.eq.s32.totalorder %s9, 0
    %p43 = por %p41, %p42
    %p44 = scmp.ne.s32.totalorder %s33, %s36
    %p45 = scmp.eq.s32.totalorder %s14, 15
    %p46 = por %p44, %p45
    %p47 = scmp.ne.s32.totalorder %s36, %s37
    %p48 = scmp.eq.s32.totalorder %s14, 0
    %p49 = por %p47, %p48
    %p50 = scmp.ne.s32.totalorder %s36, %s37
    %p51 = scmp.eq.s32.totalorder %s15, 15
    %p52 = por %p50, %p51
    %p54 = scmp.ne.s32.totalorder %s37, %s53
    %p55 = scmp.eq.s32.totalorder %s15, 0
    %p56 = por %p54, %p55
    %s57 = sadd.s32 %s17, 1
    %s58 = sadd.s32 %s24, 1
    %s59 = ssub.s32 %s16, %s28
    %s60 = ssub.s32 %s57, %s58
    %s61 = sor.u32 %s59, %s60
    %p62 = scmp.eq.s32.totalorder %s61, 0
    %s64 = sadd.s32 %s63, 1
    %s65 = scalar_select %p62, %s63, %s64
    %p68 = pneg %p62
    %p69 = scmp.eq.s32.totalorder %s9, 15
    %p70 = por %p68, %p69
    %p71 = scmp.ne.s32.totalorder %s63, %s66
    %p72 = scmp.eq.s32.totalorder %s9, 0
    %p73 = por %p71, %p72
    %p74 = scmp.ne.s32.totalorder %s63, %s66
    %p75 = scmp.eq.s32.totalorder %s14, 15
    %p76 = por %p74, %p75
    %p77 = scmp.ne.s32.totalorder %s66, %s67
    %p78 = scmp.eq.s32.totalorder %s14, 0
    %p79 = por %p77, %p78
    %p80 = scmp.ne.s32.totalorder %s66, %s67
    %p81 = scmp.eq.s32.totalorder %s15, 15
    %p82 = por %p80, %p81
    %p84 = scmp.ne.s32.totalorder %s67, %s83
    %p85 = scmp.eq.s32.totalorder %s15, 0
    %p86 = por %p84, %p85
    %s88 = sadd.s32 %s87, 1
    %p91 = scmp.eq.s32.totalorder %s9, 15
    %p92 = scmp.ne.s32.totalorder %s87, %s89
    %p93 = scmp.eq.s32.totalorder %s9, 0
    %p94 = por %p92, %p93
    %p95 = scmp.ne.s32.totalorder %s87, %s89
    %p96 = scmp.eq.s32.totalorder %s14, 15
    %p97 = por %p95, %p96
    %p98 = scmp.ne.s32.totalorder %s89, %s90
    %p99 = scmp.eq.s32.totalorder %s14, 0
    %p100 = por %p98, %p99
    %p101 = scmp.ne.s32.totalorder %s89, %s90
    %p102 = scmp.eq.s32.totalorder %s15, 15
    %p103 = por %p101, %p102
    %p105 = scmp.ne.s32.totalorder %s90, %s104
    %p106 = scmp.eq.s32.totalorder %s15, 0
    %p107 = por %p105, %p106
    %s108 = ssub.s32 %s16, %s28
    %s109 = ssub.s32 %s17, %s24
    %s110 = sor.u32 %s108, %s109
    %p111 = scmp.eq.s32.totalorder %s110, 0
    %s113 = sadd.s32 %s112, 1
    %s114 = scalar_select %p111, %s112, %s113
    %p117 = pneg %p111
    %p118 = scmp.eq.s32.totalorder %s9, 15
    %p119 = por %p117, %p118
    %p120 = scmp.ne.s32.totalorder %s112, %s115
    %p121 = scmp.eq.s32.totalorder %s9, 0
    %p122 = por %p120, %p121
    %p123 = scmp.ne.s32.totalorder %s112, %s115
    %p124 = scmp.eq.s32.totalorder %s14, 15
    %p125 = por %p123, %p124
    %p126 = scmp.ne.s32.totalorder %s115, %s116
    %p127 = scmp.eq.s32.totalorder %s14, 0
    %p128 = por %p126, %p127
    %p129 = scmp.ne.s32.totalorder %s115, %s116
    %p130 = scmp.eq.s32.totalorder %s15, 15
    %p131 = por %p129, %p130
    %p133 = scmp.ne.s32.totalorder %s116, %s132
    %p134 = scmp.eq.s32.totalorder %s15, 0
    %p135 = por %p133, %p134
    %p136 = scmp.le.s32.totalorder 1, %s9
    %p137 = scmp.lt.s32.totalorder %s9, 17
    %p138 = pnand %p136, %p137
    %p139 = pneg %p138
    // Predicated region
    $region9: #{down_gto_v1_forward.4} parent=5 // pred_check
      _
    $region10: #{down_gto_v1_forward.4} parent=5 // pred_check_branch
      %141 = sbr.rel (%p138) target = $region12
    $region11: #{down_gto_v1_forward.4} parent=5 // pred_region
      %s142 = ssub.s32 %s9, 1
      // Predicated region
      $region13: #{down_gto_v1_forward.4} parent=11 // pred_check
        %p143 = pneg %p100
      $region14: #{down_gto_v1_forward.4} parent=11 // pred_check_branch
        %145 = sbr.rel (%p143) target = $region16
      $region15: #{down_gto_v1_forward.4} parent=11 // pred_region
        _
      $region16: #{down_gto_v1_forward.4} parent=11 // pred_fallthru
        _
    $region12: #{down_gto_v1_forward.4} parent=5 // pred_fallthru
      _
    %p146 = scmp.lt.s32.totalorder %s9, 16
    // Predicated region
    $region17: #{down_gto_v1_forward.4} parent=5 // pred_check
      %p147 = pneg %p146
    $region18: #{down_gto_v1_forward.4} parent=5 // pred_check_branch
      %149 = sbr.rel (%p147) target = $region20
    $region19: #{down_gto_v1_forward.4} parent=5 // pred_region
      // Predicated region
      $region21: #{down_gto_v1_forward.4} parent=19 // pred_check
        %p150 = pneg %p43
      $region22: #{down_gto_v1_forward.4} parent=19 // pred_check_branch
        %152 = sbr.rel (%p150) target = $region24
      $region23: #{down_gto_v1_forward.4} parent=19 // pred_region
        %p153 = scmp.lt.s32.totalorder %s16, 1
        %s154 = scalar_select %p153, %s16, 1
        %p155 = scmp.lt.s32.totalorder %s17, 8
        %s156 = scalar_select %p155, %s17, 8
        %s157 = smul.addr %s156, 2
        %s158 = smul.addr %s154, 18
        %s159 = sadd.s32 %s157, %s158
        %s160 = smul.addr %s159, 4
        %s161 = scalar_lea.vmem %s0, %s160
      $region24: #{down_gto_v1_forward.4} parent=19 // pred_fallthru
        _
      // Predicated region
      $region25: #{down_gto_v1_forward.4} parent=19 // pred_check
        %p162 = pneg %p73
      $region26: #{down_gto_v1_forward.4} parent=19 // pred_check_branch
        %164 = sbr.rel (%p162) target = $region28
      $region27: #{down_gto_v1_forward.4} parent=19 // pred_region
        %s165 = sadd.s32 %s17, 1
        %p166 = scmp.lt.s32.totalorder %s16, 1
        %s167 = scalar_select %p166, %s16, 1
        %p168 = scmp.lt.s32.totalorder %s165, 8
        %s169 = scalar_select %p168, %s165, 8
        %s170 = smul.addr %s169, 2
        %s171 = smul.addr %s167, 18
        %s172 = sadd.s32 %s170, %s171
        %s173 = smul.addr %s172, 4
        %s174 = scalar_lea.vmem %s1, %s173
        %s175 = sadd.s32 %s17, 1
      $region28: #{down_gto_v1_forward.4} parent=19 // pred_fallthru
        _
    $region20: #{down_gto_v1_forward.4} parent=5 // pred_fallthru
      _
    %p176 = scmp.le.s32.totalorder 1, %s9
    %p177 = scmp.lt.s32.totalorder %s9, 17
    %p178 = pnand %p176, %p177
    %p179 = pneg %p178
    // Predicated region
    $region29: #{down_gto_v1_forward.4} parent=5 // pred_check
      _
    $region30: #{down_gto_v1_forward.4} parent=5 // pred_check_branch
      %181 = sbr.rel (%p178) target = $region32
    $region31: #{down_gto_v1_forward.4} parent=5 // pred_region
      %s182 = ssub.s32 %s9, 1
      %p183 = scmp.lt.s32.totalorder %s18, 1
      %s184 = scalar_select %p183, %s18, 1
      %p185 = scmp.lt.s32.totalorder %s19, 8
      %s186 = scalar_select %p185, %s19, 8
      %s187 = smul.addr %s186, 2
      %s188 = smul.addr %s184, 18
      %s189 = sadd.s32 %s187, %s188
      %s190 = smul.addr %s189, 4
      %s191 = scalar_lea.vmem %s0, %s190
      %p192 = pneg %p49
      %p193 = pneg %p46
      %s194 = sadd.s32 %s19, 1
      %p195 = scmp.lt.s32.totalorder %s18, 1
      %s196 = scalar_select %p195, %s18, 1
      %p197 = scmp.lt.s32.totalorder %s194, 8
      %s198 = scalar_select %p197, %s194, 8
      %s199 = smul.addr %s198, 2
      %s200 = smul.addr %s196, 18
      %s201 = sadd.s32 %s199, %s200
      %s202 = smul.addr %s201, 4
      %s203 = scalar_lea.vmem %s1, %s202
      %p204 = pneg %p79
      %p205 = pneg %p76
      %p206 = pneg %p100
      %p207 = pneg %p97
      %p208 = pneg %p128
      %p209 = pneg %p125
      %p210 = scmp.lt.s32.totalorder %s18, 1
      %s211 = scalar_select %p210, %s18, 1
      %p212 = scmp.lt.s32.totalorder %s19, 7
      %s213 = scalar_select %p212, %s19, 7
      %s214 = smul.addr %s211, 8
      %s215 = sadd.s32 %s213, %s214
      %s216 = smul.addr %s215, 8
      %s217 = scalar_lea.vmem %s3, %s216
      %p218 = scmp.lt.s32.totalorder %s18, 1
      %s219 = scalar_select %p218, %s18, 1
      %p220 = scmp.lt.s32.totalorder %s19, 8
      %s221 = scalar_select %p220, %s19, 8
      %s222 = smul.addr %s221, 2
      %s223 = smul.addr %s219, 18
      %s224 = sadd.s32 %s222, %s223
      %s225 = smul.addr %s224, 4
      %s226 = scalar_lea.vmem %s0, %s225
      %s227 = sadd.s32 %s19, 1
      %p228 = scmp.lt.s32.totalorder %s18, 1
      %s229 = scalar_select %p228, %s18, 1
      %p230 = scmp.lt.s32.totalorder %s227, 8
      %s231 = scalar_select %p230, %s227, 8
      %s232 = smul.addr %s231, 2
      %s233 = smul.addr %s229, 18
      %s234 = sadd.s32 %s232, %s233
      %s235 = smul.addr %s234, 4
      %s236 = scalar_lea.vmem %s1, %s235
      %s237 = sadd.s32 %s19, 1
      %p238 = scmp.lt.s32.totalorder %s18, 1
      %s239 = scalar_select %p238, %s18, 1
      %p240 = scmp.lt.s32.totalorder %s19, 7
      %s241 = scalar_select %p240, %s19, 7
      %s242 = smul.addr %s239, 8
      %s243 = sadd.s32 %s241, %s242
      %s244 = smul.addr %s243, 8
      %s245 = scalar_lea.vmem %s3, %s244
      %v247 = vld [vmem:[%s226] sm:$0xf]
      %v248 = vld [vmem:[%s2] sm:$0xf]
      %v249 = vld [vmem:[%s2 + $0x4] sm:$0xf]
      %v250 = vld [vmem:[%s226 + $0x4] sm:$0x1]
      %s251 = scalar_lea.vmem %s2, 8
      %v252 = vld [vmem:[%s251] sm:$0xf]
      %v253 = vld [vmem:[%s251 + $0x4] sm:$0xf]
      %v256 = vunpack.c.l.b16 %v247
      %v257 = vunpack.c.l.b16 %v250
      %v258 = vpack.c.b16 %v257, %v256
      %v260 = vshrl.u32 %v258, 16
      %v262 = vshll.u32 %v258, 16
      %v264 = vrot.slane %v262, 1
      %v265 = vor.u32 %v260, %v264
      %v268 = vunpack.c.l.b16 %v252
      %v269 = vunpack.c.l.b16 %v253
      %v270 = vpack.c.b16 %v269, %v268
      %vm272 = vcmask 130048
      %v274 = vsel %vm272, %v265, 0
      %276 = vmatpush.bf16.msra.mxu0 0
      %277 = vmatpush.bf16.msra.mxu0 0
      %278 = vmatpush.bf16.msra.mxu0 0
      %279 = vmatpush.bf16.msra.mxu0 0
      %280 = vmatpush.bf16.msra.mxu0 0
      %281 = vmatpush.bf16.msra.mxu0 0
      %282 = vmatpush.bf16.msra.mxu0 0
      %283 = vmatpush.bf16.msra.mxu0 %v270
      %284 = vmatmul.bf16.gmra.mxu0 %v274
      %v285 = vpop.f32.mrf.mxu0
      %v286 = vadd.f32 0.0, %v285
      %v287 = vpop.f32.mrf.mxu0
      %288 = vdwg.mxu0
      %v291 = vunpack.c.l.b16 %v248
      %v292 = vunpack.c.l.b16 %v249
      %v293 = vpack.c.b16 %v292, %v291
      %v296 = vsel %vm272, %v247, 0
      %298 = vmatpush.bf16.msra.mxu0 0
      %299 = vmatpush.bf16.msra.mxu0 0
      %300 = vmatpush.bf16.msra.mxu0 0
      %301 = vmatpush.bf16.msra.mxu0 0
      %302 = vmatpush.bf16.msra.mxu0 0
      %303 = vmatpush.bf16.msra.mxu0 0
      %304 = vmatpush.bf16.msra.mxu0 0
      %305 = vmatpush.bf16.msra.mxu0 %v293
      %306 = vmatmul.bf16.gmra.mxu0 %v296
      %v307 = vpop.f32.mrf.mxu0
      %v308 = vadd.f32 %v286, %v307
      %v309 = vpop.f32.mrf.mxu0
      %310 = vdwg.mxu0
      %v311 = vld [vmem:[%s236] sm:$0xf]
      %s312 = scalar_lea.vmem %s2, 16
      %v313 = vld [vmem:[%s312] sm:$0xf]
      %v314 = vld [vmem:[%s312 + $0x4] sm:$0xf]
      %v317 = vunpack.c.l.b16 %v313
      %v318 = vunpack.c.l.b16 %v314
      %v319 = vpack.c.b16 %v318, %v317
      %v322 = vsel %vm272, %v311, 0
      %324 = vmatpush.bf16.msra.mxu0 0
      %325 = vmatpush.bf16.msra.mxu0 0
      %326 = vmatpush.bf16.msra.mxu0 0
      %327 = vmatpush.bf16.msra.mxu0 0
      %328 = vmatpush.bf16.msra.mxu0 0
      %329 = vmatpush.bf16.msra.mxu0 0
      %330 = vmatpush.bf16.msra.mxu0 0
      %331 = vmatpush.bf16.msra.mxu0 %v319
      %332 = vmatmul.bf16.gmra.mxu0 %v322
      %v333 = vpop.f32.mrf.mxu0
      %v334 = vadd.f32 0.0, %v333
      %v335 = vpop.f32.mrf.mxu0
      %336 = vdwg.mxu0
      %v337 = vadd.f32 %v308, %v334
      %v338 = vld [vmem:[%s236] sm:$0xf]
      %v339 = vld [vmem:[%s236 + $0x4] sm:$0x1]
      %s340 = scalar_lea.vmem %s2, 24
      %v341 = vld [vmem:[%s340] sm:$0xf]
      %v342 = vld [vmem:[%s340 + $0x4] sm:$0xf]
      %v345 = vunpack.c.l.b16 %v338
      %v346 = vunpack.c.l.b16 %v339
      %v347 = vpack.c.b16 %v346, %v345
      %v349 = vshrl.u32 %v347, 16
      %v351 = vshll.u32 %v347, 16
      %v353 = vrot.slane %v351, 1
      %v354 = vor.u32 %v349, %v353
      %v357 = vunpack.c.l.b16 %v341
      %v358 = vunpack.c.l.b16 %v342
      %v359 = vpack.c.b16 %v358, %v357
      %v362 = vsel %vm272, %v354, 0
      %364 = vmatpush.bf16.msra.mxu0 0
      %365 = vmatpush.bf16.msra.mxu0 0
      %366 = vmatpush.bf16.msra.mxu0 0
      %367 = vmatpush.bf16.msra.mxu0 0
      %368 = vmatpush.bf16.msra.mxu0 0
      %369 = vmatpush.bf16.msra.mxu0 0
      %370 = vmatpush.bf16.msra.mxu0 0
      %371 = vmatpush.bf16.msra.mxu0 %v359
      %372 = vmatmul.bf16.gmra.mxu0 %v362
      %v373 = vpop.f32.mrf.mxu0
      %v374 = vadd.f32 0.0, %v373
      %v375 = vpop.f32.mrf.mxu0
      %376 = vdwg.mxu0
      %v377 = vadd.f32 %v337, %v374
      %378 = vst.msk [vmem:[%s245] sm:$0xff] %vm272, %v377
      %p379 = scmp.lt.s32.totalorder %s18, 1
      %s380 = scalar_select %p379, %s18, 1
      %p381 = scmp.lt.s32.totalorder %s19, 7
      %s382 = scalar_select %p381, %s19, 7
      %s383 = smul.addr %s380, 8
      %s384 = sadd.s32 %s382, %s383
      %s385 = smul.addr %s384, 8
      %s386 = scalar_lea.vmem %s3, %s385
      // Predicated region
      $region33: #{down_gto_v1_forward.4} parent=31 // pred_check
        %p387 = pneg %p125
      $region34: #{down_gto_v1_forward.4} parent=31 // pred_check_branch
        %389 = sbr.rel (%p387) target = $region36
      $region35: #{down_gto_v1_forward.4} parent=31 // pred_region
        _
      $region36: #{down_gto_v1_forward.4} parent=31 // pred_fallthru
        _
    $region32: #{down_gto_v1_forward.4} parent=5 // pred_fallthru
      _
    %p390 = scmp.le.s32.totalorder 2, %s9
    // Predicated region
    $region37: #{down_gto_v1_forward.4} parent=5 // pred_check
      %p391 = pneg %p390
    $region38: #{down_gto_v1_forward.4} parent=5 // pred_check_branch
      %393 = sbr.rel (%p391) target = $region40
    $region39: #{down_gto_v1_forward.4} parent=5 // pred_region
      %s394 = ssub.s32 %s9, 2
      // Predicated region
      $region41: #{down_gto_v1_forward.4} parent=39 // pred_check
        %p395 = pneg %p131
      $region42: #{down_gto_v1_forward.4} parent=39 // pred_check_branch
        %397 = sbr.rel (%p395) target = $region44
      $region43: #{down_gto_v1_forward.4} parent=39 // pred_region
        %p398 = scmp.lt.s32.totalorder %s20, 1
        %s399 = scalar_select %p398, %s20, 1
        %p400 = scmp.lt.s32.totalorder %s21, 7
        %s401 = scalar_select %p400, %s21, 7
        %s402 = smul.addr %s399, 8
        %s403 = sadd.s32 %s401, %s402
        %s404 = smul.addr %s403, 8
        %s405 = scalar_lea.vmem %s3, %s404
      $region44: #{down_gto_v1_forward.4} parent=39 // pred_fallthru
        _
    $region40: #{down_gto_v1_forward.4} parent=5 // pred_fallthru
      _
  $region6: #{down_gto_v1_forward.4} parent=0 // loop_footer
    %s13 = sadd.s32 1, %s9
  $region7: #{down_gto_v1_forward.4} parent=0 // loop_footer_branch
    %8 = sbr.rel target = $region3
  $region8: #{down_gto_v1_forward.4} parent=0 // loop_exit
    _

// kernel: down_gto_v1_forward.5
$region0: #{down_gto_v1_forward.5}
  #allocation0 [shape = 'u32[]', space=smem, size = 0x4, offset = 0x4, fixed_abs, tag = 'smem constant byte address 0x4 - core index']
  #allocation1 [shape = 'u32[72,128]{1,0:T(1,128)}', space=vmem, size = 0x9000, scoped, tag = 'internal scratch']
  #allocation2 [shape = 'bf16[64,8]{1,0:T(8,128)(2,1)}', space=vmem, size = 0x4000, scoped, tag = 'scratch operand']
  #allocation3 [shape = 'f32[2,64,1]{2,1,0:T(8,128)}', space=vmem, size = 0x10000, scoped, tag = 'scratch operand']
  #allocation4 [shape = 'f32[2,64,1]{2,1,0:T(8,128)}', space=vmem, size = 0x10000, scoped, tag = 'scratch operand']
  #allocation5 [shape = 'f32[64,8]{1,0:T(8,128)}', space=vmem, size = 0x8000, scoped, tag = 'scratch operand']
  %s0 = inlined_call_operand.vmem [shape: bf16[2,64,16], index: 0, kind: input, shape index: {}]
  %s1 = inlined_call_operand.vmem [shape: bf16[2,256,4], index: 1, kind: input, shape index: {}]
  %s2 = inlined_call_operand.vmem [shape: bf16[16,8], index: 2, kind: input, shape index: {}]
  %s3 = inlined_call_operand.vmem [shape: bf16[4,16], index: 3, kind: input, shape index: {}]
  %s4 = inlined_call_operand.vmem [shape: bf16[8,16], index: 4, kind: input, shape index: {}]
  %s5 = inlined_call_operand.vmem [shape: f32[2,64,16], index: 5, kind: input, shape index: {}]
  %s6 = inlined_call_operand.hbm [shape: f32[2,64,16], index: 6, kind: output, shape index: {}]
  %s7 = sld [smem:[#allocation0]]
  $region65: #{down_gto_v1_forward.5} parent=0
    _
  %s9 = ssub.s32 1, %s7
  %s10 = scalar_select 0, %s9, %s7
  $region1: #{down_gto_v1_forward.5} parent=0
    #allocation6 [shape = 'u8[65536]{0}', space=vmem, size = 0x10000, scoped, tag = 'output window, operand 0']
    #allocation7 [shape = 's32[2]{0}', space=sflag, size = 0x8, scoped, tag = 'scoped memory for down_gto_v1_forward.5']
    %11 = vsyncpa [#allocation7], 0
    %s12 = scalar_lea.sflag [#allocation7], 1
    %13 = vsyncpa %s12, 0
    loop: start=0, step=1, limit=4
    $region2: #{down_gto_v1_forward.5} parent=1 // loop_pre_header
      _
    $region3: #{down_gto_v1_forward.5} parent=1 // loop_header
      %s15 = sphi 0, %s19
      %p16 = scmp.ge.s32.totalorder %s15, 4
      %s22 = sphi 0, %s41
      %s23 = sphi 0, %s37
      %s24 = sphi 0, %s33
      %s25 = sphi 0, %s22
      %s26 = sphi 0, %s23
      %s27 = sphi 0, %s24
      %s28 = sphi 0, %s25
      %s29 = sphi 0, %s26
      %s30 = sphi 0, %s27
      %s46 = sphi 0, %s48
      %s49 = sphi 0, %s46
      %s50 = sphi 0, %s49
      %s66 = sphi 0, %s50
      %s74 = sphi 0, %s76
      %s77 = sphi 0, %s74
      %s78 = sphi 0, %s77
      %s94 = sphi 0, %s78
      %s98 = sphi 0, %s98
      %s100 = sphi 0, %s98
      %s101 = sphi 0, %s100
      %s115 = sphi 0, %s101
      %s119 = sphi 0, %s119
      %s121 = sphi 0, %s119
      %s122 = sphi 0, %s121
      %s136 = sphi 0, %s122
      %s140 = sphi 0, %s140
      %s142 = sphi 0, %s140
      %s143 = sphi 0, %s142
      %s157 = sphi 0, %s143
      %s165 = sphi 0, %s167
      %s168 = sphi 0, %s165
      %s169 = sphi 0, %s168
      %s185 = sphi 0, %s169
      %s193 = sphi 0, %s195
      %s196 = sphi 0, %s193
      %s197 = sphi 0, %s196
      %s213 = sphi 0, %s197
    $region4: #{down_gto_v1_forward.5} parent=1 // loop_header_branch
      %18 = sbr.rel (%p16) target = $region8
    $region5: #{down_gto_v1_forward.5} parent=1 // loop_body
      %s20 = ssub.s32 %s15, 1
      %s21 = ssub.s32 %s15, 2
      %s31 = sadd.s32 1, %s24
      %p32 = scmp.ge.s32.totalorder %s31, 1
      %s33 = scalar_select %p32, 0, %s31
      %s34 = sadd.s32 1, %s23
      %s35 = scalar_select %p32, %s34, %s23
      %p36 = scmp.ge.s32.totalorder %s35, 1
      %s37 = scalar_select %p36, 0, %s35
      %s38 = sadd.s32 1, %s22
      %s39 = scalar_select %p36, %s38, %s22
      %p40 = scmp.ge.s32.totalorder %s39, 2
      %s41 = scalar_select %p40, 0, %s39
      %s42 = ssub.s32 %s22, %s41
      %s43 = ssub.s32 %s23, %s37
      %s44 = sor.u32 %s42, %s43
      %p45 = scmp.eq.s32.totalorder %s44, 0
      %s47 = sadd.s32 %s46, 1
      %s48 = scalar_select %p45, %s46, %s47
      %p51 = pneg %p45
      %p52 = scmp.eq.s32.totalorder %s15, 1
      %p53 = por %p51, %p52
      %p54 = scmp.ne.s32.totalorder %s46, %s49
      %p55 = scmp.eq.s32.totalorder %s15, 0
      %p56 = por %p54, %p55
      %p57 = scmp.ne.s32.totalorder %s46, %s49
      %p58 = scmp.eq.s32.totalorder %s20, 1
      %p59 = por %p57, %p58
      %p60 = scmp.ne.s32.totalorder %s49, %s50
      %p61 = scmp.eq.s32.totalorder %s20, 0
      %p62 = por %p60, %p61
      %p63 = scmp.ne.s32.totalorder %s49, %s50
      %p64 = scmp.eq.s32.totalorder %s21, 1
      %p65 = por %p63, %p64
      %p67 = scmp.ne.s32.totalorder %s50, %s66
      %p68 = scmp.eq.s32.totalorder %s21, 0
      %p69 = por %p67, %p68
      %s70 = ssub.s32 %s22, %s41
      %s71 = ssub.s32 %s24, %s33
      %s72 = sor.u32 %s70, %s71
      %p73 = scmp.eq.s32.totalorder %s72, 0
      %s75 = sadd.s32 %s74, 1
      %s76 = scalar_select %p73, %s74, %s75
      %p79 = pneg %p73
      %p80 = scmp.eq.s32.totalorder %s15, 1
      %p81 = por %p79, %p80
      %p82 = scmp.ne.s32.totalorder %s74, %s77
      %p83 = scmp.eq.s32.totalorder %s15, 0
      %p84 = por %p82, %p83
      %p85 = scmp.ne.s32.totalorder %s74, %s77
      %p86 = scmp.eq.s32.totalorder %s20, 1
      %p87 = por %p85, %p86
      %p88 = scmp.ne.s32.totalorder %s77, %s78
      %p89 = scmp.eq.s32.totalorder %s20, 0
      %p90 = por %p88, %p89
      %p91 = scmp.ne.s32.totalorder %s77, %s78
      %p92 = scmp.eq.s32.totalorder %s21, 1
      %p93 = por %p91, %p92
      %p95 = scmp.ne.s32.totalorder %s78, %s94
      %p96 = scmp.eq.s32.totalorder %s21, 0
      %p97 = por %p95, %p96
      %s99 = sadd.s32 %s98, 1
      %p102 = scmp.eq.s32.totalorder %s15, 1
      %p103 = scmp.ne.s32.totalorder %s98, %s100
      %p104 = scmp.eq.s32.totalorder %s15, 0
      %p105 = por %p103, %p104
      %p106 = scmp.ne.s32.totalorder %s98, %s100
      %p107 = scmp.eq.s32.totalorder %s20, 1
      %p108 = por %p106, %p107
      %p109 = scmp.ne.s32.totalorder %s100, %s101
      %p110 = scmp.eq.s32.totalorder %s20, 0
      %p111 = por %p109, %p110
      %p112 = scmp.ne.s32.totalorder %s100, %s101
      %p113 = scmp.eq.s32.totalorder %s21, 1
      %p114 = por %p112, %p113
      %p116 = scmp.ne.s32.totalorder %s101, %s115
      %p117 = scmp.eq.s32.totalorder %s21, 0
      %p118 = por %p116, %p117
      %s120 = sadd.s32 %s119, 1
      %p123 = scmp.eq.s32.totalorder %s15, 1
      %p124 = scmp.ne.s32.totalorder %s119, %s121
      %p125 = scmp.eq.s32.totalorder %s15, 0
      %p126 = por %p124, %p125
      %p127 = scmp.ne.s32.totalorder %s119, %s121
      %p128 = scmp.eq.s32.totalorder %s20, 1
      %p129 = por %p127, %p128
      %p130 = scmp.ne.s32.totalorder %s121, %s122
      %p131 = scmp.eq.s32.totalorder %s20, 0
      %p132 = por %p130, %p131
      %p133 = scmp.ne.s32.totalorder %s121, %s122
      %p134 = scmp.eq.s32.totalorder %s21, 1
      %p135 = por %p133, %p134
      %p137 = scmp.ne.s32.totalorder %s122, %s136
      %p138 = scmp.eq.s32.totalorder %s21, 0
      %p139 = por %p137, %p138
      %s141 = sadd.s32 %s140, 1
      %p144 = scmp.eq.s32.totalorder %s15, 1
      %p145 = scmp.ne.s32.totalorder %s140, %s142
      %p146 = scmp.eq.s32.totalorder %s15, 0
      %p147 = por %p145, %p146
      %p148 = scmp.ne.s32.totalorder %s140, %s142
      %p149 = scmp.eq.s32.totalorder %s20, 1
      %p150 = por %p148, %p149
      %p151 = scmp.ne.s32.totalorder %s142, %s143
      %p152 = scmp.eq.s32.totalorder %s20, 0
      %p153 = por %p151, %p152
      %p154 = scmp.ne.s32.totalorder %s142, %s143
      %p155 = scmp.eq.s32.totalorder %s21, 1
      %p156 = por %p154, %p155
      %p158 = scmp.ne.s32.totalorder %s143, %s157
      %p159 = scmp.eq.s32.totalorder %s21, 0
      %p160 = por %p158, %p159
      %s161 = ssub.s32 %s22, %s41
      %s162 = ssub.s32 %s23, %s37
      %s163 = sor.u32 %s161, %s162
      %p164 = scmp.eq.s32.totalorder %s163, 0
      %s166 = sadd.s32 %s165, 1
      %s167 = scalar_select %p164, %s165, %s166
      %p170 = pneg %p164
      %p171 = scmp.eq.s32.totalorder %s15, 1
      %p172 = por %p170, %p171
      %p173 = scmp.ne.s32.totalorder %s165, %s168
      %p174 = scmp.eq.s32.totalorder %s15, 0
      %p175 = por %p173, %p174
      %p176 = scmp.ne.s32.totalorder %s165, %s168
      %p177 = scmp.eq.s32.totalorder %s20, 1
      %p178 = por %p176, %p177
      %p179 = scmp.ne.s32.totalorder %s168, %s169
      %p180 = scmp.eq.s32.totalorder %s20, 0
      %p181 = por %p179, %p180
      %p182 = scmp.ne.s32.totalorder %s168, %s169
      %p183 = scmp.eq.s32.totalorder %s21, 1
      %p184 = por %p182, %p183
      %p186 = scmp.ne.s32.totalorder %s169, %s185
      %p187 = scmp.eq.s32.totalorder %s21, 0
      %p188 = por %p186, %p187
      %s189 = ssub.s32 %s22, %s41
      %s190 = ssub.s32 %s23, %s37
      %s191 = sor.u32 %s189, %s190
      %p192 = scmp.eq.s32.totalorder %s191, 0
      %s194 = sadd.s32 %s193, 1
      %s195 = scalar_select %p192, %s193, %s194
      %p198 = pneg %p192
      %p199 = scmp.eq.s32.totalorder %s15, 1
      %p200 = por %p198, %p199
      %p201 = scmp.ne.s32.totalorder %s193, %s196
      %p202 = scmp.eq.s32.totalorder %s15, 0
      %p203 = por %p201, %p202
      %p204 = scmp.ne.s32.totalorder %s193, %s196
      %p205 = scmp.eq.s32.totalorder %s20, 1
      %p206 = por %p204, %p205
      %p207 = scmp.ne.s32.totalorder %s196, %s197
      %p208 = scmp.eq.s32.totalorder %s20, 0
      %p209 = por %p207, %p208
      %p210 = scmp.ne.s32.totalorder %s196, %s197
      %p211 = scmp.eq.s32.totalorder %s21, 1
      %p212 = por %p210, %p211
      %p214 = scmp.ne.s32.totalorder %s197, %s213
      %p215 = scmp.eq.s32.totalorder %s21, 0
      %p216 = por %p214, %p215
      %p217 = scmp.le.s32.totalorder 1, %s15
      %p218 = scmp.lt.s32.totalorder %s15, 3
      %p219 = pnand %p217, %p218
      %p220 = pneg %p219
      // Predicated region
      $region9: #{down_gto_v1_forward.5} parent=5 // pred_check
        _
      $region10: #{down_gto_v1_forward.5} parent=5 // pred_check_branch
        %222 = sbr.rel (%p219) target = $region12
      $region11: #{down_gto_v1_forward.5} parent=5 // pred_region
        %s223 = ssub.s32 %s15, 1
        // Predicated region
        $region13: #{down_gto_v1_forward.5} parent=11 // pred_check
          %p224 = pneg %p111
        $region14: #{down_gto_v1_forward.5} parent=11 // pred_check_branch
          %226 = sbr.rel (%p224) target = $region16
        $region15: #{down_gto_v1_forward.5} parent=11 // pred_region
          _
        $region16: #{down_gto_v1_forward.5} parent=11 // pred_fallthru
          _
        // Predicated region
        $region17: #{down_gto_v1_forward.5} parent=11 // pred_check
          %p227 = pneg %p132
        $region18: #{down_gto_v1_forward.5} parent=11 // pred_check_branch
          %229 = sbr.rel (%p227) target = $region20
        $region19: #{down_gto_v1_forward.5} parent=11 // pred_region
          _
        $region20: #{down_gto_v1_forward.5} parent=11 // pred_fallthru
          _
        // Predicated region
        $region21: #{down_gto_v1_forward.5} parent=11 // pred_check
          %p230 = pneg %p153
        $region22: #{down_gto_v1_forward.5} parent=11 // pred_check_branch
          %232 = sbr.rel (%p230) target = $region24
        $region23: #{down_gto_v1_forward.5} parent=11 // pred_region
          _
        $region24: #{down_gto_v1_forward.5} parent=11 // pred_fallthru
          _
      $region12: #{down_gto_v1_forward.5} parent=5 // pred_fallthru
        _
      %p233 = scmp.lt.s32.totalorder %s15, 2
      // Predicated region
      $region25: #{down_gto_v1_forward.5} parent=5 // pred_check
        %p234 = pneg %p233
      $region26: #{down_gto_v1_forward.5} parent=5 // pred_check_branch
        %236 = sbr.rel (%p234) target = $region28
      $region27: #{down_gto_v1_forward.5} parent=5 // pred_region
        // Predicated region
        $region29: #{down_gto_v1_forward.5} parent=27 // pred_check
          %p237 = pneg %p56
        $region30: #{down_gto_v1_forward.5} parent=27 // pred_check_branch
          %239 = sbr.rel (%p237) target = $region32
        $region31: #{down_gto_v1_forward.5} parent=27 // pred_region
          %s240 = smul.u32 8, %s23
          %p241 = scmp.lt.s32.totalorder %s22, 1
          %s242 = scalar_select %p241, %s22, 1
          %p243 = scmp.lt.s32.totalorder %s240, 7
          %s244 = scalar_select %p243, %s240, 7
          %s245 = smul.addr %s242, 8
          %s246 = sadd.s32 %s244, %s245
          %s247 = smul.addr %s246, 4
          %s248 = scalar_lea.vmem %s0, %s247
          %s249 = smul.u32 8, %s23
        $region32: #{down_gto_v1_forward.5} parent=27 // pred_fallthru
          _
        // Predicated region
        $region33: #{down_gto_v1_forward.5} parent=27 // pred_check
          %p250 = pneg %p84
        $region34: #{down_gto_v1_forward.5} parent=27 // pred_check_branch
          %252 = sbr.rel (%p250) target = $region36
        $region35: #{down_gto_v1_forward.5} parent=27 // pred_region
          %s253 = smul.u32 32, %s24
          %p254 = scmp.lt.s32.totalorder %s22, 1
          %s255 = scalar_select %p254, %s22, 1
          %p256 = scmp.lt.s32.totalorder %s253, 31
          %s257 = scalar_select %p256, %s253, 31
          %s258 = smul.addr %s255, 32
          %s259 = sadd.s32 %s257, %s258
          %s260 = smul.addr %s259, 4
          %s261 = scalar_lea.vmem %s1, %s260
          %s262 = smul.u32 32, %s24
        $region36: #{down_gto_v1_forward.5} parent=27 // pred_fallthru
          _
        // Predicated region
        $region37: #{down_gto_v1_forward.5} parent=27 // pred_check
          %p263 = pneg %p175
        $region38: #{down_gto_v1_forward.5} parent=27 // pred_check_branch
          %265 = sbr.rel (%p263) target = $region40
        $region39: #{down_gto_v1_forward.5} parent=27 // pred_region
          %s266 = smul.u32 8, %s23
          %p267 = scmp.lt.s32.totalorder %s22, 1
          %s268 = scalar_select %p267, %s22, 1
          %p269 = scmp.lt.s32.totalorder %s266, 7
          %s270 = scalar_select %p269, %s266, 7
          %s271 = smul.addr %s268, 8
          %s272 = sadd.s32 %s270, %s271
          %s273 = smul.addr %s272, 8
          %s274 = scalar_lea.vmem %s5, %s273
          %s275 = smul.u32 8, %s23
        $region40: #{down_gto_v1_forward.5} parent=27 // pred_fallthru
          _
      $region28: #{down_gto_v1_forward.5} parent=5 // pred_fallthru
        _
      %p276 = scmp.le.s32.totalorder 1, %s15
      %p277 = scmp.lt.s32.totalorder %s15, 3
      %p278 = pnand %p276, %p277
      %p279 = pneg %p278
      // Predicated region
      $region41: #{down_gto_v1_forward.5} parent=5 // pred_check
        _
      $region42: #{down_gto_v1_forward.5} parent=5 // pred_check_branch
        %281 = sbr.rel (%p278) target = $region44
      $region43: #{down_gto_v1_forward.5} parent=5 // pred_region
        %s282 = ssub.s32 %s15, 1
        %s283 = smul.u32 8, %s26
        %p284 = scmp.lt.s32.totalorder %s25, 1
        %s285 = scalar_select %p284, %s25, 1
        %p286 = scmp.lt.s32.totalorder %s283, 7
        %s287 = scalar_select %p286, %s283, 7
        %s288 = smul.addr %s285, 8
        %s289 = sadd.s32 %s287, %s288
        %s290 = smul.addr %s289, 4
        %s291 = scalar_lea.vmem %s0, %s290
        %p292 = pneg %p62
        %p293 = pneg %p59
        %s294 = smul.u32 32, %s27
        %p295 = scmp.lt.s32.totalorder %s25, 1
        %s296 = scalar_select %p295, %s25, 1
        %p297 = scmp.lt.s32.totalorder %s294, 31
        %s298 = scalar_select %p297, %s294, 31
        %s299 = smul.addr %s296, 32
        %s300 = sadd.s32 %s298, %s299
        %s301 = smul.addr %s300, 4
        %s302 = scalar_lea.vmem %s1, %s301
        %p303 = pneg %p90
        %p304 = pneg %p87
        %p305 = pneg %p111
        %p306 = pneg %p108
        %p307 = pneg %p132
        %p308 = pneg %p129
        %p309 = pneg %p153
        %p310 = pneg %p150
        %s311 = smul.u32 8, %s26
        %p312 = scmp.lt.s32.totalorder %s25, 1
        %s313 = scalar_select %p312, %s25, 1
        %p314 = scmp.lt.s32.totalorder %s311, 7
        %s315 = scalar_select %p314, %s311, 7
        %s316 = smul.addr %s313, 8
        %s317 = sadd.s32 %s315, %s316
        %s318 = smul.addr %s317, 8
        %s319 = scalar_lea.vmem %s5, %s318
        %p320 = pneg %p181
        %p321 = pneg %p178
        %p322 = pneg %p209
        %p323 = pneg %p206
        %s324 = sand.u32 %s196, 1
        %s325 = scalar_lea.sflag [#allocation7], %s324
        %s326 = sand.u32 %s196, 1
        %s327 = smul.addr %s326, 64
        %s328 = scalar_lea.vmem [#allocation6], %s327
        %s329 = smul.u32 8, %s26
        %p330 = scmp.lt.s32.totalorder %s25, 1
        %s331 = scalar_select %p330, %s25, 1
        %p332 = scmp.lt.s32.totalorder %s329, 7
        %s333 = scalar_select %p332, %s329, 7
        %s334 = smul.addr %s331, 8
        %s335 = sadd.s32 %s333, %s334
        %s336 = smul.addr %s335, 4
        %s337 = scalar_lea.vmem %s0, %s336
        %s338 = smul.u32 8, %s26
        %s339 = smul.u32 32, %s27
        %p340 = scmp.lt.s32.totalorder %s25, 1
        %s341 = scalar_select %p340, %s25, 1
        %p342 = scmp.lt.s32.totalorder %s339, 31
        %s343 = scalar_select %p342, %s339, 31
        %s344 = smul.addr %s341, 32
        %s345 = sadd.s32 %s343, %s344
        %s346 = smul.addr %s345, 4
        %s347 = scalar_lea.vmem %s1, %s346
        %s348 = smul.u32 32, %s27
        %s349 = smul.u32 8, %s26
        %p350 = scmp.lt.s32.totalorder %s25, 1
        %s351 = scalar_select %p350, %s25, 1
        %p352 = scmp.lt.s32.totalorder %s349, 7
        %s353 = scalar_select %p352, %s349, 7
        %s354 = smul.addr %s351, 8
        %s355 = sadd.s32 %s353, %s354
        %s356 = smul.addr %s355, 8
        %s357 = scalar_lea.vmem %s5, %s356
        %s358 = smul.u32 8, %s26
        %s359 = smul.u32 8, %s26
        %p361 = scmp.eq.s32.totalorder %s27, 0
        // Predicated region
        $region45: #{down_gto_v1_forward.5} parent=43 // pred_check
          %p362 = pneg %p361
        $region46: #{down_gto_v1_forward.5} parent=43 // pred_check_branch
          %364 = sbr.rel (%p362) target = $region48
        $region47: #{down_gto_v1_forward.5} parent=43 // pred_region
          %v365 = vld [vmem:[%s337] sm:$0xf]
          %v366 = vld [vmem:[%s337 + $0x4] sm:$0xf]
          %v367 = vld [vmem:[%s337 + $0x8] sm:$0xf]
          %v368 = vld [vmem:[%s337 + $0xc] sm:$0xf]
          %v369 = vld [vmem:[%s337 + $0x10] sm:$0xf]
          %v370 = vld [vmem:[%s337 + $0x14] sm:$0xf]
          %v371 = vld [vmem:[%s337 + $0x18] sm:$0xf]
          %v372 = vld [vmem:[%s337 + $0x1c] sm:$0xf]
          %v373 = vld [vmem:[%s2] sm:$0xf]
          %v374 = vld [vmem:[%s2 + $0x4] sm:$0xf]
          %v383 = vunpack.c.l.b16 %v365
          %v384 = vunpack.c.l.b16 %v366
          %v385 = vunpack.c.l.b16 %v367
          %v386 = vunpack.c.l.b16 %v368
          %v387 = vunpack.c.l.b16 %v369
          %v388 = vunpack.c.l.b16 %v370
          %v389 = vunpack.c.l.b16 %v371
          %v390 = vunpack.c.l.b16 %v372
          %v391 = vpack.c.b16 %v384, %v383
          %v392 = vpack.c.b16 %v386, %v385
          %v393 = vpack.c.b16 %v388, %v387
          %v394 = vpack.c.b16 %v390, %v389
          %v397 = vunpack.c.l.b16 %v373
          %v398 = vunpack.c.l.b16 %v374
          %v399 = vpack.c.b16 %v398, %v397
          %vm401 = vcmask 130048
          %v403 = vsel %vm401, %v391, 0
          %v406 = vsel %vm401, %v392, 0
          %v409 = vsel %vm401, %v393, 0
          %v412 = vsel %vm401, %v394, 0
          %414 = vmatpush.bf16.msra.mxu0 0
          %415 = vmatpush.bf16.msra.mxu0 0
          %416 = vmatpush.bf16.msra.mxu0 0
          %417 = vmatpush.bf16.msra.mxu0 0
          %418 = vmatpush.bf16.msra.mxu0 0
          %419 = vmatpush.bf16.msra.mxu0 0
          %420 = vmatpush.bf16.msra.mxu0 0
          %421 = vmatpush.bf16.msra.mxu0 %v399
          %422 = vmatmul.bf16.gmra.mxu0 %v403
          %v423 = vpop.f32.mrf.mxu0
          %v424 = vadd.f32 0.0, %v423
          %v425 = vpop.f32.mrf.mxu0
          %v426 = vadd.f32 0.0, %v425
          %427 = vmatmul.bf16.gmra.mxu0 %v406
          %v428 = vpop.f32.mrf.mxu0
          %v429 = vadd.f32 0.0, %v428
          %v430 = vpop.f32.mrf.mxu0
          %v431 = vadd.f32 0.0, %v430
          %432 = vmatmul.bf16.gmra.mxu0 %v409
          %v433 = vpop.f32.mrf.mxu0
          %v434 = vadd.f32 0.0, %v433
          %v435 = vpop.f32.mrf.mxu0
          %v436 = vadd.f32 0.0, %v435
          %437 = vmatmul.bf16.gmra.mxu0 %v412
          %v438 = vpop.f32.mrf.mxu0
          %v439 = vadd.f32 0.0, %v438
          %v440 = vpop.f32.mrf.mxu0
          %v441 = vadd.f32 0.0, %v440
          %442 = vdwg.mxu0
          %v443 = vpack.c.bf16 %v424, %v424
          %v444 = vpack.c.bf16 %v426, %v426
          %v445 = vpack.c.bf16 %v429, %v429
          %v446 = vpack.c.bf16 %v431, %v431
          %v447 = vpack.c.bf16 %v434, %v434
          %v448 = vpack.c.bf16 %v436, %v436
          %v449 = vpack.c.bf16 %v439, %v439
          %v450 = vpack.c.bf16 %v441, %v441
          %vm451 = vcmask 60416
          %452 = vst.msk [vmem:[#allocation2] sm:$0xf] %vm451, %v443
          %453 = vst.msk [vmem:[#allocation2 + $0x4] sm:$0xf] %vm451, %v444
          %454 = vst.msk [vmem:[#allocation2 + $0x8] sm:$0xf] %vm451, %v445
          %455 = vst.msk [vmem:[#allocation2 + $0xc] sm:$0xf] %vm451, %v446
          %456 = vst.msk [vmem:[#allocation2 + $0x10] sm:$0xf] %vm451, %v447
          %457 = vst.msk [vmem:[#allocation2 + $0x14] sm:$0xf] %vm451, %v448
          %458 = vst.msk [vmem:[#allocation2 + $0x18] sm:$0xf] %vm451, %v449
          %459 = vst.msk [vmem:[#allocation2 + $0x1c] sm:$0xf] %vm451, %v450
          %vm460 = vcmask 7168
          %461 = vst.msk [vmem:[#allocation3] sm:$0xff] %vm460, -inf
          %462 = vst.msk [vmem:[#allocation3 + $0x8] sm:$0xff] %vm460, -inf
          %463 = vst.msk [vmem:[#allocation3 + $0x10] sm:$0xff] %vm460, -inf
          %464 = vst.msk [vmem:[#allocation3 + $0x18] sm:$0xff] %vm460, -inf
          %465 = vst.msk [vmem:[#allocation3 + $0x20] sm:$0xff] %vm460, -inf
          %466 = vst.msk [vmem:[#allocation3 + $0x28] sm:$0xff] %vm460, -inf
          %467 = vst.msk [vmem:[#allocation3 + $0x30] sm:$0xff] %vm460, -inf
          %468 = vst.msk [vmem:[#allocation3 + $0x38] sm:$0xff] %vm460, -inf
          %469 = vst.msk [vmem:[#allocation3 + $0x40] sm:$0xff] %vm460, -inf
          %470 = vst.msk [vmem:[#allocation3 + $0x48] sm:$0xff] %vm460, -inf
          %471 = vst.msk [vmem:[#allocation3 + $0x50] sm:$0xff] %vm460, -inf
          %472 = vst.msk [vmem:[#allocation3 + $0x58] sm:$0xff] %vm460, -inf
          %473 = vst.msk [vmem:[#allocation3 + $0x60] sm:$0xff] %vm460, -inf
          %474 = vst.msk [vmem:[#allocation3 + $0x68] sm:$0xff] %vm460, -inf
          %475 = vst.msk [vmem:[#allocation3 + $0x70] sm:$0xff] %vm460, -inf
          %476 = vst.msk [vmem:[#allocation3 + $0x78] sm:$0xff] %vm460, -inf
          %477 = vst.msk [vmem:[#allocation4] sm:$0xff] %vm460, 0.0
          %478 = vst.msk [vmem:[#allocation4 + $0x8] sm:$0xff] %vm460, 0.0
          %479 = vst.msk [vmem:[#allocation4 + $0x10] sm:$0xff] %vm460, 0.0
          %480 = vst.msk [vmem:[#allocation4 + $0x18] sm:$0xff] %vm460, 0.0
          %481 = vst.msk [vmem:[#allocation4 + $0x20] sm:$0xff] %vm460, 0.0
          %482 = vst.msk [vmem:[#allocation4 + $0x28] sm:$0xff] %vm460, 0.0
          %483 = vst.msk [vmem:[#allocation4 + $0x30] sm:$0xff] %vm460, 0.0
          %484 = vst.msk [vmem:[#allocation4 + $0x38] sm:$0xff] %vm460, 0.0
          %485 = vst.msk [vmem:[#allocation4 + $0x40] sm:$0xff] %vm460, 0.0
          %486 = vst.msk [vmem:[#allocation4 + $0x48] sm:$0xff] %vm460, 0.0
          %487 = vst.msk [vmem:[#allocation4 + $0x50] sm:$0xff] %vm460, 0.0
          %488 = vst.msk [vmem:[#allocation4 + $0x58] sm:$0xff] %vm460, 0.0
          %489 = vst.msk [vmem:[#allocation4 + $0x60] sm:$0xff] %vm460, 0.0
          %490 = vst.msk [vmem:[#allocation4 + $0x68] sm:$0xff] %vm460, 0.0
          %491 = vst.msk [vmem:[#allocation4 + $0x70] sm:$0xff] %vm460, 0.0
          %492 = vst.msk [vmem:[#allocation4 + $0x78] sm:$0xff] %vm460, 0.0
          %vm493 = vcmask 64512
          %494 = vst.msk [vmem:[#allocation5] sm:$0xff] %vm493, 0.0
          %495 = vst.msk [vmem:[#allocation5 + $0x8] sm:$0xff] %vm493, 0.0
          %496 = vst.msk [vmem:[#allocation5 + $0x10] sm:$0xff] %vm493, 0.0
          %497 = vst.msk [vmem:[#allocation5 + $0x18] sm:$0xff] %vm493, 0.0
          %498 = vst.msk [vmem:[#allocation5 + $0x20] sm:$0xff] %vm493, 0.0
          %499 = vst.msk [vmem:[#allocation5 + $0x28] sm:$0xff] %vm493, 0.0
          %500 = vst.msk [vmem:[#allocation5 + $0x30] sm:$0xff] %vm493, 0.0
          %501 = vst.msk [vmem:[#allocation5 + $0x38] sm:$0xff] %vm493, 0.0
        $region48: #{down_gto_v1_forward.5} parent=43 // pred_fallthru
          _
        %v502 = vld [vmem:[%s347] sm:$0xf]
        %v503 = vld [vmem:[%s347 + $0x4] sm:$0xf]
        %v504 = vld [vmem:[%s347 + $0x8] sm:$0xf]
        %v505 = vld [vmem:[%s347 + $0xc] sm:$0xf]
        %v506 = vld [vmem:[%s347 + $0x10] sm:$0xf]
        %v507 = vld [vmem:[%s347 + $0x14] sm:$0xf]
        %v508 = vld [vmem:[%s347 + $0x18] sm:$0xf]
        %v509 = vld [vmem:[%s347 + $0x1c] sm:$0xf]
        %v510 = vld [vmem:[%s347 + $0x20] sm:$0xf]
        %v511 = vld [vmem:[%s347 + $0x24] sm:$0xf]
        %v512 = vld [vmem:[%s347 + $0x28] sm:$0xf]
        %v513 = vld [vmem:[%s347 + $0x2c] sm:$0xf]
        %v514 = vld [vmem:[%s347 + $0x30] sm:$0xf]
        %v515 = vld [vmem:[%s347 + $0x34] sm:$0xf]
        %v516 = vld [vmem:[%s347 + $0x38] sm:$0xf]
        %v517 = vld [vmem:[%s347 + $0x3c] sm:$0xf]
        %v518 = vld [vmem:[%s347 + $0x40] sm:$0xf]
        %v519 = vld [vmem:[%s347 + $0x44] sm:$0xf]
        %v520 = vld [vmem:[%s347 + $0x48] sm:$0xf]
        %v521 = vld [vmem:[%s347 + $0x4c] sm:$0xf]
        %v522 = vld [vmem:[%s347 + $0x50] sm:$0xf]
        %v523 = vld [vmem:[%s347 + $0x54] sm:$0xf]
        %v524 = vld [vmem:[%s347 + $0x58] sm:$0xf]
        %v525 = vld [vmem:[%s347 + $0x5c] sm:$0xf]
        %v526 = vld [vmem:[%s347 + $0x60] sm:$0xf]
        %v527 = vld [vmem:[%s347 + $0x64] sm:$0xf]
        %v528 = vld [vmem:[%s347 + $0x68] sm:$0xf]
        %v529 = vld [vmem:[%s347 + $0x6c] sm:$0xf]
        %v530 = vld [vmem:[%s347 + $0x70] sm:$0xf]
        %v531 = vld [vmem:[%s347 + $0x74] sm:$0xf]
        %v532 = vld [vmem:[%s347 + $0x78] sm:$0xf]
        %v533 = vld [vmem:[%s347 + $0x7c] sm:$0xf]
        %v534 = vld [vmem:[%s3] sm:$0x3]
        %v567 = vunpack.c.l.b16 %v502
        %v568 = vunpack.c.l.b16 %v503
        %v569 = vunpack.c.l.b16 %v504
        %v570 = vunpack.c.l.b16 %v505
        %v571 = vunpack.c.l.b16 %v506
        %v572 = vunpack.c.l.b16 %v507
        %v573 = vunpack.c.l.b16 %v508
        %v574 = vunpack.c.l.b16 %v509
        %v575 = vunpack.c.l.b16 %v510
        %v576 = vunpack.c.l.b16 %v511
        %v577 = vunpack.c.l.b16 %v512
        %v578 = vunpack.c.l.b16 %v513
        %v579 = vunpack.c.l.b16 %v514
        %v580 = vunpack.c.l.b16 %v515
        %v581 = vunpack.c.l.b16 %v516
        %v582 = vunpack.c.l.b16 %v517
        %v583 = vunpack.c.l.b16 %v518
        %v584 = vunpack.c.l.b16 %v519
        %v585 = vunpack.c.l.b16 %v520
        %v586 = vunpack.c.l.b16 %v521
        %v587 = vunpack.c.l.b16 %v522
        %v588 = vunpack.c.l.b16 %v523
        %v589 = vunpack.c.l.b16 %v524
        %v590 = vunpack.c.l.b16 %v525
        %v591 = vunpack.c.l.b16 %v526
        %v592 = vunpack.c.l.b16 %v527
        %v593 = vunpack.c.l.b16 %v528
        %v594 = vunpack.c.l.b16 %v529
        %v595 = vunpack.c.l.b16 %v530
        %v596 = vunpack.c.l.b16 %v531
        %v597 = vunpack.c.l.b16 %v532
        %v598 = vunpack.c.l.b16 %v533
        %v599 = vpack.c.b16 %v568, %v567
        %v600 = vpack.c.b16 %v570, %v569
        %v601 = vpack.c.b16 %v572, %v571
        %v602 = vpack.c.b16 %v574, %v573
        %v603 = vpack.c.b16 %v576, %v575
        %v604 = vpack.c.b16 %v578, %v577
        %v605 = vpack.c.b16 %v580, %v579
        %v606 = vpack.c.b16 %v582, %v581
        %v607 = vpack.c.b16 %v584, %v583
        %v608 = vpack.c.b16 %v586, %v585
        %v609 = vpack.c.b16 %v588, %v587
        %v610 = vpack.c.b16 %v590, %v589
        %v611 = vpack.c.b16 %v592, %v591
        %v612 = vpack.c.b16 %v594, %v593
        %v613 = vpack.c.b16 %v596, %v595
        %v614 = vpack.c.b16 %v598, %v597
        %vm615 = vcmask 31744
        %v617 = vsel %vm615, %v599, 0
        %v620 = vsel %vm615, %v600, 0
        %v623 = vsel %vm615, %v601, 0
        %v626 = vsel %vm615, %v602, 0
        %v629 = vsel %vm615, %v603, 0
        %v632 = vsel %vm615, %v604, 0
        %v635 = vsel %vm615, %v605, 0
        %v638 = vsel %vm615, %v606, 0
        %v641 = vsel %vm615, %v607, 0
        %v644 = vsel %vm615, %v608, 0
        %v647 = vsel %vm615, %v609, 0
        %v650 = vsel %vm615, %v610, 0
        %v653 = vsel %vm615, %v611, 0
        %v656 = vsel %vm615, %v612, 0
        %v659 = vsel %vm615, %v613, 0
        %v662 = vsel %vm615, %v614, 0
        %vm664 = vcmask 1041408
        %v666 = vsel %vm664, %v534, 0
        %668 = vmatpush.bf16.msra.mxu0 0
        %669 = vmatpush.bf16.msra.mxu0 0
        %670 = vmatpush.bf16.msra.mxu0 0
        %671 = vmatpush.bf16.msra.mxu0 0
        %672 = vmatpush.bf16.msra.mxu0 0
        %673 = vmatpush.bf16.msra.mxu0 0
        %674 = vmatpush.bf16.msra.mxu0 0
        %675 = vmatpush.bf16.msra.mxu0 %v666
        %676 = vmatmul.bf16.gmra.mxu0 %v617
        %v677 = vpop.f32.mrf.mxu0
        %v678 = vadd.f32 0.0, %v677
        %v679 = vpop.f32.mrf.mxu0
        %v680 = vadd.f32 0.0, %v679
        %681 = vmatmul.bf16.gmra.mxu0 %v620
        %v682 = vpop.f32.mrf.mxu0
        %v683 = vadd.f32 0.0, %v682
        %v684 = vpop.f32.mrf.mxu0
        %v685 = vadd.f32 0.0, %v684
        %686 = vmatmul.bf16.gmra.mxu0 %v623
        %v687 = vpop.f32.mrf.mxu0
        %v688 = vadd.f32 0.0, %v687
        %v689 = vpop.f32.mrf.mxu0
        %v690 = vadd.f32 0.0, %v689
        %691 = vmatmul.bf16.gmra.mxu0 %v626
        %v692 = vpop.f32.mrf.mxu0
        %v693 = vadd.f32 0.0, %v692
        %v694 = vpop.f32.mrf.mxu0
        %v695 = vadd.f32 0.0, %v694
        %696 = vmatmul.bf16.gmra.mxu0 %v629
        %v697 = vpop.f32.mrf.mxu0
        %v698 = vadd.f32 0.0, %v697
        %v699 = vpop.f32.mrf.mxu0
        %v700 = vadd.f32 0.0, %v699
        %701 = vmatmul.bf16.gmra.mxu0 %v632
        %v702 = vpop.f32.mrf.mxu0
        %v703 = vadd.f32 0.0, %v702
        %v704 = vpop.f32.mrf.mxu0
        %v705 = vadd.f32 0.0, %v704
        %706 = vmatmul.bf16.gmra.mxu0 %v635
        %v707 = vpop.f32.mrf.mxu0
        %v708 = vadd.f32 0.0, %v707
        %v709 = vpop.f32.mrf.mxu0
        %v710 = vadd.f32 0.0, %v709
        %711 = vmatmul.bf16.gmra.mxu0 %v638
        %v712 = vpop.f32.mrf.mxu0
        %v713 = vadd.f32 0.0, %v712
        %v714 = vpop.f32.mrf.mxu0
        %v715 = vadd.f32 0.0, %v714
        %716 = vmatmul.bf16.gmra.mxu0 %v641
        %v717 = vpop.f32.mrf.mxu0
        %v718 = vadd.f32 0.0, %v717
        %v719 = vpop.f32.mrf.mxu0
        %v720 = vadd.f32 0.0, %v719
        %721 = vmatmul.bf16.gmra.mxu0 %v644
        %v722 = vpop.f32.mrf.mxu0
        %v723 = vadd.f32 0.0, %v722
        %v724 = vpop.f32.mrf.mxu0
        %v725 = vadd.f32 0.0, %v724
        %726 = vmatmul.bf16.gmra.mxu0 %v647
        %v727 = vpop.f32.mrf.mxu0
        %v728 = vadd.f32 0.0, %v727
        %v729 = vpop.f32.mrf.mxu0
        %v730 = vadd.f32 0.0, %v729
        %731 = vmatmul.bf16.gmra.mxu0 %v650
        %v732 = vpop.f32.mrf.mxu0
        %v733 = vadd.f32 0.0, %v732
        %v734 = vpop.f32.mrf.mxu0
        %v735 = vadd.f32 0.0, %v734
        %736 = vmatmul.bf16.gmra.mxu0 %v653
        %v737 = vpop.f32.mrf.mxu0
        %v738 = vadd.f32 0.0, %v737
        %v739 = vpop.f32.mrf.mxu0
        %v740 = vadd.f32 0.0, %v739
        %741 = vmatmul.bf16.gmra.mxu0 %v656
        %v742 = vpop.f32.mrf.mxu0
        %v743 = vadd.f32 0.0, %v742
        %v744 = vpop.f32.mrf.mxu0
        %v745 = vadd.f32 0.0, %v744
        %746 = vmatmul.bf16.gmra.mxu0 %v659
        %v747 = vpop.f32.mrf.mxu0
        %v748 = vadd.f32 0.0, %v747
        %v749 = vpop.f32.mrf.mxu0
        %v750 = vadd.f32 0.0, %v749
        %751 = vmatmul.bf16.gmra.mxu0 %v662
        %v752 = vpop.f32.mrf.mxu0
        %v753 = vadd.f32 0.0, %v752
        %v754 = vpop.f32.mrf.mxu0
        %v755 = vadd.f32 0.0, %v754
        %756 = vdwg.mxu0
        %v757 = vpack.c.bf16 %v678, %v678
        %v758 = vpack.c.bf16 %v680, %v680
        %v759 = vpack.c.bf16 %v683, %v683
        %v760 = vpack.c.bf16 %v685, %v685
        %v761 = vpack.c.bf16 %v688, %v688
        %v762 = vpack.c.bf16 %v690, %v690
        %v763 = vpack.c.bf16 %v693, %v693
        %v764 = vpack.c.bf16 %v695, %v695
        %v765 = vpack.c.bf16 %v698, %v698
        %v766 = vpack.c.bf16 %v700, %v700
        %v767 = vpack.c.bf16 %v703, %v703
        %v768 = vpack.c.bf16 %v705, %v705
        %v769 = vpack.c.bf16 %v708, %v708
        %v770 = vpack.c.bf16 %v710, %v710
        %v771 = vpack.c.bf16 %v713, %v713
        %v772 = vpack.c.bf16 %v715, %v715
        %v773 = vpack.c.bf16 %v718, %v718
        %v774 = vpack.c.bf16 %v720, %v720
        %v775 = vpack.c.bf16 %v723, %v723
        %v776 = vpack.c.bf16 %v725, %v725
        %v777 = vpack.c.bf16 %v728, %v728
        %v778 = vpack.c.bf16 %v730, %v730
        %v779 = vpack.c.bf16 %v733, %v733
        %v780 = vpack.c.bf16 %v735, %v735
        %v781 = vpack.c.bf16 %v738, %v738
        %v782 = vpack.c.bf16 %v740, %v740
        %v783 = vpack.c.bf16 %v743, %v743
        %v784 = vpack.c.bf16 %v745, %v745
        %v785 = vpack.c.bf16 %v748, %v748
        %v786 = vpack.c.bf16 %v750, %v750
        %v787 = vpack.c.bf16 %v753, %v753
        %v788 = vpack.c.bf16 %v755, %v755
        %v789 = vld [vmem:[#allocation2] sm:$0xf]
        %v790 = vld [vmem:[#allocation2 + $0x4] sm:$0xf]
        %v791 = vld [vmem:[#allocation2 + $0x8] sm:$0xf]
        %v792 = vld [vmem:[#allocation2 + $0xc] sm:$0xf]
        %v793 = vld [vmem:[#allocation2 + $0x10] sm:$0xf]
        %v794 = vld [vmem:[#allocation2 + $0x14] sm:$0xf]
        %v795 = vld [vmem:[#allocation2 + $0x18] sm:$0xf]
        %v796 = vld [vmem:[#allocation2 + $0x1c] sm:$0xf]
        %v805 = vunpack.c.l.b16 %v789
        %v806 = vunpack.c.l.b16 %v790
        %v807 = vunpack.c.l.b16 %v791
        %v808 = vunpack.c.l.b16 %v792
        %v809 = vunpack.c.l.b16 %v793
        %v810 = vunpack.c.l.b16 %v794
        %v811 = vunpack.c.l.b16 %v795
        %v812 = vunpack.c.l.b16 %v796
        %v813 = vpack.c.b16 %v806, %v805
        %v814 = vpack.c.b16 %v808, %v807
        %v815 = vpack.c.b16 %v810, %v809
        %v816 = vpack.c.b16 %v812, %v811
        %v849 = vunpack.c.l.b16 %v757
        %v850 = vunpack.c.l.b16 %v758
        %v851 = vunpack.c.l.b16 %v759
        %v852 = vunpack.c.l.b16 %v760
        %v853 = vunpack.c.l.b16 %v761
        %v854 = vunpack.c.l.b16 %v762
        %v855 = vunpack.c.l.b16 %v763
        %v856 = vunpack.c.l.b16 %v764
        %v857 = vunpack.c.l.b16 %v765
        %v858 = vunpack.c.l.b16 %v766
        %v859 = vunpack.c.l.b16 %v767
        %v860 = vunpack.c.l.b16 %v768
        %v861 = vunpack.c.l.b16 %v769
        %v862 = vunpack.c.l.b16 %v770
        %v863 = vunpack.c.l.b16 %v771
        %v864 = vunpack.c.l.b16 %v772
        %v865 = vunpack.c.l.b16 %v773
        %v866 = vunpack.c.l.b16 %v774
        %v867 = vunpack.c.l.b16 %v775
        %v868 = vunpack.c.l.b16 %v776
        %v869 = vunpack.c.l.b16 %v777
        %v870 = vunpack.c.l.b16 %v778
        %v871 = vunpack.c.l.b16 %v779
        %v872 = vunpack.c.l.b16 %v780
        %v873 = vunpack.c.l.b16 %v781
        %v874 = vunpack.c.l.b16 %v782
        %v875 = vunpack.c.l.b16 %v783
        %v876 = vunpack.c.l.b16 %v784
        %v877 = vunpack.c.l.b16 %v785
        %v878 = vunpack.c.l.b16 %v786
        %v879 = vunpack.c.l.b16 %v787
        %v880 = vunpack.c.l.b16 %v788
        %v881 = vpack.c.b16 %v850, %v849
        %v882 = vpack.c.b16 %v852, %v851
        %v883 = vpack.c.b16 %v854, %v853
        %v884 = vpack.c.b16 %v856, %v855
        %v885 = vpack.c.b16 %v858, %v857
        %v886 = vpack.c.b16 %v860, %v859
        %v887 = vpack.c.b16 %v862, %v861
        %v888 = vpack.c.b16 %v864, %v863
        %v889 = vpack.c.b16 %v866, %v865
        %v890 = vpack.c.b16 %v868, %v867
        %v891 = vpack.c.b16 %v870, %v869
        %v892 = vpack.c.b16 %v872, %v871
        %v893 = vpack.c.b16 %v874, %v873
        %v894 = vpack.c.b16 %v876, %v875
        %v895 = vpack.c.b16 %v878, %v877
        %v896 = vpack.c.b16 %v880, %v879
        %v898 = vsel %vm615, %v813, 0
        %v901 = vsel %vm615, %v814, 0
        %v904 = vsel %vm615, %v815, 0
        %v907 = vsel %vm615, %v816, 0
        %v910 = vsel %vm615, %v881, 0
        %v913 = vsel %vm615, %v882, 0
        %v916 = vsel %vm615, %v883, 0
        %v919 = vsel %vm615, %v884, 0
        %v922 = vsel %vm615, %v885, 0
        %v925 = vsel %vm615, %v886, 0
        %v928 = vsel %vm615, %v887, 0
        %v931 = vsel %vm615, %v888, 0
        %v934 = vsel %vm615, %v889, 0
        %v937 = vsel %vm615, %v890, 0
        %v940 = vsel %vm615, %v891, 0
        %v943 = vsel %vm615, %v892, 0
        %v946 = vsel %vm615, %v893, 0
        %v949 = vsel %vm615, %v894, 0
        %v952 = vsel %vm615, %v895, 0
        %v955 = vsel %vm615, %v896, 0
        %957 = vmatpush.bf16.xpose.msra.mxu0 %v931
        %958 = vmatpush.bf16.xpose.msra.mxu0 %v928
        %959 = vmatpush.bf16.xpose.msra.mxu0 %v925
        %960 = vmatpush.bf16.xpose.msra.mxu0 %v922
        %961 = vmatpush.bf16.xpose.msra.mxu0 %v919
        %962 = vmatpush.bf16.xpose.msra.mxu0 %v916
        %963 = vmatpush.bf16.xpose.msra.mxu0 %v913
        %964 = vmatpush.bf16.xpose.msra.mxu0 %v910
        %965 = vmatmul.bf16.gmra.mxu0 %v898
        %v966 = vpop.f32.mrf.mxu0
        %v967 = vadd.f32 0.0, %v966
        %v968 = vpop.f32.mrf.mxu0
        %v969 = vadd.f32 0.0, %v968
        %970 = vmatmul.bf16.gmra.mxu0 %v901
        %v971 = vpop.f32.mrf.mxu0
        %v972 = vadd.f32 0.0, %v971
        %v973 = vpop.f32.mrf.mxu0
        %v974 = vadd.f32 0.0, %v973
        %975 = vmatmul.bf16.gmra.mxu0 %v904
        %v976 = vpop.f32.mrf.mxu0
        %v977 = vadd.f32 0.0, %v976
        %v978 = vpop.f32.mrf.mxu0
        %v979 = vadd.f32 0.0, %v978
        %980 = vmatmul.bf16.gmra.mxu0 %v907
        %v981 = vpop.f32.mrf.mxu0
        %v982 = vadd.f32 0.0, %v981
        %v983 = vpop.f32.mrf.mxu0
        %v984 = vadd.f32 0.0, %v983
        %985 = vdwg.mxu0
        %986 = vmatpush.bf16.xpose.msra.mxu0 %v955
        %987 = vmatpush.bf16.xpose.msra.mxu0 %v952
        %988 = vmatpush.bf16.xpose.msra.mxu0 %v949
        %989 = vmatpush.bf16.xpose.msra.mxu0 %v946
        %990 = vmatpush.bf16.xpose.msra.mxu0 %v943
        %991 = vmatpush.bf16.xpose.msra.mxu0 %v940
        %992 = vmatpush.bf16.xpose.msra.mxu0 %v937
        %993 = vmatpush.bf16.xpose.msra.mxu0 %v934
        %994 = vmatmul.bf16.gmra.mxu0 %v898
        %v995 = vpop.f32.mrf.mxu0
        %v996 = vadd.f32 0.0, %v995
        %v997 = vpop.f32.mrf.mxu0
        %v998 = vadd.f32 0.0, %v997
        %999 = vmatmul.bf16.gmra.mxu0 %v901
        %v1000 = vpop.f32.mrf.mxu0
        %v1001 = vadd.f32 0.0, %v1000
        %v1002 = vpop.f32.mrf.mxu0
        %v1003 = vadd.f32 0.0, %v1002
        %1004 = vmatmul.bf16.gmra.mxu0 %v904
        %v1005 = vpop.f32.mrf.mxu0
        %v1006 = vadd.f32 0.0, %v1005
        %v1007 = vpop.f32.mrf.mxu0
        %v1008 = vadd.f32 0.0, %v1007
        %1009 = vmatmul.bf16.gmra.mxu0 %v907
        %v1010 = vpop.f32.mrf.mxu0
        %v1011 = vadd.f32 0.0, %v1010
        %v1012 = vpop.f32.mrf.mxu0
        %v1013 = vadd.f32 0.0, %v1012
        %1014 = vdwg.mxu0
        %v1015 = vld [vmem:[#allocation3] sm:$0xff]
        %v1016 = vld [vmem:[#allocation3 + $0x8] sm:$0xff]
        %v1017 = vld [vmem:[#allocation3 + $0x10] sm:$0xff]
        %v1018 = vld [vmem:[#allocation3 + $0x18] sm:$0xff]
        %v1019 = vld [vmem:[#allocation3 + $0x20] sm:$0xff]
        %v1020 = vld [vmem:[#allocation3 + $0x28] sm:$0xff]
        %v1021 = vld [vmem:[#allocation3 + $0x30] sm:$0xff]
        %v1022 = vld [vmem:[#allocation3 + $0x38] sm:$0xff]
        %v1023 = vmax.f32 %v967, %v996
        %1024 = vmax.xlane.f32.xlu0 %v1023
        %v1025 = vpop.xlane.xlu0 %1024
        %v1026 = vmax.f32 %v969, %v998
        %1027 = vmax.xlane.f32.xlu0 %v1026
        %v1028 = vpop.xlane.xlu0 %1027
        %v1029 = vmax.f32 %v972, %v1001
        %1030 = vmax.xlane.f32.xlu0 %v1029
        %v1031 = vpop.xlane.xlu0 %1030
        %v1032 = vmax.f32 %v974, %v1003
        %1033 = vmax.xlane.f32.xlu0 %v1032
        %v1034 = vpop.xlane.xlu0 %1033
        %v1035 = vmax.f32 %v977, %v1006
        %1036 = vmax.xlane.f32.xlu0 %v1035
        %v1037 = vpop.xlane.xlu0 %1036
        %v1038 = vmax.f32 %v979, %v1008
        %1039 = vmax.xlane.f32.xlu0 %v1038
        %v1040 = vpop.xlane.xlu0 %1039
        %v1041 = vmax.f32 %v982, %v1011
        %1042 = vmax.xlane.f32.xlu0 %v1041
        %v1043 = vpop.xlane.xlu0 %1042
        %v1044 = vmax.f32 %v984, %v1013
        %1045 = vmax.xlane.f32.xlu0 %v1044
        %v1046 = vpop.xlane.xlu0 %1045
        %v1047 = vmax.f32 %v1015, %v1025
        %v1048 = vmax.f32 %v1016, %v1028
        %v1049 = vmax.f32 %v1017, %v1031
        %v1050 = vmax.f32 %v1018, %v1034
        %v1051 = vmax.f32 %v1019, %v1037
        %v1052 = vmax.f32 %v1020, %v1040
        %v1053 = vmax.f32 %v1021, %v1043
        %v1054 = vmax.f32 %v1022, %v1046
        %v1055 = vsub.f32 %v1015, %v1047
        %v1056 = vsub.f32 %v1016, %v1048
        %v1057 = vsub.f32 %v1017, %v1049
        %v1058 = vsub.f32 %v1018, %v1050
        %v1059 = vsub.f32 %v1019, %v1051
        %v1060 = vsub.f32 %v1020, %v1052
        %v1061 = vsub.f32 %v1021, %v1053
        %v1062 = vsub.f32 %v1022, %v1054
        %v1063 = vmul.f32 %v1055, 1.442695
        %v1064 = vpow.pop %v1063
        %v1065 = vmul.f32 %v1056, 1.442695
        %v1066 = vpow.pop %v1065
        %v1067 = vmul.f32 %v1057, 1.442695
        %v1068 = vpow.pop %v1067
        %v1069 = vmul.f32 %v1058, 1.442695
        %v1070 = vpow.pop %v1069
        %v1071 = vmul.f32 %v1059, 1.442695
        %v1072 = vpow.pop %v1071
        %v1073 = vmul.f32 %v1060, 1.442695
        %v1074 = vpow.pop %v1073
        %v1075 = vmul.f32 %v1061, 1.442695
        %v1076 = vpow.pop %v1075
        %v1077 = vmul.f32 %v1062, 1.442695
        %v1078 = vpow.pop %v1077
        %1080 = vset.pattern.permute.xlu0 0
        %1081 = vperm.xlu0 %1080, %v1047
        %v1082 = vpop.permute.xlu0 %1081
        %1085 = vset.pattern.permute.xlu0 0
        %1086 = vperm.xlu0 %1085, %v1048
        %v1087 = vpop.permute.xlu0 %1086
        %1090 = vset.pattern.permute.xlu0 0
        %1091 = vperm.xlu0 %1090, %v1049
        %v1092 = vpop.permute.xlu0 %1091
        %1095 = vset.pattern.permute.xlu0 0
        %1096 = vperm.xlu0 %1095, %v1050
        %v1097 = vpop.permute.xlu0 %1096
        %1100 = vset.pattern.permute.xlu0 0
        %1101 = vperm.xlu0 %1100, %v1051
        %v1102 = vpop.permute.xlu0 %1101
        %1105 = vset.pattern.permute.xlu0 0
        %1106 = vperm.xlu0 %1105, %v1052
        %v1107 = vpop.permute.xlu0 %1106
        %1110 = vset.pattern.permute.xlu0 0
        %1111 = vperm.xlu0 %1110, %v1053
        %v1112 = vpop.permute.xlu0 %1111
        %1115 = vset.pattern.permute.xlu0 0
        %1116 = vperm.xlu0 %1115, %v1054
        %v1117 = vpop.permute.xlu0 %1116
        %v1119 = vsub.f32 %v967, %v1082
        %v1120 = vsub.f32 %v996, %v1082
        %v1121 = vsub.f32 %v969, %v1087
        %v1122 = vsub.f32 %v998, %v1087
        %v1123 = vsub.f32 %v972, %v1092
        %v1124 = vsub.f32 %v1001, %v1092
        %v1125 = vsub.f32 %v974, %v1097
        %v1126 = vsub.f32 %v1003, %v1097
        %v1127 = vsub.f32 %v977, %v1102
        %v1128 = vsub.f32 %v1006, %v1102
        %v1129 = vsub.f32 %v979, %v1107
        %v1130 = vsub.f32 %v1008, %v1107
        %v1131 = vsub.f32 %v982, %v1112
        %v1132 = vsub.f32 %v1011, %v1112
        %v1133 = vsub.f32 %v984, %v1117
        %v1134 = vsub.f32 %v1013, %v1117
        %v1135 = vmul.f32 %v1119, 1.442695
        %v1136 = vpow.pop %v1135
        %v1137 = vmul.f32 %v1120, 1.442695
        %v1138 = vpow.pop %v1137
        %v1139 = vmul.f32 %v1121, 1.442695
        %v1140 = vpow.pop %v1139
        %v1141 = vmul.f32 %v1122, 1.442695
        %v1142 = vpow.pop %v1141
        %v1143 = vmul.f32 %v1123, 1.442695
        %v1144 = vpow.pop %v1143
        %v1145 = vmul.f32 %v1124, 1.442695
        %v1146 = vpow.pop %v1145
        %v1147 = vmul.f32 %v1125, 1.442695
        %v1148 = vpow.pop %v1147
        %v1149 = vmul.f32 %v1126, 1.442695
        %v1150 = vpow.pop %v1149
        %v1151 = vmul.f32 %v1127, 1.442695
        %v1152 = vpow.pop %v1151
        %v1153 = vmul.f32 %v1128, 1.442695
        %v1154 = vpow.pop %v1153
        %v1155 = vmul.f32 %v1129, 1.442695
        %v1156 = vpow.pop %v1155
        %v1157 = vmul.f32 %v1130, 1.442695
        %v1158 = vpow.pop %v1157
        %v1159 = vmul.f32 %v1131, 1.442695
        %v1160 = vpow.pop %v1159
        %v1161 = vmul.f32 %v1132, 1.442695
        %v1162 = vpow.pop %v1161
        %v1163 = vmul.f32 %v1133, 1.442695
        %v1164 = vpow.pop %v1163
        %v1165 = vmul.f32 %v1134, 1.442695
        %v1166 = vpow.pop %v1165
        %v1167 = vld [vmem:[#allocation4] sm:$0xff]
        %v1168 = vld [vmem:[#allocation4 + $0x8] sm:$0xff]
        %v1169 = vld [vmem:[#allocation4 + $0x10] sm:$0xff]
        %v1170 = vld [vmem:[#allocation4 + $0x18] sm:$0xff]
        %v1171 = vld [vmem:[#allocation4 + $0x20] sm:$0xff]
        %v1172 = vld [vmem:[#allocation4 + $0x28] sm:$0xff]
        %v1173 = vld [vmem:[#allocation4 + $0x30] sm:$0xff]
        %v1174 = vld [vmem:[#allocation4 + $0x38] sm:$0xff]
        %v1175 = vmul.f32 %v1064, %v1167
        %v1176 = vmul.f32 %v1066, %v1168
        %v1177 = vmul.f32 %v1068, %v1169
        %v1178 = vmul.f32 %v1070, %v1170
        %v1179 = vmul.f32 %v1072, %v1171
        %v1180 = vmul.f32 %v1074, %v1172
        %v1181 = vmul.f32 %v1076, %v1173
        %v1182 = vmul.f32 %v1078, %v1174
        %v1183 = vadd.f32 %v1136, %v1138
        %1184 = vadd.xlane.f32.xlu0 %v1183
        %v1185 = vpop.xlane.xlu0 %1184
        %v1186 = vadd.f32 %v1140, %v1142
        %1187 = vadd.xlane.f32.xlu0 %v1186
        %v1188 = vpop.xlane.xlu0 %1187
        %v1189 = vadd.f32 %v1144, %v1146
        %1190 = vadd.xlane.f32.xlu0 %v1189
        %v1191 = vpop.xlane.xlu0 %1190
        %v1192 = vadd.f32 %v1148, %v1150
        %1193 = vadd.xlane.f32.xlu0 %v1192
        %v1194 = vpop.xlane.xlu0 %1193
        %v1195 = vadd.f32 %v1152, %v1154
        %1196 = vadd.xlane.f32.xlu0 %v1195
        %v1197 = vpop.xlane.xlu0 %1196
        %v1198 = vadd.f32 %v1156, %v1158
        %1199 = vadd.xlane.f32.xlu0 %v1198
        %v1200 = vpop.xlane.xlu0 %1199
        %v1201 = vadd.f32 %v1160, %v1162
        %1202 = vadd.xlane.f32.xlu0 %v1201
        %v1203 = vpop.xlane.xlu0 %1202
        %v1204 = vadd.f32 %v1164, %v1166
        %1205 = vadd.xlane.f32.xlu0 %v1204
        %v1206 = vpop.xlane.xlu0 %1205
        %v1207 = vadd.f32 %v1175, %v1185
        %v1208 = vadd.f32 %v1176, %v1188
        %v1209 = vadd.f32 %v1177, %v1191
        %v1210 = vadd.f32 %v1178, %v1194
        %v1211 = vadd.f32 %v1179, %v1197
        %v1212 = vadd.f32 %v1180, %v1200
        %v1213 = vadd.f32 %v1181, %v1203
        %v1214 = vadd.f32 %v1182, %v1206
        %vm1215 = vcmask 7168
        %1216 = vst.msk [vmem:[#allocation4] sm:$0xff] %vm1215, %v1207
        %1217 = vst.msk [vmem:[#allocation4 + $0x8] sm:$0xff] %vm1215, %v1208
        %1218 = vst.msk [vmem:[#allocation4 + $0x10] sm:$0xff] %vm1215, %v1209
        %1219 = vst.msk [vmem:[#allocation4 + $0x18] sm:$0xff] %vm1215, %v1210
        %1220 = vst.msk [vmem:[#allocation4 + $0x20] sm:$0xff] %vm1215, %v1211
        %1221 = vst.msk [vmem:[#allocation4 + $0x28] sm:$0xff] %vm1215, %v1212
        %1222 = vst.msk [vmem:[#allocation4 + $0x30] sm:$0xff] %vm1215, %v1213
        %1223 = vst.msk [vmem:[#allocation4 + $0x38] sm:$0xff] %vm1215, %v1214
        %v1224 = vld [vmem:[#allocation5] sm:$0xff]
        %v1225 = vld [vmem:[#allocation5 + $0x8] sm:$0xff]
        %v1226 = vld [vmem:[#allocation5 + $0x10] sm:$0xff]
        %v1227 = vld [vmem:[#allocation5 + $0x18] sm:$0xff]
        %v1228 = vld [vmem:[#allocation5 + $0x20] sm:$0xff]
        %v1229 = vld [vmem:[#allocation5 + $0x28] sm:$0xff]
        %v1230 = vld [vmem:[#allocation5 + $0x30] sm:$0xff]
        %v1231 = vld [vmem:[#allocation5 + $0x38] sm:$0xff]
        %1233 = vset.pattern.permute.xlu0 0
        %1234 = vperm.xlu0 %1233, %v1064
        %v1235 = vpop.permute.xlu0 %1234
        %1238 = vset.pattern.permute.xlu0 0
        %1239 = vperm.xlu0 %1238, %v1066
        %v1240 = vpop.permute.xlu0 %1239
        %1243 = vset.pattern.permute.xlu0 0
        %1244 = vperm.xlu0 %1243, %v1068
        %v1245 = vpop.permute.xlu0 %1244
        %1248 = vset.pattern.permute.xlu0 0
        %1249 = vperm.xlu0 %1248, %v1070
        %v1250 = vpop.permute.xlu0 %1249
        %1253 = vset.pattern.permute.xlu0 0
        %1254 = vperm.xlu0 %1253, %v1072
        %v1255 = vpop.permute.xlu0 %1254
        %1258 = vset.pattern.permute.xlu0 0
        %1259 = vperm.xlu0 %1258, %v1074
        %v1260 = vpop.permute.xlu0 %1259
        %1263 = vset.pattern.permute.xlu0 0
        %1264 = vperm.xlu0 %1263, %v1076
        %v1265 = vpop.permute.xlu0 %1264
        %1268 = vset.pattern.permute.xlu0 0
        %1269 = vperm.xlu0 %1268, %v1078
        %v1270 = vpop.permute.xlu0 %1269
        %v1272 = vmul.f32 %v1235, %v1224
        %v1273 = vmul.f32 %v1240, %v1225
        %v1274 = vmul.f32 %v1245, %v1226
        %v1275 = vmul.f32 %v1250, %v1227
        %v1276 = vmul.f32 %v1255, %v1228
        %v1277 = vmul.f32 %v1260, %v1229
        %v1278 = vmul.f32 %v1265, %v1230
        %v1279 = vmul.f32 %v1270, %v1231
        %v1280 = vpack.c.bf16 %v1140, %v1136
        %v1281 = vpack.c.bf16 %v1142, %v1138
        %v1282 = vpack.c.bf16 %v1148, %v1144
        %v1283 = vpack.c.bf16 %v1150, %v1146
        %v1284 = vpack.c.bf16 %v1156, %v1152
        %v1285 = vpack.c.bf16 %v1158, %v1154
        %v1286 = vpack.c.bf16 %v1164, %v1160
        %v1287 = vpack.c.bf16 %v1166, %v1162
        %1288 = vrot.lane.b32.xlu0 %v881, 120
        %v1289 = vpop.permute.xlu0 %1288
        %1290 = vrot.lane.b32.xlu0 %v882, 120
        %v1291 = vpop.permute.xlu0 %1290
        %1292 = vrot.lane.b32.xlu0 %v883, 120
        %v1293 = vpop.permute.xlu0 %1292
        %1294 = vrot.lane.b32.xlu0 %v884, 120
        %v1295 = vpop.permute.xlu0 %1294
        %1296 = vrot.lane.b32.xlu0 %v885, 120
        %v1297 = vpop.permute.xlu0 %1296
        %1298 = vrot.lane.b32.xlu0 %v886, 120
        %v1299 = vpop.permute.xlu0 %1298
        %1300 = vrot.lane.b32.xlu0 %v887, 120
        %v1301 = vpop.permute.xlu0 %1300
        %1302 = vrot.lane.b32.xlu0 %v888, 120
        %v1303 = vpop.permute.xlu0 %1302
        %1304 = vrot.lane.b32.xlu0 %v889, 120
        %v1305 = vpop.permute.xlu0 %1304
        %1306 = vrot.lane.b32.xlu0 %v890, 120
        %v1307 = vpop.permute.xlu0 %1306
        %1308 = vrot.lane.b32.xlu0 %v891, 120
        %v1309 = vpop.permute.xlu0 %1308
        %1310 = vrot.lane.b32.xlu0 %v892, 120
        %v1311 = vpop.permute.xlu0 %1310
        %1312 = vrot.lane.b32.xlu0 %v893, 120
        %v1313 = vpop.permute.xlu0 %1312
        %1314 = vrot.lane.b32.xlu0 %v894, 120
        %v1315 = vpop.permute.xlu0 %1314
        %1316 = vrot.lane.b32.xlu0 %v895, 120
        %v1317 = vpop.permute.xlu0 %1316
        %1318 = vrot.lane.b32.xlu0 %v896, 120
        %v1319 = vpop.permute.xlu0 %1318
        %1336 = vmatpush.bf16.msra.mxu0 %v1303
        %1337 = vmatpush.bf16.msra.mxu0 %v1301
        %1338 = vmatpush.bf16.msra.mxu0 %v1299
        %1339 = vmatpush.bf16.msra.mxu0 %v1297
        %1340 = vmatpush.bf16.msra.mxu0 %v1295
        %1341 = vmatpush.bf16.msra.mxu0 %v1293
        %1342 = vmatpush.bf16.msra.mxu0 %v1291
        %1343 = vmatpush.bf16.msra.mxu0 %v1289
        %1344 = vmatmul.bf16.gmra.mxu0 %v1280
        %v1345 = vpop.f32.mrf.mxu0
        %v1346 = vadd.f32 0.0, %v1345
        %v1347 = vpop.f32.mrf.mxu0
        %v1348 = vadd.f32 0.0, %v1347
        %1349 = vmatmul.bf16.gmra.mxu0 %v1282
        %v1350 = vpop.f32.mrf.mxu0
        %v1351 = vadd.f32 0.0, %v1350
        %v1352 = vpop.f32.mrf.mxu0
        %v1353 = vadd.f32 0.0, %v1352
        %1354 = vmatmul.bf16.gmra.mxu0 %v1284
        %v1355 = vpop.f32.mrf.mxu0
        %v1356 = vadd.f32 0.0, %v1355
        %v1357 = vpop.f32.mrf.mxu0
        %v1358 = vadd.f32 0.0, %v1357
        %1359 = vmatmul.bf16.gmra.mxu0 %v1286
        %v1360 = vpop.f32.mrf.mxu0
        %v1361 = vadd.f32 0.0, %v1360
        %v1362 = vpop.f32.mrf.mxu0
        %v1363 = vadd.f32 0.0, %v1362
        %1364 = vdwg.mxu0
        %1365 = vmatpush.bf16.msra.mxu0 %v1319
        %1366 = vmatpush.bf16.msra.mxu0 %v1317
        %1367 = vmatpush.bf16.msra.mxu0 %v1315
        %1368 = vmatpush.bf16.msra.mxu0 %v1313
        %1369 = vmatpush.bf16.msra.mxu0 %v1311
        %1370 = vmatpush.bf16.msra.mxu0 %v1309
        %1371 = vmatpush.bf16.msra.mxu0 %v1307
        %1372 = vmatpush.bf16.msra.mxu0 %v1305
        %1373 = vmatmul.bf16.gmra.mxu0 %v1281
        %v1374 = vpop.f32.mrf.mxu0
        %v1375 = vadd.f32 %v1346, %v1374
        %v1376 = vpop.f32.mrf.mxu0
        %v1377 = vadd.f32 %v1348, %v1376
        %1378 = vmatmul.bf16.gmra.mxu0 %v1283
        %v1379 = vpop.f32.mrf.mxu0
        %v1380 = vadd.f32 %v1351, %v1379
        %v1381 = vpop.f32.mrf.mxu0
        %v1382 = vadd.f32 %v1353, %v1381
        %1383 = vmatmul.bf16.gmra.mxu0 %v1285
        %v1384 = vpop.f32.mrf.mxu0
        %v1385 = vadd.f32 %v1356, %v1384
        %v1386 = vpop.f32.mrf.mxu0
        %v1387 = vadd.f32 %v1358, %v1386
        %1388 = vmatmul.bf16.gmra.mxu0 %v1287
        %v1389 = vpop.f32.mrf.mxu0
        %v1390 = vadd.f32 %v1361, %v1389
        %v1391 = vpop.f32.mrf.mxu0
        %v1392 = vadd.f32 %v1363, %v1391
        %1393 = vdwg.mxu0
        %v1394 = vadd.f32 %v1272, %v1375
        %v1395 = vadd.f32 %v1273, %v1377
        %v1396 = vadd.f32 %v1274, %v1380
        %v1397 = vadd.f32 %v1275, %v1382
        %v1398 = vadd.f32 %v1276, %v1385
        %v1399 = vadd.f32 %v1277, %v1387
        %v1400 = vadd.f32 %v1278, %v1390
        %v1401 = vadd.f32 %v1279, %v1392
        %1402 = vst.msk [vmem:[#allocation5] sm:$0xff] %vm615, %v1394
        %1403 = vst.msk [vmem:[#allocation5 + $0x8] sm:$0xff] %vm615, %v1395
        %1404 = vst.msk [vmem:[#allocation5 + $0x10] sm:$0xff] %vm615, %v1396
        %1405 = vst.msk [vmem:[#allocation5 + $0x18] sm:$0xff] %vm615, %v1397
        %1406 = vst.msk [vmem:[#allocation5 + $0x20] sm:$0xff] %vm615, %v1398
        %1407 = vst.msk [vmem:[#allocation5 + $0x28] sm:$0xff] %vm615, %v1399
        %1408 = vst.msk [vmem:[#allocation5 + $0x30] sm:$0xff] %vm615, %v1400
        %1409 = vst.msk [vmem:[#allocation5 + $0x38] sm:$0xff] %vm615, %v1401
        %1410 = vst.msk [vmem:[#allocation3] sm:$0xff] %vm1215, %v1047
        %1411 = vst.msk [vmem:[#allocation3 + $0x8] sm:$0xff] %vm1215, %v1048
        %1412 = vst.msk [vmem:[#allocation3 + $0x10] sm:$0xff] %vm1215, %v1049
        %1413 = vst.msk [vmem:[#allocation3 + $0x18] sm:$0xff] %vm1215, %v1050
        %1414 = vst.msk [vmem:[#allocation3 + $0x20] sm:$0xff] %vm1215, %v1051
        %1415 = vst.msk [vmem:[#allocation3 + $0x28] sm:$0xff] %vm1215, %v1052
        %1416 = vst.msk [vmem:[#allocation3 + $0x30] sm:$0xff] %vm1215, %v1053
        %1417 = vst.msk [vmem:[#allocation3 + $0x38] sm:$0xff] %vm1215, %v1054
        %1418 = vrot.lane.b32.xlu0 %v813, 124
        %v1419 = vpop.permute.xlu0 %1418
        %1420 = vrot.lane.b32.xlu0 %v814, 124
        %v1421 = vpop.permute.xlu0 %1420
        %1422 = vrot.lane.b32.xlu0 %v815, 124
        %v1423 = vpop.permute.xlu0 %1422
        %1424 = vrot.lane.b32.xlu0 %v816, 124
        %v1425 = vpop.permute.xlu0 %1424
        %1426 = vrot.lane.b32.xlu0 %v881, 124
        %v1427 = vpop.permute.xlu0 %1426
        %1428 = vrot.lane.b32.xlu0 %v882, 124
        %v1429 = vpop.permute.xlu0 %1428
        %1430 = vrot.lane.b32.xlu0 %v883, 124
        %v1431 = vpop.permute.xlu0 %1430
        %1432 = vrot.lane.b32.xlu0 %v884, 124
        %v1433 = vpop.permute.xlu0 %1432
        %1434 = vrot.lane.b32.xlu0 %v885, 124
        %v1435 = vpop.permute.xlu0 %1434
        %1436 = vrot.lane.b32.xlu0 %v886, 124
        %v1437 = vpop.permute.xlu0 %1436
        %1438 = vrot.lane.b32.xlu0 %v887, 124
        %v1439 = vpop.permute.xlu0 %1438
        %1440 = vrot.lane.b32.xlu0 %v888, 124
        %v1441 = vpop.permute.xlu0 %1440
        %1442 = vrot.lane.b32.xlu0 %v889, 124
        %v1443 = vpop.permute.xlu0 %1442
        %1444 = vrot.lane.b32.xlu0 %v890, 124
        %v1445 = vpop.permute.xlu0 %1444
        %1446 = vrot.lane.b32.xlu0 %v891, 124
        %v1447 = vpop.permute.xlu0 %1446
        %1448 = vrot.lane.b32.xlu0 %v892, 124
        %v1449 = vpop.permute.xlu0 %1448
        %1450 = vrot.lane.b32.xlu0 %v893, 124
        %v1451 = vpop.permute.xlu0 %1450
        %1452 = vrot.lane.b32.xlu0 %v894, 124
        %v1453 = vpop.permute.xlu0 %1452
        %1454 = vrot.lane.b32.xlu0 %v895, 124
        %v1455 = vpop.permute.xlu0 %1454
        %1456 = vrot.lane.b32.xlu0 %v896, 124
        %v1457 = vpop.permute.xlu0 %1456
        %v1459 = vsel %vm615, %v1419, 0
        %v1462 = vsel %vm615, %v1421, 0
        %v1465 = vsel %vm615, %v1423, 0
        %v1468 = vsel %vm615, %v1425, 0
        %v1471 = vsel %vm615, %v1427, 0
        %v1474 = vsel %vm615, %v1429, 0
        %v1477 = vsel %vm615, %v1431, 0
        %v1480 = vsel %vm615, %v1433, 0
        %v1483 = vsel %vm615, %v1435, 0
        %v1486 = vsel %vm615, %v1437, 0
        %v1489 = vsel %vm615, %v1439, 0
        %v1492 = vsel %vm615, %v1441, 0
        %v1495 = vsel %vm615, %v1443, 0
        %v1498 = vsel %vm615, %v1445, 0
        %v1501 = vsel %vm615, %v1447, 0
        %v1504 = vsel %vm615, %v1449, 0
        %v1507 = vsel %vm615, %v1451, 0
        %v1510 = vsel %vm615, %v1453, 0
        %v1513 = vsel %vm615, %v1455, 0
        %v1516 = vsel %vm615, %v1457, 0
        %1518 = vmatpush.bf16.xpose.msra.mxu0 %v1492
        %1519 = vmatpush.bf16.xpose.msra.mxu0 %v1489
        %1520 = vmatpush.bf16.xpose.msra.mxu0 %v1486
        %1521 = vmatpush.bf16.xpose.msra.mxu0 %v1483
        %1522 = vmatpush.bf16.xpose.msra.mxu0 %v1480
        %1523 = vmatpush.bf16.xpose.msra.mxu0 %v1477
        %1524 = vmatpush.bf16.xpose.msra.mxu0 %v1474
        %1525 = vmatpush.bf16.xpose.msra.mxu0 %v1471
        %1526 = vmatmul.bf16.gmra.mxu0 %v1459
        %v1527 = vpop.f32.mrf.mxu0
        %v1528 = vadd.f32 0.0, %v1527
        %v1529 = vpop.f32.mrf.mxu0
        %v1530 = vadd.f32 0.0, %v1529
        %1531 = vmatmul.bf16.gmra.mxu0 %v1462
        %v1532 = vpop.f32.mrf.mxu0
        %v1533 = vadd.f32 0.0, %v1532
        %v1534 = vpop.f32.mrf.mxu0
        %v1535 = vadd.f32 0.0, %v1534
        %1536 = vmatmul.bf16.gmra.mxu0 %v1465
        %v1537 = vpop.f32.mrf.mxu0
        %v1538 = vadd.f32 0.0, %v1537
        %v1539 = vpop.f32.mrf.mxu0
        %v1540 = vadd.f32 0.0, %v1539
        %1541 = vmatmul.bf16.gmra.mxu0 %v1468
        %v1542 = vpop.f32.mrf.mxu0
        %v1543 = vadd.f32 0.0, %v1542
        %v1544 = vpop.f32.mrf.mxu0
        %v1545 = vadd.f32 0.0, %v1544
        %1546 = vdwg.mxu0
        %1547 = vmatpush.bf16.xpose.msra.mxu0 %v1516
        %1548 = vmatpush.bf16.xpose.msra.mxu0 %v1513
        %1549 = vmatpush.bf16.xpose.msra.mxu0 %v1510
        %1550 = vmatpush.bf16.xpose.msra.mxu0 %v1507
        %1551 = vmatpush.bf16.xpose.msra.mxu0 %v1504
        %1552 = vmatpush.bf16.xpose.msra.mxu0 %v1501
        %1553 = vmatpush.bf16.xpose.msra.mxu0 %v1498
        %1554 = vmatpush.bf16.xpose.msra.mxu0 %v1495
        %1555 = vmatmul.bf16.gmra.mxu0 %v1459
        %v1556 = vpop.f32.mrf.mxu0
        %v1557 = vadd.f32 0.0, %v1556
        %v1558 = vpop.f32.mrf.mxu0
        %v1559 = vadd.f32 0.0, %v1558
        %1560 = vmatmul.bf16.gmra.mxu0 %v1462
        %v1561 = vpop.f32.mrf.mxu0
        %v1562 = vadd.f32 0.0, %v1561
        %v1563 = vpop.f32.mrf.mxu0
        %v1564 = vadd.f32 0.0, %v1563
        %1565 = vmatmul.bf16.gmra.mxu0 %v1465
        %v1566 = vpop.f32.mrf.mxu0
        %v1567 = vadd.f32 0.0, %v1566
        %v1568 = vpop.f32.mrf.mxu0
        %v1569 = vadd.f32 0.0, %v1568
        %1570 = vmatmul.bf16.gmra.mxu0 %v1468
        %v1571 = vpop.f32.mrf.mxu0
        %v1572 = vadd.f32 0.0, %v1571
        %v1573 = vpop.f32.mrf.mxu0
        %v1574 = vadd.f32 0.0, %v1573
        %1575 = vdwg.mxu0
        %s1576 = scalar_lea.vmem [#allocation3], 64
        %v1577 = vld [vmem:[%s1576] sm:$0xff]
        %v1578 = vld [vmem:[%s1576 + $0x8] sm:$0xff]
        %v1579 = vld [vmem:[%s1576 + $0x10] sm:$0xff]
        %v1580 = vld [vmem:[%s1576 + $0x18] sm:$0xff]
        %v1581 = vld [vmem:[%s1576 + $0x20] sm:$0xff]
        %v1582 = vld [vmem:[%s1576 + $0x28] sm:$0xff]
        %v1583 = vld [vmem:[%s1576 + $0x30] sm:$0xff]
        %v1584 = vld [vmem:[%s1576 + $0x38] sm:$0xff]
        %v1585 = vmax.f32 %v1528, %v1557
        %1586 = vmax.xlane.f32.xlu0 %v1585
        %v1587 = vpop.xlane.xlu0 %1586
        %v1588 = vmax.f32 %v1530, %v1559
        %1589 = vmax.xlane.f32.xlu0 %v1588
        %v1590 = vpop.xlane.xlu0 %1589
        %v1591 = vmax.f32 %v1533, %v1562
        %1592 = vmax.xlane.f32.xlu0 %v1591
        %v1593 = vpop.xlane.xlu0 %1592
        %v1594 = vmax.f32 %v1535, %v1564
        %1595 = vmax.xlane.f32.xlu0 %v1594
        %v1596 = vpop.xlane.xlu0 %1595
        %v1597 = vmax.f32 %v1538, %v1567
        %1598 = vmax.xlane.f32.xlu0 %v1597
        %v1599 = vpop.xlane.xlu0 %1598
        %v1600 = vmax.f32 %v1540, %v1569
        %1601 = vmax.xlane.f32.xlu0 %v1600
        %v1602 = vpop.xlane.xlu0 %1601
        %v1603 = vmax.f32 %v1543, %v1572
        %1604 = vmax.xlane.f32.xlu0 %v1603
        %v1605 = vpop.xlane.xlu0 %1604
        %v1606 = vmax.f32 %v1545, %v1574
        %1607 = vmax.xlane.f32.xlu0 %v1606
        %v1608 = vpop.xlane.xlu0 %1607
        %v1609 = vmax.f32 %v1577, %v1587
        %v1610 = vmax.f32 %v1578, %v1590
        %v1611 = vmax.f32 %v1579, %v1593
        %v1612 = vmax.f32 %v1580, %v1596
        %v1613 = vmax.f32 %v1581, %v1599
        %v1614 = vmax.f32 %v1582, %v1602
        %v1615 = vmax.f32 %v1583, %v1605
        %v1616 = vmax.f32 %v1584, %v1608
        %v1617 = vsub.f32 %v1577, %v1609
        %v1618 = vsub.f32 %v1578, %v1610
        %v1619 = vsub.f32 %v1579, %v1611
        %v1620 = vsub.f32 %v1580, %v1612
        %v1621 = vsub.f32 %v1581, %v1613
        %v1622 = vsub.f32 %v1582, %v1614
        %v1623 = vsub.f32 %v1583, %v1615
        %v1624 = vsub.f32 %v1584, %v1616
        %v1625 = vmul.f32 %v1617, 1.442695
        %v1626 = vpow.pop %v1625
        %v1627 = vmul.f32 %v1618, 1.442695
        %v1628 = vpow.pop %v1627
        %v1629 = vmul.f32 %v1619, 1.442695
        %v1630 = vpow.pop %v1629
        %v1631 = vmul.f32 %v1620, 1.442695
        %v1632 = vpow.pop %v1631
        %v1633 = vmul.f32 %v1621, 1.442695
        %v1634 = vpow.pop %v1633
        %v1635 = vmul.f32 %v1622, 1.442695
        %v1636 = vpow.pop %v1635
        %v1637 = vmul.f32 %v1623, 1.442695
        %v1638 = vpow.pop %v1637
        %v1639 = vmul.f32 %v1624, 1.442695
        %v1640 = vpow.pop %v1639
        %1642 = vset.pattern.permute.xlu0 0
        %1643 = vperm.xlu0 %1642, %v1609
        %v1644 = vpop.permute.xlu0 %1643
        %1647 = vset.pattern.permute.xlu0 0
        %1648 = vperm.xlu0 %1647, %v1610
        %v1649 = vpop.permute.xlu0 %1648
        %1652 = vset.pattern.permute.xlu0 0
        %1653 = vperm.xlu0 %1652, %v1611
        %v1654 = vpop.permute.xlu0 %1653
        %1657 = vset.pattern.permute.xlu0 0
        %1658 = vperm.xlu0 %1657, %v1612
        %v1659 = vpop.permute.xlu0 %1658
        %1662 = vset.pattern.permute.xlu0 0
        %1663 = vperm.xlu0 %1662, %v1613
        %v1664 = vpop.permute.xlu0 %1663
        %1667 = vset.pattern.permute.xlu0 0
        %1668 = vperm.xlu0 %1667, %v1614
        %v1669 = vpop.permute.xlu0 %1668
        %1672 = vset.pattern.permute.xlu0 0
        %1673 = vperm.xlu0 %1672, %v1615
        %v1674 = vpop.permute.xlu0 %1673
        %1677 = vset.pattern.permute.xlu0 0
        %1678 = vperm.xlu0 %1677, %v1616
        %v1679 = vpop.permute.xlu0 %1678
        %v1681 = vsub.f32 %v1528, %v1644
        %v1682 = vsub.f32 %v1557, %v1644
        %v1683 = vsub.f32 %v1530, %v1649
        %v1684 = vsub.f32 %v1559, %v1649
        %v1685 = vsub.f32 %v1533, %v1654
        %v1686 = vsub.f32 %v1562, %v1654
        %v1687 = vsub.f32 %v1535, %v1659
        %v1688 = vsub.f32 %v1564, %v1659
        %v1689 = vsub.f32 %v1538, %v1664
        %v1690 = vsub.f32 %v1567, %v1664
        %v1691 = vsub.f32 %v1540, %v1669
        %v1692 = vsub.f32 %v1569, %v1669
        %v1693 = vsub.f32 %v1543, %v1674
        %v1694 = vsub.f32 %v1572, %v1674
        %v1695 = vsub.f32 %v1545, %v1679
        %v1696 = vsub.f32 %v1574, %v1679
        %v1697 = vmul.f32 %v1681, 1.442695
        %v1698 = vpow.pop %v1697
        %v1699 = vmul.f32 %v1682, 1.442695
        %v1700 = vpow.pop %v1699
        %v1701 = vmul.f32 %v1683, 1.442695
        %v1702 = vpow.pop %v1701
        %v1703 = vmul.f32 %v1684, 1.442695
        %v1704 = vpow.pop %v1703
        %v1705 = vmul.f32 %v1685, 1.442695
        %v1706 = vpow.pop %v1705
        %v1707 = vmul.f32 %v1686, 1.442695
        %v1708 = vpow.pop %v1707
        %v1709 = vmul.f32 %v1687, 1.442695
        %v1710 = vpow.pop %v1709
        %v1711 = vmul.f32 %v1688, 1.442695
        %v1712 = vpow.pop %v1711
        %v1713 = vmul.f32 %v1689, 1.442695
        %v1714 = vpow.pop %v1713
        %v1715 = vmul.f32 %v1690, 1.442695
        %v1716 = vpow.pop %v1715
        %v1717 = vmul.f32 %v1691, 1.442695
        %v1718 = vpow.pop %v1717
        %v1719 = vmul.f32 %v1692, 1.442695
        %v1720 = vpow.pop %v1719
        %v1721 = vmul.f32 %v1693, 1.442695
        %v1722 = vpow.pop %v1721
        %v1723 = vmul.f32 %v1694, 1.442695
        %v1724 = vpow.pop %v1723
        %v1725 = vmul.f32 %v1695, 1.442695
        %v1726 = vpow.pop %v1725
        %v1727 = vmul.f32 %v1696, 1.442695
        %v1728 = vpow.pop %v1727
        %s1729 = scalar_lea.vmem [#allocation4], 64
        %v1730 = vld [vmem:[%s1729] sm:$0xff]
        %v1731 = vld [vmem:[%s1729 + $0x8] sm:$0xff]
        %v1732 = vld [vmem:[%s1729 + $0x10] sm:$0xff]
        %v1733 = vld [vmem:[%s1729 + $0x18] sm:$0xff]
        %v1734 = vld [vmem:[%s1729 + $0x20] sm:$0xff]
        %v1735 = vld [vmem:[%s1729 + $0x28] sm:$0xff]
        %v1736 = vld [vmem:[%s1729 + $0x30] sm:$0xff]
        %v1737 = vld [vmem:[%s1729 + $0x38] sm:$0xff]
        %v1738 = vmul.f32 %v1626, %v1730
        %v1739 = vmul.f32 %v1628, %v1731
        %v1740 = vmul.f32 %v1630, %v1732
        %v1741 = vmul.f32 %v1632, %v1733
        %v1742 = vmul.f32 %v1634, %v1734
        %v1743 = vmul.f32 %v1636, %v1735
        %v1744 = vmul.f32 %v1638, %v1736
        %v1745 = vmul.f32 %v1640, %v1737
        %v1746 = vadd.f32 %v1698, %v1700
        %1747 = vadd.xlane.f32.xlu0 %v1746
        %v1748 = vpop.xlane.xlu0 %1747
        %v1749 = vadd.f32 %v1702, %v1704
        %1750 = vadd.xlane.f32.xlu0 %v1749
        %v1751 = vpop.xlane.xlu0 %1750
        %v1752 = vadd.f32 %v1706, %v1708
        %1753 = vadd.xlane.f32.xlu0 %v1752
        %v1754 = vpop.xlane.xlu0 %1753
        %v1755 = vadd.f32 %v1710, %v1712
        %1756 = vadd.xlane.f32.xlu0 %v1755
        %v1757 = vpop.xlane.xlu0 %1756
        %v1758 = vadd.f32 %v1714, %v1716
        %1759 = vadd.xlane.f32.xlu0 %v1758
        %v1760 = vpop.xlane.xlu0 %1759
        %v1761 = vadd.f32 %v1718, %v1720
        %1762 = vadd.xlane.f32.xlu0 %v1761
        %v1763 = vpop.xlane.xlu0 %1762
        %v1764 = vadd.f32 %v1722, %v1724
        %1765 = vadd.xlane.f32.xlu0 %v1764
        %v1766 = vpop.xlane.xlu0 %1765
        %v1767 = vadd.f32 %v1726, %v1728
        %1768 = vadd.xlane.f32.xlu0 %v1767
        %v1769 = vpop.xlane.xlu0 %1768
        %v1770 = vadd.f32 %v1738, %v1748
        %v1771 = vadd.f32 %v1739, %v1751
        %v1772 = vadd.f32 %v1740, %v1754
        %v1773 = vadd.f32 %v1741, %v1757
        %v1774 = vadd.f32 %v1742, %v1760
        %v1775 = vadd.f32 %v1743, %v1763
        %v1776 = vadd.f32 %v1744, %v1766
        %v1777 = vadd.f32 %v1745, %v1769
        %1778 = vst.msk [vmem:[%s1729] sm:$0xff] %vm1215, %v1770
        %1779 = vst.msk [vmem:[%s1729 + $0x8] sm:$0xff] %vm1215, %v1771
        %1780 = vst.msk [vmem:[%s1729 + $0x10] sm:$0xff] %vm1215, %v1772
        %1781 = vst.msk [vmem:[%s1729 + $0x18] sm:$0xff] %vm1215, %v1773
        %1782 = vst.msk [vmem:[%s1729 + $0x20] sm:$0xff] %vm1215, %v1774
        %1783 = vst.msk [vmem:[%s1729 + $0x28] sm:$0xff] %vm1215, %v1775
        %1784 = vst.msk [vmem:[%s1729 + $0x30] sm:$0xff] %vm1215, %v1776
        %1785 = vst.msk [vmem:[%s1729 + $0x38] sm:$0xff] %vm1215, %v1777
        %v1786 = vld [vmem:[#allocation5] sm:$0xff]
        %v1787 = vld [vmem:[#allocation5 + $0x8] sm:$0xff]
        %v1788 = vld [vmem:[#allocation5 + $0x10] sm:$0xff]
        %v1789 = vld [vmem:[#allocation5 + $0x18] sm:$0xff]
        %v1790 = vld [vmem:[#allocation5 + $0x20] sm:$0xff]
        %v1791 = vld [vmem:[#allocation5 + $0x28] sm:$0xff]
        %v1792 = vld [vmem:[#allocation5 + $0x30] sm:$0xff]
        %v1793 = vld [vmem:[#allocation5 + $0x38] sm:$0xff]
        %1795 = vset.pattern.permute.xlu0 0
        %1796 = vperm.xlu0 %1795, %v1626
        %v1797 = vpop.permute.xlu0 %1796
        %1800 = vset.pattern.permute.xlu0 0
        %1801 = vperm.xlu0 %1800, %v1628
        %v1802 = vpop.permute.xlu0 %1801
        %1805 = vset.pattern.permute.xlu0 0
        %1806 = vperm.xlu0 %1805, %v1630
        %v1807 = vpop.permute.xlu0 %1806
        %1810 = vset.pattern.permute.xlu0 0
        %1811 = vperm.xlu0 %1810, %v1632
        %v1812 = vpop.permute.xlu0 %1811
        %1815 = vset.pattern.permute.xlu0 0
        %1816 = vperm.xlu0 %1815, %v1634
        %v1817 = vpop.permute.xlu0 %1816
        %1820 = vset.pattern.permute.xlu0 0
        %1821 = vperm.xlu0 %1820, %v1636
        %v1822 = vpop.permute.xlu0 %1821
        %1825 = vset.pattern.permute.xlu0 0
        %1826 = vperm.xlu0 %1825, %v1638
        %v1827 = vpop.permute.xlu0 %1826
        %1830 = vset.pattern.permute.xlu0 0
        %1831 = vperm.xlu0 %1830, %v1640
        %v1832 = vpop.permute.xlu0 %1831
        %v1834 = vmul.f32 %v1797, %v1786
        %v1835 = vmul.f32 %v1802, %v1787
        %v1836 = vmul.f32 %v1807, %v1788
        %v1837 = vmul.f32 %v1812, %v1789
        %v1838 = vmul.f32 %v1817, %v1790
        %v1839 = vmul.f32 %v1822, %v1791
        %v1840 = vmul.f32 %v1827, %v1792
        %v1841 = vmul.f32 %v1832, %v1793
        %v1842 = vpack.c.bf16 %v1702, %v1698
        %v1843 = vpack.c.bf16 %v1704, %v1700
        %v1844 = vpack.c.bf16 %v1710, %v1706
        %v1845 = vpack.c.bf16 %v1712, %v1708
        %v1846 = vpack.c.bf16 %v1718, %v1714
        %v1847 = vpack.c.bf16 %v1720, %v1716
        %v1848 = vpack.c.bf16 %v1726, %v1722
        %v1849 = vpack.c.bf16 %v1728, %v1724
        %1850 = vrot.lane.b32.xlu0 %v881, 116
        %v1851 = vpop.permute.xlu0 %1850
        %1852 = vrot.lane.b32.xlu0 %v882, 116
        %v1853 = vpop.permute.xlu0 %1852
        %1854 = vrot.lane.b32.xlu0 %v883, 116
        %v1855 = vpop.permute.xlu0 %1854
        %1856 = vrot.lane.b32.xlu0 %v884, 116
        %v1857 = vpop.permute.xlu0 %1856
        %1858 = vrot.lane.b32.xlu0 %v885, 116
        %v1859 = vpop.permute.xlu0 %1858
        %1860 = vrot.lane.b32.xlu0 %v886, 116
        %v1861 = vpop.permute.xlu0 %1860
        %1862 = vrot.lane.b32.xlu0 %v887, 116
        %v1863 = vpop.permute.xlu0 %1862
        %1864 = vrot.lane.b32.xlu0 %v888, 116
        %v1865 = vpop.permute.xlu0 %1864
        %1866 = vrot.lane.b32.xlu0 %v889, 116
        %v1867 = vpop.permute.xlu0 %1866
        %1868 = vrot.lane.b32.xlu0 %v890, 116
        %v1869 = vpop.permute.xlu0 %1868
        %1870 = vrot.lane.b32.xlu0 %v891, 116
        %v1871 = vpop.permute.xlu0 %1870
        %1872 = vrot.lane.b32.xlu0 %v892, 116
        %v1873 = vpop.permute.xlu0 %1872
        %1874 = vrot.lane.b32.xlu0 %v893, 116
        %v1875 = vpop.permute.xlu0 %1874
        %1876 = vrot.lane.b32.xlu0 %v894, 116
        %v1877 = vpop.permute.xlu0 %1876
        %1878 = vrot.lane.b32.xlu0 %v895, 116
        %v1879 = vpop.permute.xlu0 %1878
        %1880 = vrot.lane.b32.xlu0 %v896, 116
        %v1881 = vpop.permute.xlu0 %1880
        %1898 = vmatpush.bf16.msra.mxu0 %v1865
        %1899 = vmatpush.bf16.msra.mxu0 %v1863
        %1900 = vmatpush.bf16.msra.mxu0 %v1861
        %1901 = vmatpush.bf16.msra.mxu0 %v1859
        %1902 = vmatpush.bf16.msra.mxu0 %v1857
        %1903 = vmatpush.bf16.msra.mxu0 %v1855
        %1904 = vmatpush.bf16.msra.mxu0 %v1853
        %1905 = vmatpush.bf16.msra.mxu0 %v1851
        %1906 = vmatmul.bf16.gmra.mxu0 %v1842
        %v1907 = vpop.f32.mrf.mxu0
        %v1908 = vadd.f32 0.0, %v1907
        %v1909 = vpop.f32.mrf.mxu0
        %v1910 = vadd.f32 0.0, %v1909
        %1911 = vmatmul.bf16.gmra.mxu0 %v1844
        %v1912 = vpop.f32.mrf.mxu0
        %v1913 = vadd.f32 0.0, %v1912
        %v1914 = vpop.f32.mrf.mxu0
        %v1915 = vadd.f32 0.0, %v1914
        %1916 = vmatmul.bf16.gmra.mxu0 %v1846
        %v1917 = vpop.f32.mrf.mxu0
        %v1918 = vadd.f32 0.0, %v1917
        %v1919 = vpop.f32.mrf.mxu0
        %v1920 = vadd.f32 0.0, %v1919
        %1921 = vmatmul.bf16.gmra.mxu0 %v1848
        %v1922 = vpop.f32.mrf.mxu0
        %v1923 = vadd.f32 0.0, %v1922
        %v1924 = vpop.f32.mrf.mxu0
        %v1925 = vadd.f32 0.0, %v1924
        %1926 = vdwg.mxu0
        %1927 = vmatpush.bf16.msra.mxu0 %v1881
        %1928 = vmatpush.bf16.msra.mxu0 %v1879
        %1929 = vmatpush.bf16.msra.mxu0 %v1877
        %1930 = vmatpush.bf16.msra.mxu0 %v1875
        %1931 = vmatpush.bf16.msra.mxu0 %v1873
        %1932 = vmatpush.bf16.msra.mxu0 %v1871
        %1933 = vmatpush.bf16.msra.mxu0 %v1869
        %1934 = vmatpush.bf16.msra.mxu0 %v1867
        %1935 = vmatmul.bf16.gmra.mxu0 %v1843
        %v1936 = vpop.f32.mrf.mxu0
        %v1937 = vadd.f32 %v1908, %v1936
        %v1938 = vpop.f32.mrf.mxu0
        %v1939 = vadd.f32 %v1910, %v1938
        %1940 = vmatmul.bf16.gmra.mxu0 %v1845
        %v1941 = vpop.f32.mrf.mxu0
        %v1942 = vadd.f32 %v1913, %v1941
        %v1943 = vpop.f32.mrf.mxu0
        %v1944 = vadd.f32 %v1915, %v1943
        %1945 = vmatmul.bf16.gmra.mxu0 %v1847
        %v1946 = vpop.f32.mrf.mxu0
        %v1947 = vadd.f32 %v1918, %v1946
        %v1948 = vpop.f32.mrf.mxu0
        %v1949 = vadd.f32 %v1920, %v1948
        %1950 = vmatmul.bf16.gmra.mxu0 %v1849
        %v1951 = vpop.f32.mrf.mxu0
        %v1952 = vadd.f32 %v1923, %v1951
        %v1953 = vpop.f32.mrf.mxu0
        %v1954 = vadd.f32 %v1925, %v1953
        %1955 = vdwg.mxu0
        %1964 = vrot.lane.b32.xlu0 %v1937, 4
        %v1965 = vpop.permute.xlu0 %1964
        %1966 = vrot.lane.b32.xlu0 %v1939, 4
        %v1967 = vpop.permute.xlu0 %1966
        %1968 = vrot.lane.b32.xlu0 %v1942, 4
        %v1969 = vpop.permute.xlu0 %1968
        %1970 = vrot.lane.b32.xlu0 %v1944, 4
        %v1971 = vpop.permute.xlu0 %1970
        %1972 = vrot.lane.b32.xlu0 %v1947, 4
        %v1973 = vpop.permute.xlu0 %1972
        %1974 = vrot.lane.b32.xlu0 %v1949, 4
        %v1975 = vpop.permute.xlu0 %1974
        %1976 = vrot.lane.b32.xlu0 %v1952, 4
        %v1977 = vpop.permute.xlu0 %1976
        %1978 = vrot.lane.b32.xlu0 %v1954, 4
        %v1979 = vpop.permute.xlu0 %1978
        %v1988 = vadd.f32 %v1834, %v1965
        %v1989 = vadd.f32 %v1835, %v1967
        %v1990 = vadd.f32 %v1836, %v1969
        %v1991 = vadd.f32 %v1837, %v1971
        %v1992 = vadd.f32 %v1838, %v1973
        %v1993 = vadd.f32 %v1839, %v1975
        %v1994 = vadd.f32 %v1840, %v1977
        %v1995 = vadd.f32 %v1841, %v1979
        %vm1996 = vcmask 64544
        %1997 = vst.msk [vmem:[#allocation5] sm:$0xff] %vm1996, %v1988
        %1998 = vst.msk [vmem:[#allocation5 + $0x8] sm:$0xff] %vm1996, %v1989
        %1999 = vst.msk [vmem:[#allocation5 + $0x10] sm:$0xff] %vm1996, %v1990
        %2000 = vst.msk [vmem:[#allocation5 + $0x18] sm:$0xff] %vm1996, %v1991
        %2001 = vst.msk [vmem:[#allocation5 + $0x20] sm:$0xff] %vm1996, %v1992
        %2002 = vst.msk [vmem:[#allocation5 + $0x28] sm:$0xff] %vm1996, %v1993
        %2003 = vst.msk [vmem:[#allocation5 + $0x30] sm:$0xff] %vm1996, %v1994
        %2004 = vst.msk [vmem:[#allocation5 + $0x38] sm:$0xff] %vm1996, %v1995
        %2005 = vst.msk [vmem:[%s1576] sm:$0xff] %vm1215, %v1609
        %2006 = vst.msk [vmem:[%s1576 + $0x8] sm:$0xff] %vm1215, %v1610
        %2007 = vst.msk [vmem:[%s1576 + $0x10] sm:$0xff] %vm1215, %v1611
        %2008 = vst.msk [vmem:[%s1576 + $0x18] sm:$0xff] %vm1215, %v1612
        %2009 = vst.msk [vmem:[%s1576 + $0x20] sm:$0xff] %vm1215, %v1613
        %2010 = vst.msk [vmem:[%s1576 + $0x28] sm:$0xff] %vm1215, %v1614
        %2011 = vst.msk [vmem:[%s1576 + $0x30] sm:$0xff] %vm1215, %v1615
        %2012 = vst.msk [vmem:[%s1576 + $0x38] sm:$0xff] %vm1215, %v1616
        // Predicated region
        $region49: #{down_gto_v1_forward.5} parent=43 // pred_check
          %p2013 = pneg %p361
        $region50: #{down_gto_v1_forward.5} parent=43 // pred_check_branch
          %2015 = sbr.rel (%p2013) target = $region52
        $region51: #{down_gto_v1_forward.5} parent=43 // pred_region
          %v2016 = vld [vmem:[#allocation5] sm:$0xff]
          %v2017 = vld [vmem:[#allocation5 + $0x8] sm:$0xff]
          %v2018 = vld [vmem:[#allocation5 + $0x10] sm:$0xff]
          %v2019 = vld [vmem:[#allocation5 + $0x18] sm:$0xff]
          %v2020 = vld [vmem:[#allocation5 + $0x20] sm:$0xff]
          %v2021 = vld [vmem:[#allocation5 + $0x28] sm:$0xff]
          %v2022 = vld [vmem:[#allocation5 + $0x30] sm:$0xff]
          %v2023 = vld [vmem:[#allocation5 + $0x38] sm:$0xff]
          %v2024 = vld [vmem:[#allocation4] sm:$0xff]
          %v2025 = vld [vmem:[#allocation4 + $0x8] sm:$0xff]
          %v2026 = vld [vmem:[#allocation4 + $0x10] sm:$0xff]
          %v2027 = vld [vmem:[#allocation4 + $0x18] sm:$0xff]
          %v2028 = vld [vmem:[#allocation4 + $0x20] sm:$0xff]
          %v2029 = vld [vmem:[#allocation4 + $0x28] sm:$0xff]
          %v2030 = vld [vmem:[#allocation4 + $0x30] sm:$0xff]
          %v2031 = vld [vmem:[#allocation4 + $0x38] sm:$0xff]
          %v2032 = vrcp.pop %v2024
          %v2033 = vrcp.pop %v2025
          %v2034 = vrcp.pop %v2026
          %v2035 = vrcp.pop %v2027
          %v2036 = vrcp.pop %v2028
          %v2037 = vrcp.pop %v2029
          %v2038 = vrcp.pop %v2030
          %v2039 = vrcp.pop %v2031
          %2041 = vset.pattern.permute.xlu0 0
          %2042 = vperm.xlu0 %2041, %v2032
          %v2043 = vpop.permute.xlu0 %2042
          %2046 = vset.pattern.permute.xlu0 0
          %2047 = vperm.xlu0 %2046, %v2033
          %v2048 = vpop.permute.xlu0 %2047
          %2051 = vset.pattern.permute.xlu0 0
          %2052 = vperm.xlu0 %2051, %v2034
          %v2053 = vpop.permute.xlu0 %2052
          %2056 = vset.pattern.permute.xlu0 0
          %2057 = vperm.xlu0 %2056, %v2035
          %v2058 = vpop.permute.xlu0 %2057
          %2061 = vset.pattern.permute.xlu0 0
          %2062 = vperm.xlu0 %2061, %v2036
          %v2063 = vpop.permute.xlu0 %2062
          %2066 = vset.pattern.permute.xlu0 0
          %2067 = vperm.xlu0 %2066, %v2037
          %v2068 = vpop.permute.xlu0 %2067
          %2071 = vset.pattern.permute.xlu0 0
          %2072 = vperm.xlu0 %2071, %v2038
          %v2073 = vpop.permute.xlu0 %2072
          %2076 = vset.pattern.permute.xlu0 0
          %2077 = vperm.xlu0 %2076, %v2039
          %v2078 = vpop.permute.xlu0 %2077
          %v2080 = vmul.f32 %v2016, %v2043
          %v2081 = vmul.f32 %v2017, %v2048
          %v2082 = vmul.f32 %v2018, %v2053
          %v2083 = vmul.f32 %v2019, %v2058
          %v2084 = vmul.f32 %v2020, %v2063
          %v2085 = vmul.f32 %v2021, %v2068
          %v2086 = vmul.f32 %v2022, %v2073
          %v2087 = vmul.f32 %v2023, %v2078
          %v2088 = vld [vmem:[%s1729] sm:$0xff]
          %v2089 = vld [vmem:[%s1729 + $0x8] sm:$0xff]
          %v2090 = vld [vmem:[%s1729 + $0x10] sm:$0xff]
          %v2091 = vld [vmem:[%s1729 + $0x18] sm:$0xff]
          %v2092 = vld [vmem:[%s1729 + $0x20] sm:$0xff]
          %v2093 = vld [vmem:[%s1729 + $0x28] sm:$0xff]
          %v2094 = vld [vmem:[%s1729 + $0x30] sm:$0xff]
          %v2095 = vld [vmem:[%s1729 + $0x38] sm:$0xff]
          %v2096 = vrcp.pop %v2088
          %v2097 = vrcp.pop %v2089
          %v2098 = vrcp.pop %v2090
          %v2099 = vrcp.pop %v2091
          %v2100 = vrcp.pop %v2092
          %v2101 = vrcp.pop %v2093
          %v2102 = vrcp.pop %v2094
          %v2103 = vrcp.pop %v2095
          %2105 = vset.pattern.permute.xlu0 0
          %2106 = vperm.xlu0 %2105, %v2096
          %v2107 = vpop.permute.xlu0 %2106
          %2110 = vset.pattern.permute.xlu0 0
          %2111 = vperm.xlu0 %2110, %v2097
          %v2112 = vpop.permute.xlu0 %2111
          %2115 = vset.pattern.permute.xlu0 0
          %2116 = vperm.xlu0 %2115, %v2098
          %v2117 = vpop.permute.xlu0 %2116
          %2120 = vset.pattern.permute.xlu0 0
          %2121 = vperm.xlu0 %2120, %v2099
          %v2122 = vpop.permute.xlu0 %2121
          %2125 = vset.pattern.permute.xlu0 0
          %2126 = vperm.xlu0 %2125, %v2100
          %v2127 = vpop.permute.xlu0 %2126
          %2130 = vset.pattern.permute.xlu0 0
          %2131 = vperm.xlu0 %2130, %v2101
          %v2132 = vpop.permute.xlu0 %2131
          %2135 = vset.pattern.permute.xlu0 0
          %2136 = vperm.xlu0 %2135, %v2102
          %v2137 = vpop.permute.xlu0 %2136
          %2140 = vset.pattern.permute.xlu0 0
          %2141 = vperm.xlu0 %2140, %v2103
          %v2142 = vpop.permute.xlu0 %2141
          %v2144 = vmul.f32 %v2016, %v2107
          %v2145 = vmul.f32 %v2017, %v2112
          %v2146 = vmul.f32 %v2018, %v2117
          %v2147 = vmul.f32 %v2019, %v2122
          %v2148 = vmul.f32 %v2020, %v2127
          %v2149 = vmul.f32 %v2021, %v2132
          %v2150 = vmul.f32 %v2022, %v2137
          %v2151 = vmul.f32 %v2023, %v2142
          %v2152 = vsel %vm615, %v2080, %v2144
          %v2153 = vsel %vm615, %v2081, %v2145
          %v2154 = vsel %vm615, %v2082, %v2146
          %v2155 = vsel %vm615, %v2083, %v2147
          %v2156 = vsel %vm615, %v2084, %v2148
          %v2157 = vsel %vm615, %v2085, %v2149
          %v2158 = vsel %vm615, %v2086, %v2150
          %v2159 = vsel %vm615, %v2087, %v2151
          %v2160 = vld [vmem:[%s357] sm:$0xff]
          %v2161 = vld [vmem:[%s357 + $0x8] sm:$0xff]
          %v2162 = vld [vmem:[%s357 + $0x10] sm:$0xff]
          %v2163 = vld [vmem:[%s357 + $0x18] sm:$0xff]
          %v2164 = vld [vmem:[%s357 + $0x20] sm:$0xff]
          %v2165 = vld [vmem:[%s357 + $0x28] sm:$0xff]
          %v2166 = vld [vmem:[%s357 + $0x30] sm:$0xff]
          %v2167 = vld [vmem:[%s357 + $0x38] sm:$0xff]
          %v2168 = vpack.c.bf16 %v2153, %v2152
          %v2169 = vpack.c.bf16 %v2155, %v2154
          %v2170 = vpack.c.bf16 %v2157, %v2156
          %v2171 = vpack.c.bf16 %v2159, %v2158
          %v2172 = vld [vmem:[%s4] sm:$0xf]
          %vm2173 = vcmask 64512
          %v2175 = vsel %vm2173, %v2168, 0
          %v2178 = vsel %vm2173, %v2169, 0
          %v2181 = vsel %vm2173, %v2170, 0
          %v2184 = vsel %vm2173, %v2171, 0
          %vm2186 = vcmask 1043456
          %v2188 = vsel %vm2186, %v2172, 0
          %2190 = vmatpush.bf16.msra.mxu0 0
          %2191 = vmatpush.bf16.msra.mxu0 0
          %2192 = vmatpush.bf16.msra.mxu0 0
          %2193 = vmatpush.bf16.msra.mxu0 0
          %2194 = vmatpush.bf16.msra.mxu0 0
          %2195 = vmatpush.bf16.msra.mxu0 0
          %2196 = vmatpush.bf16.msra.mxu0 0
          %2197 = vmatpush.bf16.msra.mxu0 %v2188
          %2198 = vmatmul.bf16.gmra.mxu0 %v2175
          %v2199 = vpop.f32.mrf.mxu0
          %v2200 = vadd.f32 0.0, %v2199
          %v2201 = vpop.f32.mrf.mxu0
          %v2202 = vadd.f32 0.0, %v2201
          %2203 = vmatmul.bf16.gmra.mxu0 %v2178
          %v2204 = vpop.f32.mrf.mxu0
          %v2205 = vadd.f32 0.0, %v2204
          %v2206 = vpop.f32.mrf.mxu0
          %v2207 = vadd.f32 0.0, %v2206
          %2208 = vmatmul.bf16.gmra.mxu0 %v2181
          %v2209 = vpop.f32.mrf.mxu0
          %v2210 = vadd.f32 0.0, %v2209
          %v2211 = vpop.f32.mrf.mxu0
          %v2212 = vadd.f32 0.0, %v2211
          %2213 = vmatmul.bf16.gmra.mxu0 %v2184
          %v2214 = vpop.f32.mrf.mxu0
          %v2215 = vadd.f32 0.0, %v2214
          %v2216 = vpop.f32.mrf.mxu0
          %v2217 = vadd.f32 0.0, %v2216
          %2218 = vdwg.mxu0
          %v2219 = vadd.f32 %v2160, %v2200
          %v2220 = vadd.f32 %v2161, %v2202
          %v2221 = vadd.f32 %v2162, %v2205
          %v2222 = vadd.f32 %v2163, %v2207
          %v2223 = vadd.f32 %v2164, %v2210
          %v2224 = vadd.f32 %v2165, %v2212
          %v2225 = vadd.f32 %v2166, %v2215
          %v2226 = vadd.f32 %v2167, %v2217
          %vm2227 = vcmask 130048
          %2228 = vst.msk [vmem:[%s328] sm:$0xff] %vm2227, %v2219
          %2229 = vst.msk [vmem:[%s328 + $0x8] sm:$0xff] %vm2227, %v2220
          %2230 = vst.msk [vmem:[%s328 + $0x10] sm:$0xff] %vm2227, %v2221
          %2231 = vst.msk [vmem:[%s328 + $0x18] sm:$0xff] %vm2227, %v2222
          %2232 = vst.msk [vmem:[%s328 + $0x20] sm:$0xff] %vm2227, %v2223
          %2233 = vst.msk [vmem:[%s328 + $0x28] sm:$0xff] %vm2227, %v2224
          %2234 = vst.msk [vmem:[%s328 + $0x30] sm:$0xff] %vm2227, %v2225
          %2235 = vst.msk [vmem:[%s328 + $0x38] sm:$0xff] %vm2227, %v2226
        $region52: #{down_gto_v1_forward.5} parent=43 // pred_fallthru
          _
        %s2236 = sand.u32 %s196, 1
        %s2237 = scalar_lea.sflag [#allocation7], %s2236
        %s2238 = sand.u32 %s196, 1
        %s2239 = smul.addr %s2238, 64
        %s2240 = scalar_lea.vmem [#allocation6], %s2239
        // Predicated region
        $region53: #{down_gto_v1_forward.5} parent=43 // pred_check
          %p2241 = pneg %p206
        $region54: #{down_gto_v1_forward.5} parent=43 // pred_check_branch
          %2243 = sbr.rel (%p2241) target = $region56
        $region55: #{down_gto_v1_forward.5} parent=43 // pred_region
          %s2244 = smul.u32 8, %s26
          %2246 = vsyncadd %s2237, 0
          %s2247 = smul.addr %s25, 8
          %s2248 = sadd.s32 %s2244, %s2247
          %s2249 = smul.addr %s2248, 8
          %s2250 = scalar_lea.hbm %s6, %s2249
          %s2251 = sshll.u32 %s2240, 4
          %s2252 = int_to_ptr.vmem [resolvable:$true] %s2251
          %s2253 = sshll.u32 %s2250, 4
          %s2254 = int_to_ptr.hbm [resolvable:$true] %s2253
          %2259 = dma.vmem_to_hbm [thread:$0]  %s2252, 1024, %s2254, %s2237, 128, 128, 8
        $region56: #{down_gto_v1_forward.5} parent=43 // pred_fallthru
          _
      $region44: #{down_gto_v1_forward.5} parent=5 // pred_fallthru
        _
      %p2260 = scmp.le.s32.totalorder 2, %s15
      // Predicated region
      $region57: #{down_gto_v1_forward.5} parent=5 // pred_check
        %p2261 = pneg %p2260
      $region58: #{down_gto_v1_forward.5} parent=5 // pred_check_branch
        %2263 = sbr.rel (%p2261) target = $region60
      $region59: #{down_gto_v1_forward.5} parent=5 // pred_region
        %s2264 = ssub.s32 %s15, 2
        // Predicated region
        $region61: #{down_gto_v1_forward.5} parent=59 // pred_check
          %p2265 = pneg %p212
        $region62: #{down_gto_v1_forward.5} parent=59 // pred_check_branch
          %2267 = sbr.rel (%p2265) target = $region64
        $region63: #{down_gto_v1_forward.5} parent=59 // pred_region
          %s2268 = sand.u32 %s197, 1
          %s2269 = scalar_lea.sflag [#allocation7], %s2268
          %s2270 = sand.u32 %s197, 1
          %s2271 = smul.addr %s2270, 64
          %s2272 = scalar_lea.vmem [#allocation6], %s2271
          %2274 = dma.done %s2269, 1024
        $region64: #{down_gto_v1_forward.5} parent=59 // pred_fallthru
          _
      $region60: #{down_gto_v1_forward.5} parent=5 // pred_fallthru
        _
    $region6: #{down_gto_v1_forward.5} parent=1 // loop_footer
      %s19 = sadd.s32 1, %s15
    $region7: #{down_gto_v1_forward.5} parent=1 // loop_footer_branch
      %14 = sbr.rel target = $region3
    $region8: #{down_gto_v1_forward.5} parent=1 // loop_exit
      _
    %2275 = vsyncpa [#allocation7], 1
    %s2276 = scalar_lea.sflag [#allocation7], 1
    %2277 = vsyncpa %s2276, 1

</llo_original>
